<compile_context>
chip_gen: v7x
topology: tpu7x:2x2x1
jax: 0.10.0
libtpu: 0.0.40
codegen_flags: <defaults>
</compile_context>

<pallas_src>
import functools
import math

import jax
import jax.numpy as jnp
from jax import lax
from jax.experimental import pallas as pl
from jax.experimental.pallas import tpu as pltpu

NEG_INF = -1e30


# ----------------------------------------------------------------- helpers
def _sincos_pos_encoding(max_len, d_model):
    """Matches the PyTorch PositionalEncoding buffer construction (float32)."""
    position = jnp.arange(max_len, dtype=jnp.float32)[:, None]
    div_term = jnp.exp(jnp.arange(0, d_model, 2, dtype=jnp.float32)
                       * (-math.log(10000.0) / d_model))
    pe = jnp.zeros((max_len, d_model), dtype=jnp.float32)
    pe = pe.at[:, 0::2].set(jnp.sin(position * div_term))
    pe = pe.at[:, 1::2].set(jnp.cos(position * div_term))
    return pe


def _stack_layer_params(raw_layers, num_heads):
    """Stack per-layer weights and split heads wrapper-side (no in-kernel slicing)."""
    D = raw_layers[0]["wq"].shape[0]
    hd = D // num_heads
    dl = raw_layers[0]["wdown"].shape[1]
    return {
        "wk": jnp.stack([lp["wk"] for lp in raw_layers]),            # (L, D, D)
        "wv": jnp.stack([lp["wv"] for lp in raw_layers]),            # (L, D, D)
        "wdown": jnp.stack([lp["wdown"] for lp in raw_layers]),      # (L, D, dl)
        # q head h = x @ wq[:, h*hd:(h+1)*hd]  -> (L, H, D, hd)
        "wq_h": jnp.stack([lp["wq"].reshape(D, num_heads, hd).transpose(1, 0, 2)
                           for lp in raw_layers]),
        "wupk_h": jnp.stack([lp["wup_k"].reshape(dl, num_heads, hd).transpose(1, 0, 2)
                             for lp in raw_layers]),                 # (L, H, dl, hd)
        "wupv_h": jnp.stack([lp["wup_v"].reshape(dl, num_heads, hd).transpose(1, 0, 2)
                             for lp in raw_layers]),                 # (L, H, dl, hd)
        # concat(heads) @ wo == sum_h head_h @ wo[h*hd:(h+1)*hd, :] -> (L, H, hd, D)
        "wo_h": jnp.stack([lp["wo"].reshape(num_heads, hd, D) for lp in raw_layers]),
    }


def _full_spec(shape):
    """Full-extent BlockSpec for the single-step (grid=(1,)) prefetch grid."""
    ndim = len(shape)
    return pl.BlockSpec(shape, lambda i, lvl, _n=ndim: (0,) * _n)


# ----------------------------------------------------------------- fused kernel
def _fused_forward_kernel(level_ref, ids_ref, table_ref, pos_ref,
                          wk_ref, wv_ref, wdown_ref,
                          wq_h_ref, wupk_h_ref, wupv_h_ref, wo_h_ref,
                          dscale_ref, dbias_ref, fcw_ref, fcb_ref, o_ref):
    # level_ref:  SMEM (1,) int32 scalar prefetch (already consumed by the table
    #             index_map; not needed in the body).
    # ids_ref:    (B*S, 1)  int32 token ids.
    # table_ref:  (1, V, D) f32, embedding table of the selected level only.
    # pos_ref:    (S, D)    f32, pos_enc[:S].
    # wk/wv:      (L, D, D), wdown: (L, D, dl)
    # wq_h:       (L, H, D, hd), wupk_h/wupv_h: (L, H, dl, hd), wo_h: (L, H, hd, D)
    # dscale_ref: (B*S, B*S) block-diag time-decay, 0 off the batch diagonal.
    # dbias_ref:  (B*S, B*S) 0 on batch-diagonal blocks, -1e30 elsewhere.
    # fcw_ref:    (D, V), fcb_ref: (1, V)
    # o_ref:      (B*S, V)  (lane-dense output; reshaped to (B, S, V) in wrapper)
    del level_ref
    BS = ids_ref.shape[0]
    S, D = pos_ref.shape
    B = BS // S
    V_emb = table_ref.shape[1]
    num_layers = wk_ref.shape[0]
    num_heads = wq_h_ref.shape[1]
    inv_sqrt_d = 1.0 / math.sqrt(D)                 # PyTorch scales by sqrt(d_model)

    # ---- hierarchical embedding (clamp + one-hot MXU gather) + positional encoding
    ids = jnp.clip(ids_ref[...], 0, V_emb - 1)
    onehot = (ids == lax.broadcasted_iota(jnp.int32, (BS, V_emb), 1)).astype(jnp.float32)
    emb = jnp.dot(onehot, table_ref[0], preferred_element_type=jnp.float32)   # (BS, D)
    x = emb + jnp.tile(pos_ref[...], (B, 1))                                  # (BS, D)

    dscale = dscale_ref[...]
    dbias = dbias_ref[...]

    # ---- encoder layers (static unroll: num_layers * num_heads is tiny)
    for l in range(num_layers):
        k = jnp.dot(x, wk_ref[l], preferred_element_type=jnp.float32)         # (BS, D)
        v = jnp.dot(x, wv_ref[l], preferred_element_type=jnp.float32)         # (BS, D)
        lat = jnp.dot(k + v, wdown_ref[l], preferred_element_type=jnp.float32)  # (BS, dl)
        acc = jnp.zeros((BS, D), dtype=jnp.float32)
        for h in range(num_heads):
            qh = jnp.dot(x, wq_h_ref[l, h], preferred_element_type=jnp.float32)      # (BS, hd)
            kh = jnp.dot(lat, wupk_h_ref[l, h], preferred_element_type=jnp.float32)  # (BS, hd)
            vh = jnp.dot(lat, wupv_h_ref[l, h], preferred_element_type=jnp.float32)  # (BS, hd)
            s = lax.dot_general(qh, kh, (((1,), (1,)), ((), ())),
                                preferred_element_type=jnp.float32)                  # (BS, BS)
            # scale, time-decay, and block-diagonal batch mask (additive -inf)
            s = s * inv_sqrt_d * dscale + dbias
            s = s - jnp.max(s, axis=-1, keepdims=True)                               # softmax
            p = jnp.exp(s)
            p = p / jnp.sum(p, axis=-1, keepdims=True)
            oh = jnp.dot(p, vh, preferred_element_type=jnp.float32)                  # (BS, hd)
            # concat(heads) @ W_o == sum over heads of oh @ W_o[h*hd:(h+1)*hd, :]
            acc = acc + jnp.dot(oh, wo_h_ref[l, h], preferred_element_type=jnp.float32)
        x = acc
        # TODO(synk): MHLA's `self.memory` (running latent_kv means) is a Python-side
        # stateful buffer with no effect on the returned output; not modeled here.

    # ---- fc_out
    o_ref[...] = jnp.dot(x, fcw_ref[...], preferred_element_type=jnp.float32) + fcb_ref[...]


# ----------------------------------------------------------------- wrapper
def transformer_model2_forward(params, src, tgt, level, *, num_heads, lambda_decay):
    """Transformer_Model2.forward(src, tgt, level) in eval mode (dropout = identity).

    Note: the PyTorch forward also embeds `tgt`, but tgt_emb never reaches the
    output, so it is dead code and intentionally not computed here.
    """
    del tgt, num_heads
    B, S = src.shape
    L_levels, V_emb, D = params["emb_tables"].shape
    V_out = params["fc_w"].shape[1]
    BS = B * S

    pos_slice = params["pos_enc"][:S, :]                                   # (S, D)
    idx = jnp.arange(S, dtype=jnp.float32)
    decay = jnp.exp(-lambda_decay * jnp.abs(idx[None, :] - idx[:, None]))  # (S, S)
    eye_b = jnp.eye(B, dtype=jnp.float32)
    dscale = jnp.kron(eye_b, decay)                                        # (BS, BS)
    dbias = jnp.kron(1.0 - eye_b, jnp.full((S, S), NEG_INF, jnp.float32))  # (BS, BS)

    ids = src.reshape(BS, 1).astype(jnp.int32)

    lp = params["layers"]
    operands = (ids, params["emb_tables"], pos_slice,
                lp["wk"], lp["wv"], lp["wdown"],
                lp["wq_h"], lp["wupk_h"], lp["wupv_h"], lp["wo_h"],
                dscale, dbias, params["fc_w"], params["fc_b"].reshape(1, V_out))

    in_specs = [_full_spec(ids.shape),
                pl.BlockSpec((1, V_emb, D), lambda i, lvl: (lvl[0], 0, 0)),  # selected table only
                ] + [_full_spec(op.shape) for op in operands[2:]]

    grid_spec = pltpu.PrefetchScalarGridSpec(
        num_scalar_prefetch=1,                     # `level` lands in SMEM
        grid=(1,),                                 # single fat step: everything fits VMEM
        in_specs=in_specs,
        out_specs=pl.BlockSpec((BS, V_out), lambda i, lvl: (0, 0)),
    )
    out = pl.pallas_call(
        _fused_forward_kernel,
        out_shape=jax.ShapeDtypeStruct((BS, V_out), jnp.float32),
        grid_spec=grid_spec,
        compiler_params=pltpu.CompilerParams(dimension_semantics=("arbitrary",)),
    )(level, *operands)
    return out.reshape(B, S, V_out)


# ----------------------------------------------------------------- reference
def reference_forward(raw_params, src, level, *, num_heads, lambda_decay):
    emb_tables = raw_params["emb_tables"]
    L, V, D = emb_tables.shape
    B, S = src.shape
    hd = D // num_heads
    ids = jnp.clip(src, 0, V - 1)
    x = emb_tables[level[0]][ids] + raw_params["pos_enc"][:S][None, :, :]
    idx = jnp.arange(S, dtype=jnp.float32)
    decay = jnp.exp(-lambda_decay * jnp.abs(idx[None, :] - idx[:, None]))
    for lp in raw_params["layers"]:
        q = x @ lp["wq"]
        k = x @ lp["wk"]
        v = x @ lp["wv"]
        lat = (k + v) @ lp["wdown"]
        k_rec = lat @ lp["wup_k"]
        v_rec = lat @ lp["wup_v"]
        qh = q.reshape(B, S, num_heads, hd).transpose(0, 2, 1, 3)
        kh = k_rec.reshape(B, S, num_heads, hd).transpose(0, 2, 1, 3)
        vh = v_rec.reshape(B, S, num_heads, hd).transpose(0, 2, 1, 3)
        s = jnp.einsum("bhqd,bhkd->bhqk", qh, kh) / math.sqrt(D)
        s = s * decay[None, None]
        w = jax.nn.softmax(s, axis=-1)
        o = jnp.einsum("bhqk,bhkd->bhqd", w, vh)
        x = o.transpose(0, 2, 1, 3).reshape(B, S, D) @ lp["wo"]
    return x @ raw_params["fc_w"] + raw_params["fc_b"][None, None, :]


# ----------------------------------------------------------------- main
if __name__ == "__main__":
    batch, seq = 2, 8
    embedding_dim = 128            # lane-dense (multiple of 128)
    vocab_size = 128               # lane-dense fc_out output
    num_heads, num_layers = 4, 2
    hierarchy_levels = 3
    d_latent = embedding_dim // 2
    lambda_decay = 0.01
    max_len = 120                  # PositionalEncoding max_len = seq_len in the file

    keys = iter(jax.random.split(jax.random.PRNGKey(0), 64))

    def randn(shape, scale=1.0):
        return scale * jax.random.normal(next(keys), shape, dtype=jnp.float32)

    emb_tables = randn((hierarchy_levels, vocab_size, embedding_dim))   # nn.Embedding ~ N(0,1)
    pos_enc = _sincos_pos_encoding(max_len, embedding_dim)

    w_scale = 1.0 / math.sqrt(embedding_dim)
    l_scale = 1.0 / math.sqrt(d_latent)
    raw_layers = []
    for _ in range(num_layers):
        raw_layers.append({
            "wq": randn((embedding_dim, embedding_dim), w_scale),
            "wk": randn((embedding_dim, embedding_dim), w_scale),
            "wv": randn((embedding_dim, embedding_dim), w_scale),
            "wdown": randn((embedding_dim, d_latent), w_scale),
            "wup_k": randn((d_latent, embedding_dim), l_scale),
            "wup_v": randn((d_latent, embedding_dim), l_scale),
            "wo": randn((embedding_dim, embedding_dim), w_scale),
        })
    fc_w = randn((embedding_dim, vocab_size), w_scale)
    fc_b = randn((vocab_size,), w_scale)

    raw_params = {"emb_tables": emb_tables, "pos_enc": pos_enc,
                  "layers": raw_layers, "fc_w": fc_w, "fc_b": fc_b}
    kernel_params = {"emb_tables": emb_tables, "pos_enc": pos_enc,
                     "layers": _stack_layer_params(raw_layers, num_heads),
                     "fc_w": fc_w, "fc_b": fc_b}

    # Token ids (some intentionally out of range to exercise the clamp).
    src = jax.random.randint(next(keys), (batch, seq), 0, vocab_size + 16, dtype=jnp.int32)
    tgt = jax.random.randint(next(keys), (batch, seq), 0, vocab_size + 16, dtype=jnp.int32)
    level = jnp.array([1], dtype=jnp.int32)

    fwd = jax.jit(functools.partial(transformer_model2_forward,
                                    num_heads=num_heads, lambda_decay=lambda_decay))
    out = fwd(kernel_params, src, tgt, level)
    out = jax.block_until_ready(out)

    ref = reference_forward(raw_params, src, level,
                            num_heads=num_heads, lambda_decay=lambda_decay)
    assert out.shape == (batch, seq, vocab_size)
    assert bool(jnp.all(jnp.isfinite(out)))
    assert jnp.allclose(out, ref, atol=1e-1, rtol=1e-1), float(jnp.max(jnp.abs(out - ref)))

    print("KERNEL_OK")
</pallas_src>

<mosaic_0001>
module attributes {stable_mosaic.version = 11 : i64} {
  func.func @_fused_forward_kernel(%arg0: i32, %arg1: memref<1xi32, #tpu.memory_space<smem>>, %arg2: memref<16x1xi32, #tpu.memory_space<vmem>>, %arg3: memref<1x128x128xf32, #tpu.memory_space<vmem>>, %arg4: memref<8x128xf32, #tpu.memory_space<vmem>>, %arg5: memref<2x128x128xf32, #tpu.memory_space<vmem>>, %arg6: memref<2x128x128xf32, #tpu.memory_space<vmem>>, %arg7: memref<2x128x64xf32, #tpu.memory_space<vmem>>, %arg8: memref<2x4x128x32xf32, #tpu.memory_space<vmem>>, %arg9: memref<2x4x64x32xf32, #tpu.memory_space<vmem>>, %arg10: memref<2x4x64x32xf32, #tpu.memory_space<vmem>>, %arg11: memref<2x4x32x128xf32, #tpu.memory_space<vmem>>, %arg12: memref<16x16xf32, #tpu.memory_space<vmem>>, %arg13: memref<16x16xf32, #tpu.memory_space<vmem>>, %arg14: memref<128x128xf32, #tpu.memory_space<vmem>>, %arg15: memref<1x128xf32, #tpu.memory_space<vmem>>, %arg16: memref<16x128xf32, #tpu.memory_space<vmem>>) attributes {dimension_semantics = [#tpu.dimension_semantics<arbitrary>], iteration_bounds = array<i64: 1>, scalar_prefetch = 1 : i64, scratch_operands = 0 : i64, tpu.core_type = #tpu.core_type<tc>, window_params = [{pipeline_mode = #tpu.pipeline_mode<synchronous>, transform_indices = @transform_0, window_bounds = array<i64: 16, 1>}, {transform_indices = @transform_1, window_bounds = array<i64: 1, 128, 128>}, {pipeline_mode = #tpu.pipeline_mode<synchronous>, transform_indices = @transform_2, window_bounds = array<i64: 8, 128>}, {pipeline_mode = #tpu.pipeline_mode<synchronous>, transform_indices = @transform_3, window_bounds = array<i64: 2, 128, 128>}, {pipeline_mode = #tpu.pipeline_mode<synchronous>, transform_indices = @transform_4, window_bounds = array<i64: 2, 128, 128>}, {pipeline_mode = #tpu.pipeline_mode<synchronous>, transform_indices = @transform_5, window_bounds = array<i64: 2, 128, 64>}, {pipeline_mode = #tpu.pipeline_mode<synchronous>, transform_indices = @transform_6, window_bounds = array<i64: 2, 4, 128, 32>}, {pipeline_mode = #tpu.pipeline_mode<synchronous>, transform_indices = @transform_7, window_bounds = array<i64: 2, 4, 64, 32>}, {pipeline_mode = #tpu.pipeline_mode<synchronous>, transform_indices = @transform_8, window_bounds = array<i64: 2, 4, 64, 32>}, {pipeline_mode = #tpu.pipeline_mode<synchronous>, transform_indices = @transform_9, window_bounds = array<i64: 2, 4, 32, 128>}, {pipeline_mode = #tpu.pipeline_mode<synchronous>, transform_indices = @transform_10, window_bounds = array<i64: 16, 16>}, {pipeline_mode = #tpu.pipeline_mode<synchronous>, transform_indices = @transform_11, window_bounds = array<i64: 16, 16>}, {pipeline_mode = #tpu.pipeline_mode<synchronous>, transform_indices = @transform_12, window_bounds = array<i64: 128, 128>}, {pipeline_mode = #tpu.pipeline_mode<synchronous>, transform_indices = @transform_13, window_bounds = array<i64: 1, 128>}, {pipeline_mode = #tpu.pipeline_mode<synchronous>, transform_indices = @transform_14, window_bounds = array<i64: 16, 128>}]} {
    %c0 = arith.constant 0 : index
    %c0_0 = arith.constant 0 : index
    %0 = vector.load %arg2[%c0, %c0_0] : memref<16x1xi32, #tpu.memory_space<vmem>>, vector<16x1xi32>
    %c0_i32 = arith.constant 0 : i32
    %c127_i32 = arith.constant 127 : i32
    %1 = vector.broadcast %c0_i32 : i32 to vector<16x1xi32>
    %2 = arith.maxsi %1, %0 : vector<16x1xi32>
    %3 = vector.broadcast %c127_i32 : i32 to vector<16x1xi32>
    %4 = arith.minsi %3, %2 : vector<16x1xi32>
    %5 = tpu.iota {dimensions = array<i32: 1>} : vector<16x128xi32>
    %6 = vector.broadcast %4 : vector<16x1xi32> to vector<16x128xi32>
    %7 = arith.cmpi eq, %6, %5 : vector<16x128xi32>
    %8 = arith.extui %7 : vector<16x128xi1> to vector<16x128xi32>
    %9 = arith.sitofp %8 : vector<16x128xi32> to vector<16x128xf32>
    %c0_1 = arith.constant 0 : index
    %c0_2 = arith.constant 0 : index
    %c0_3 = arith.constant 0 : index
    %10 = vector.load %arg3[%c0_1, %c0_2, %c0_3] : memref<1x128x128xf32, #tpu.memory_space<vmem>>, vector<1x128x128xf32>
    %11 = vector.shape_cast %10 : vector<1x128x128xf32> to vector<128x128xf32>
    %cst = arith.constant dense<0.000000e+00> : vector<16x128xf32>
    %12 = tpu.matmul %9, %11, %cst {dimension_numbers = #tpu.dot_dimension_numbers<[1], [0], [0], [1], [0, 0, 1, 1], [], []>} : vector<16x128xf32>, vector<128x128xf32>, vector<16x128xf32> -> vector<16x128xf32>
    %c0_4 = arith.constant 0 : index
    %c0_5 = arith.constant 0 : index
    %13 = vector.load %arg4[%c0_4, %c0_5] : memref<8x128xf32, #tpu.memory_space<vmem>>, vector<8x128xf32>
    %14 = tpu.concatenate %13, %13 in 0 : vector<8x128xf32>, vector<8x128xf32> -> vector<16x128xf32>
    %15 = arith.addf %12, %14 : vector<16x128xf32>
    %c0_6 = arith.constant 0 : index
    %c0_7 = arith.constant 0 : index
    %16 = vector.load %arg12[%c0_6, %c0_7] : memref<16x16xf32, #tpu.memory_space<vmem>>, vector<16x16xf32>
    %c0_8 = arith.constant 0 : index
    %c0_9 = arith.constant 0 : index
    %17 = vector.load %arg13[%c0_8, %c0_9] : memref<16x16xf32, #tpu.memory_space<vmem>>, vector<16x16xf32>
    %c0_10 = arith.constant 0 : index
    %c0_11 = arith.constant 0 : index
    %c0_12 = arith.constant 0 : index
    %18 = vector.load %arg5[%c0_10, %c0_11, %c0_12] : memref<2x128x128xf32, #tpu.memory_space<vmem>>, vector<1x128x128xf32>
    %19 = vector.shape_cast %18 : vector<1x128x128xf32> to vector<128x128xf32>
    %cst_13 = arith.constant dense<0.000000e+00> : vector<16x128xf32>
    %20 = tpu.matmul %15, %19, %cst_13 {dimension_numbers = #tpu.dot_dimension_numbers<[1], [0], [0], [1], [0, 0, 1, 1], [], []>} : vector<16x128xf32>, vector<128x128xf32>, vector<16x128xf32> -> vector<16x128xf32>
    %c0_14 = arith.constant 0 : index
    %c0_15 = arith.constant 0 : index
    %c0_16 = arith.constant 0 : index
    %21 = vector.load %arg6[%c0_14, %c0_15, %c0_16] : memref<2x128x128xf32, #tpu.memory_space<vmem>>, vector<1x128x128xf32>
    %22 = vector.shape_cast %21 : vector<1x128x128xf32> to vector<128x128xf32>
    %cst_17 = arith.constant dense<0.000000e+00> : vector<16x128xf32>
    %23 = tpu.matmul %15, %22, %cst_17 {dimension_numbers = #tpu.dot_dimension_numbers<[1], [0], [0], [1], [0, 0, 1, 1], [], []>} : vector<16x128xf32>, vector<128x128xf32>, vector<16x128xf32> -> vector<16x128xf32>
    %24 = arith.addf %20, %23 : vector<16x128xf32>
    %c0_18 = arith.constant 0 : index
    %c0_19 = arith.constant 0 : index
    %c0_20 = arith.constant 0 : index
    %25 = vector.load %arg7[%c0_18, %c0_19, %c0_20] : memref<2x128x64xf32, #tpu.memory_space<vmem>>, vector<1x128x64xf32>
    %26 = vector.shape_cast %25 : vector<1x128x64xf32> to vector<128x64xf32>
    %cst_21 = arith.constant dense<0.000000e+00> : vector<16x64xf32>
    %27 = tpu.matmul %24, %26, %cst_21 {dimension_numbers = #tpu.dot_dimension_numbers<[1], [0], [0], [1], [0, 0, 1, 1], [], []>} : vector<16x128xf32>, vector<128x64xf32>, vector<16x64xf32> -> vector<16x64xf32>
    %cst_22 = arith.constant 0.000000e+00 : f32
    %28 = vector.broadcast %cst_22 : f32 to vector<16x128xf32>
    %c0_23 = arith.constant 0 : index
    %c0_24 = arith.constant 0 : index
    %c0_25 = arith.constant 0 : index
    %c0_26 = arith.constant 0 : index
    %29 = vector.load %arg8[%c0_23, %c0_24, %c0_25, %c0_26] : memref<2x4x128x32xf32, #tpu.memory_space<vmem>>, vector<1x1x128x32xf32>
    %30 = vector.shape_cast %29 : vector<1x1x128x32xf32> to vector<128x32xf32>
    %cst_27 = arith.constant dense<0.000000e+00> : vector<16x32xf32>
    %31 = tpu.matmul %15, %30, %cst_27 {dimension_numbers = #tpu.dot_dimension_numbers<[1], [0], [0], [1], [0, 0, 1, 1], [], []>} : vector<16x128xf32>, vector<128x32xf32>, vector<16x32xf32> -> vector<16x32xf32>
    %c0_28 = arith.constant 0 : index
    %c0_29 = arith.constant 0 : index
    %c0_30 = arith.constant 0 : index
    %c0_31 = arith.constant 0 : index
    %32 = vector.load %arg9[%c0_28, %c0_29, %c0_30, %c0_31] : memref<2x4x64x32xf32, #tpu.memory_space<vmem>>, vector<1x1x64x32xf32>
    %33 = vector.shape_cast %32 : vector<1x1x64x32xf32> to vector<64x32xf32>
    %cst_32 = arith.constant dense<0.000000e+00> : vector<16x32xf32>
    %34 = tpu.matmul %27, %33, %cst_32 {dimension_numbers = #tpu.dot_dimension_numbers<[1], [0], [0], [1], [0, 0, 1, 1], [], []>} : vector<16x64xf32>, vector<64x32xf32>, vector<16x32xf32> -> vector<16x32xf32>
    %c0_33 = arith.constant 0 : index
    %c0_34 = arith.constant 0 : index
    %c0_35 = arith.constant 0 : index
    %c0_36 = arith.constant 0 : index
    %35 = vector.load %arg10[%c0_33, %c0_34, %c0_35, %c0_36] : memref<2x4x64x32xf32, #tpu.memory_space<vmem>>, vector<1x1x64x32xf32>
    %36 = vector.shape_cast %35 : vector<1x1x64x32xf32> to vector<64x32xf32>
    %cst_37 = arith.constant dense<0.000000e+00> : vector<16x32xf32>
    %37 = tpu.matmul %27, %36, %cst_37 {dimension_numbers = #tpu.dot_dimension_numbers<[1], [0], [0], [1], [0, 0, 1, 1], [], []>} : vector<16x64xf32>, vector<64x32xf32>, vector<16x32xf32> -> vector<16x32xf32>
    %cst_38 = arith.constant dense<0.000000e+00> : vector<16x16xf32>
    %38 = tpu.matmul %31, %34, %cst_38 {dimension_numbers = #tpu.dot_dimension_numbers<[1], [1], [0], [0], [0, 0, 1, 0], [], []>} : vector<16x32xf32>, vector<16x32xf32>, vector<16x16xf32> -> vector<16x16xf32>
    %cst_39 = arith.constant 0.0883883461 : f32
    %39 = vector.broadcast %cst_39 : f32 to vector<16x16xf32>
    %40 = arith.mulf %38, %39 : vector<16x16xf32>
    %41 = arith.mulf %40, %16 : vector<16x16xf32>
    %42 = arith.addf %41, %17 : vector<16x16xf32>
    %cst_40 = arith.constant dense<0xFF800000> : vector<16xf32>
    %43 = vector.multi_reduction <maximumf>, %42, %cst_40 [1] : vector<16x16xf32> to vector<16xf32>
    %44 = vector.shape_cast %43 : vector<16xf32> to vector<16x1xf32>
    %45 = vector.broadcast %44 : vector<16x1xf32> to vector<16x16xf32>
    %46 = arith.subf %42, %45 : vector<16x16xf32>
    %47 = math.exp %46 : vector<16x16xf32>
    %cst_41 = arith.constant dense<0.000000e+00> : vector<16xf32>
    %48 = vector.multi_reduction <add>, %47, %cst_41 [1] : vector<16x16xf32> to vector<16xf32>
    %49 = vector.shape_cast %48 : vector<16xf32> to vector<16x1xf32>
    %50 = vector.broadcast %49 : vector<16x1xf32> to vector<16x16xf32>
    %51 = arith.divf %47, %50 : vector<16x16xf32>
    %cst_42 = arith.constant dense<0.000000e+00> : vector<16x32xf32>
    %52 = tpu.matmul %51, %37, %cst_42 {dimension_numbers = #tpu.dot_dimension_numbers<[1], [0], [0], [1], [0, 0, 1, 1], [], []>} : vector<16x16xf32>, vector<16x32xf32>, vector<16x32xf32> -> vector<16x32xf32>
    %c0_43 = arith.constant 0 : index
    %c0_44 = arith.constant 0 : index
    %c0_45 = arith.constant 0 : index
    %c0_46 = arith.constant 0 : index
    %53 = vector.load %arg11[%c0_43, %c0_44, %c0_45, %c0_46] : memref<2x4x32x128xf32, #tpu.memory_space<vmem>>, vector<1x1x32x128xf32>
    %54 = vector.shape_cast %53 : vector<1x1x32x128xf32> to vector<32x128xf32>
    %cst_47 = arith.constant dense<0.000000e+00> : vector<16x128xf32>
    %55 = tpu.matmul %52, %54, %cst_47 {dimension_numbers = #tpu.dot_dimension_numbers<[1], [0], [0], [1], [0, 0, 1, 1], [], []>} : vector<16x32xf32>, vector<32x128xf32>, vector<16x128xf32> -> vector<16x128xf32>
    %56 = arith.addf %28, %55 : vector<16x128xf32>
    %c0_48 = arith.constant 0 : index
    %c1 = arith.constant 1 : index
    %c0_49 = arith.constant 0 : index
    %c0_50 = arith.constant 0 : index
    %57 = vector.load %arg8[%c0_48, %c1, %c0_49, %c0_50] : memref<2x4x128x32xf32, #tpu.memory_space<vmem>>, vector<1x1x128x32xf32>
    %58 = vector.shape_cast %57 : vector<1x1x128x32xf32> to vector<128x32xf32>
    %cst_51 = arith.constant dense<0.000000e+00> : vector<16x32xf32>
    %59 = tpu.matmul %15, %58, %cst_51 {dimension_numbers = #tpu.dot_dimension_numbers<[1], [0], [0], [1], [0, 0, 1, 1], [], []>} : vector<16x128xf32>, vector<128x32xf32>, vector<16x32xf32> -> vector<16x32xf32>
    %c0_52 = arith.constant 0 : index
    %c1_53 = arith.constant 1 : index
    %c0_54 = arith.constant 0 : index
    %c0_55 = arith.constant 0 : index
    %60 = vector.load %arg9[%c0_52, %c1_53, %c0_54, %c0_55] : memref<2x4x64x32xf32, #tpu.memory_space<vmem>>, vector<1x1x64x32xf32>
    %61 = vector.shape_cast %60 : vector<1x1x64x32xf32> to vector<64x32xf32>
    %cst_56 = arith.constant dense<0.000000e+00> : vector<16x32xf32>
    %62 = tpu.matmul %27, %61, %cst_56 {dimension_numbers = #tpu.dot_dimension_numbers<[1], [0], [0], [1], [0, 0, 1, 1], [], []>} : vector<16x64xf32>, vector<64x32xf32>, vector<16x32xf32> -> vector<16x32xf32>
    %c0_57 = arith.constant 0 : index
    %c1_58 = arith.constant 1 : index
    %c0_59 = arith.constant 0 : index
    %c0_60 = arith.constant 0 : index
    %63 = vector.load %arg10[%c0_57, %c1_58, %c0_59, %c0_60] : memref<2x4x64x32xf32, #tpu.memory_space<vmem>>, vector<1x1x64x32xf32>
    %64 = vector.shape_cast %63 : vector<1x1x64x32xf32> to vector<64x32xf32>
    %cst_61 = arith.constant dense<0.000000e+00> : vector<16x32xf32>
    %65 = tpu.matmul %27, %64, %cst_61 {dimension_numbers = #tpu.dot_dimension_numbers<[1], [0], [0], [1], [0, 0, 1, 1], [], []>} : vector<16x64xf32>, vector<64x32xf32>, vector<16x32xf32> -> vector<16x32xf32>
    %cst_62 = arith.constant dense<0.000000e+00> : vector<16x16xf32>
    %66 = tpu.matmul %59, %62, %cst_62 {dimension_numbers = #tpu.dot_dimension_numbers<[1], [1], [0], [0], [0, 0, 1, 0], [], []>} : vector<16x32xf32>, vector<16x32xf32>, vector<16x16xf32> -> vector<16x16xf32>
    %cst_63 = arith.constant 0.0883883461 : f32
    %67 = vector.broadcast %cst_63 : f32 to vector<16x16xf32>
    %68 = arith.mulf %66, %67 : vector<16x16xf32>
    %69 = arith.mulf %68, %16 : vector<16x16xf32>
    %70 = arith.addf %69, %17 : vector<16x16xf32>
    %cst_64 = arith.constant dense<0xFF800000> : vector<16xf32>
    %71 = vector.multi_reduction <maximumf>, %70, %cst_64 [1] : vector<16x16xf32> to vector<16xf32>
    %72 = vector.shape_cast %71 : vector<16xf32> to vector<16x1xf32>
    %73 = vector.broadcast %72 : vector<16x1xf32> to vector<16x16xf32>
    %74 = arith.subf %70, %73 : vector<16x16xf32>
    %75 = math.exp %74 : vector<16x16xf32>
    %cst_65 = arith.constant dense<0.000000e+00> : vector<16xf32>
    %76 = vector.multi_reduction <add>, %75, %cst_65 [1] : vector<16x16xf32> to vector<16xf32>
    %77 = vector.shape_cast %76 : vector<16xf32> to vector<16x1xf32>
    %78 = vector.broadcast %77 : vector<16x1xf32> to vector<16x16xf32>
    %79 = arith.divf %75, %78 : vector<16x16xf32>
    %cst_66 = arith.constant dense<0.000000e+00> : vector<16x32xf32>
    %80 = tpu.matmul %79, %65, %cst_66 {dimension_numbers = #tpu.dot_dimension_numbers<[1], [0], [0], [1], [0, 0, 1, 1], [], []>} : vector<16x16xf32>, vector<16x32xf32>, vector<16x32xf32> -> vector<16x32xf32>
    %c0_67 = arith.constant 0 : index
    %c1_68 = arith.constant 1 : index
    %c0_69 = arith.constant 0 : index
    %c0_70 = arith.constant 0 : index
    %81 = vector.load %arg11[%c0_67, %c1_68, %c0_69, %c0_70] : memref<2x4x32x128xf32, #tpu.memory_space<vmem>>, vector<1x1x32x128xf32>
    %82 = vector.shape_cast %81 : vector<1x1x32x128xf32> to vector<32x128xf32>
    %cst_71 = arith.constant dense<0.000000e+00> : vector<16x128xf32>
    %83 = tpu.matmul %80, %82, %cst_71 {dimension_numbers = #tpu.dot_dimension_numbers<[1], [0], [0], [1], [0, 0, 1, 1], [], []>} : vector<16x32xf32>, vector<32x128xf32>, vector<16x128xf32> -> vector<16x128xf32>
    %84 = arith.addf %56, %83 : vector<16x128xf32>
    %c0_72 = arith.constant 0 : index
    %c2 = arith.constant 2 : index
    %c0_73 = arith.constant 0 : index
    %c0_74 = arith.constant 0 : index
    %85 = vector.load %arg8[%c0_72, %c2, %c0_73, %c0_74] : memref<2x4x128x32xf32, #tpu.memory_space<vmem>>, vector<1x1x128x32xf32>
    %86 = vector.shape_cast %85 : vector<1x1x128x32xf32> to vector<128x32xf32>
    %cst_75 = arith.constant dense<0.000000e+00> : vector<16x32xf32>
    %87 = tpu.matmul %15, %86, %cst_75 {dimension_numbers = #tpu.dot_dimension_numbers<[1], [0], [0], [1], [0, 0, 1, 1], [], []>} : vector<16x128xf32>, vector<128x32xf32>, vector<16x32xf32> -> vector<16x32xf32>
    %c0_76 = arith.constant 0 : index
    %c2_77 = arith.constant 2 : index
    %c0_78 = arith.constant 0 : index
    %c0_79 = arith.constant 0 : index
    %88 = vector.load %arg9[%c0_76, %c2_77, %c0_78, %c0_79] : memref<2x4x64x32xf32, #tpu.memory_space<vmem>>, vector<1x1x64x32xf32>
    %89 = vector.shape_cast %88 : vector<1x1x64x32xf32> to vector<64x32xf32>
    %cst_80 = arith.constant dense<0.000000e+00> : vector<16x32xf32>
    %90 = tpu.matmul %27, %89, %cst_80 {dimension_numbers = #tpu.dot_dimension_numbers<[1], [0], [0], [1], [0, 0, 1, 1], [], []>} : vector<16x64xf32>, vector<64x32xf32>, vector<16x32xf32> -> vector<16x32xf32>
    %c0_81 = arith.constant 0 : index
    %c2_82 = arith.constant 2 : index
    %c0_83 = arith.constant 0 : index
    %c0_84 = arith.constant 0 : index
    %91 = vector.load %arg10[%c0_81, %c2_82, %c0_83, %c0_84] : memref<2x4x64x32xf32, #tpu.memory_space<vmem>>, vector<1x1x64x32xf32>
    %92 = vector.shape_cast %91 : vector<1x1x64x32xf32> to vector<64x32xf32>
    %cst_85 = arith.constant dense<0.000000e+00> : vector<16x32xf32>
    %93 = tpu.matmul %27, %92, %cst_85 {dimension_numbers = #tpu.dot_dimension_numbers<[1], [0], [0], [1], [0, 0, 1, 1], [], []>} : vector<16x64xf32>, vector<64x32xf32>, vector<16x32xf32> -> vector<16x32xf32>
    %cst_86 = arith.constant dense<0.000000e+00> : vector<16x16xf32>
    %94 = tpu.matmul %87, %90, %cst_86 {dimension_numbers = #tpu.dot_dimension_numbers<[1], [1], [0], [0], [0, 0, 1, 0], [], []>} : vector<16x32xf32>, vector<16x32xf32>, vector<16x16xf32> -> vector<16x16xf32>
    %cst_87 = arith.constant 0.0883883461 : f32
    %95 = vector.broadcast %cst_87 : f32 to vector<16x16xf32>
    %96 = arith.mulf %94, %95 : vector<16x16xf32>
    %97 = arith.mulf %96, %16 : vector<16x16xf32>
    %98 = arith.addf %97, %17 : vector<16x16xf32>
    %cst_88 = arith.constant dense<0xFF800000> : vector<16xf32>
    %99 = vector.multi_reduction <maximumf>, %98, %cst_88 [1] : vector<16x16xf32> to vector<16xf32>
    %100 = vector.shape_cast %99 : vector<16xf32> to vector<16x1xf32>
    %101 = vector.broadcast %100 : vector<16x1xf32> to vector<16x16xf32>
    %102 = arith.subf %98, %101 : vector<16x16xf32>
    %103 = math.exp %102 : vector<16x16xf32>
    %cst_89 = arith.constant dense<0.000000e+00> : vector<16xf32>
    %104 = vector.multi_reduction <add>, %103, %cst_89 [1] : vector<16x16xf32> to vector<16xf32>
    %105 = vector.shape_cast %104 : vector<16xf32> to vector<16x1xf32>
    %106 = vector.broadcast %105 : vector<16x1xf32> to vector<16x16xf32>
    %107 = arith.divf %103, %106 : vector<16x16xf32>
    %cst_90 = arith.constant dense<0.000000e+00> : vector<16x32xf32>
    %108 = tpu.matmul %107, %93, %cst_90 {dimension_numbers = #tpu.dot_dimension_numbers<[1], [0], [0], [1], [0, 0, 1, 1], [], []>} : vector<16x16xf32>, vector<16x32xf32>, vector<16x32xf32> -> vector<16x32xf32>
    %c0_91 = arith.constant 0 : index
    %c2_92 = arith.constant 2 : index
    %c0_93 = arith.constant 0 : index
    %c0_94 = arith.constant 0 : index
    %109 = vector.load %arg11[%c0_91, %c2_92, %c0_93, %c0_94] : memref<2x4x32x128xf32, #tpu.memory_space<vmem>>, vector<1x1x32x128xf32>
    %110 = vector.shape_cast %109 : vector<1x1x32x128xf32> to vector<32x128xf32>
    %cst_95 = arith.constant dense<0.000000e+00> : vector<16x128xf32>
    %111 = tpu.matmul %108, %110, %cst_95 {dimension_numbers = #tpu.dot_dimension_numbers<[1], [0], [0], [1], [0, 0, 1, 1], [], []>} : vector<16x32xf32>, vector<32x128xf32>, vector<16x128xf32> -> vector<16x128xf32>
    %112 = arith.addf %84, %111 : vector<16x128xf32>
    %c0_96 = arith.constant 0 : index
    %c3 = arith.constant 3 : index
    %c0_97 = arith.constant 0 : index
    %c0_98 = arith.constant 0 : index
    %113 = vector.load %arg8[%c0_96, %c3, %c0_97, %c0_98] : memref<2x4x128x32xf32, #tpu.memory_space<vmem>>, vector<1x1x128x32xf32>
    %114 = vector.shape_cast %113 : vector<1x1x128x32xf32> to vector<128x32xf32>
    %cst_99 = arith.constant dense<0.000000e+00> : vector<16x32xf32>
    %115 = tpu.matmul %15, %114, %cst_99 {dimension_numbers = #tpu.dot_dimension_numbers<[1], [0], [0], [1], [0, 0, 1, 1], [], []>} : vector<16x128xf32>, vector<128x32xf32>, vector<16x32xf32> -> vector<16x32xf32>
    %c0_100 = arith.constant 0 : index
    %c3_101 = arith.constant 3 : index
    %c0_102 = arith.constant 0 : index
    %c0_103 = arith.constant 0 : index
    %116 = vector.load %arg9[%c0_100, %c3_101, %c0_102, %c0_103] : memref<2x4x64x32xf32, #tpu.memory_space<vmem>>, vector<1x1x64x32xf32>
    %117 = vector.shape_cast %116 : vector<1x1x64x32xf32> to vector<64x32xf32>
    %cst_104 = arith.constant dense<0.000000e+00> : vector<16x32xf32>
    %118 = tpu.matmul %27, %117, %cst_104 {dimension_numbers = #tpu.dot_dimension_numbers<[1], [0], [0], [1], [0, 0, 1, 1], [], []>} : vector<16x64xf32>, vector<64x32xf32>, vector<16x32xf32> -> vector<16x32xf32>
    %c0_105 = arith.constant 0 : index
    %c3_106 = arith.constant 3 : index
    %c0_107 = arith.constant 0 : index
    %c0_108 = arith.constant 0 : index
    %119 = vector.load %arg10[%c0_105, %c3_106, %c0_107, %c0_108] : memref<2x4x64x32xf32, #tpu.memory_space<vmem>>, vector<1x1x64x32xf32>
    %120 = vector.shape_cast %119 : vector<1x1x64x32xf32> to vector<64x32xf32>
    %cst_109 = arith.constant dense<0.000000e+00> : vector<16x32xf32>
    %121 = tpu.matmul %27, %120, %cst_109 {dimension_numbers = #tpu.dot_dimension_numbers<[1], [0], [0], [1], [0, 0, 1, 1], [], []>} : vector<16x64xf32>, vector<64x32xf32>, vector<16x32xf32> -> vector<16x32xf32>
    %cst_110 = arith.constant dense<0.000000e+00> : vector<16x16xf32>
    %122 = tpu.matmul %115, %118, %cst_110 {dimension_numbers = #tpu.dot_dimension_numbers<[1], [1], [0], [0], [0, 0, 1, 0], [], []>} : vector<16x32xf32>, vector<16x32xf32>, vector<16x16xf32> -> vector<16x16xf32>
    %cst_111 = arith.constant 0.0883883461 : f32
    %123 = vector.broadcast %cst_111 : f32 to vector<16x16xf32>
    %124 = arith.mulf %122, %123 : vector<16x16xf32>
    %125 = arith.mulf %124, %16 : vector<16x16xf32>
    %126 = arith.addf %125, %17 : vector<16x16xf32>
    %cst_112 = arith.constant dense<0xFF800000> : vector<16xf32>
    %127 = vector.multi_reduction <maximumf>, %126, %cst_112 [1] : vector<16x16xf32> to vector<16xf32>
    %128 = vector.shape_cast %127 : vector<16xf32> to vector<16x1xf32>
    %129 = vector.broadcast %128 : vector<16x1xf32> to vector<16x16xf32>
    %130 = arith.subf %126, %129 : vector<16x16xf32>
    %131 = math.exp %130 : vector<16x16xf32>
    %cst_113 = arith.constant dense<0.000000e+00> : vector<16xf32>
    %132 = vector.multi_reduction <add>, %131, %cst_113 [1] : vector<16x16xf32> to vector<16xf32>
    %133 = vector.shape_cast %132 : vector<16xf32> to vector<16x1xf32>
    %134 = vector.broadcast %133 : vector<16x1xf32> to vector<16x16xf32>
    %135 = arith.divf %131, %134 : vector<16x16xf32>
    %cst_114 = arith.constant dense<0.000000e+00> : vector<16x32xf32>
    %136 = tpu.matmul %135, %121, %cst_114 {dimension_numbers = #tpu.dot_dimension_numbers<[1], [0], [0], [1], [0, 0, 1, 1], [], []>} : vector<16x16xf32>, vector<16x32xf32>, vector<16x32xf32> -> vector<16x32xf32>
    %c0_115 = arith.constant 0 : index
    %c3_116 = arith.constant 3 : index
    %c0_117 = arith.constant 0 : index
    %c0_118 = arith.constant 0 : index
    %137 = vector.load %arg11[%c0_115, %c3_116, %c0_117, %c0_118] : memref<2x4x32x128xf32, #tpu.memory_space<vmem>>, vector<1x1x32x128xf32>
    %138 = vector.shape_cast %137 : vector<1x1x32x128xf32> to vector<32x128xf32>
    %cst_119 = arith.constant dense<0.000000e+00> : vector<16x128xf32>
    %139 = tpu.matmul %136, %138, %cst_119 {dimension_numbers = #tpu.dot_dimension_numbers<[1], [0], [0], [1], [0, 0, 1, 1], [], []>} : vector<16x32xf32>, vector<32x128xf32>, vector<16x128xf32> -> vector<16x128xf32>
    %140 = arith.addf %112, %139 : vector<16x128xf32>
    %c1_120 = arith.constant 1 : index
    %c0_121 = arith.constant 0 : index
    %c0_122 = arith.constant 0 : index
    %141 = vector.load %arg5[%c1_120, %c0_121, %c0_122] : memref<2x128x128xf32, #tpu.memory_space<vmem>>, vector<1x128x128xf32>
    %142 = vector.shape_cast %141 : vector<1x128x128xf32> to vector<128x128xf32>
    %cst_123 = arith.constant dense<0.000000e+00> : vector<16x128xf32>
    %143 = tpu.matmul %140, %142, %cst_123 {dimension_numbers = #tpu.dot_dimension_numbers<[1], [0], [0], [1], [0, 0, 1, 1], [], []>} : vector<16x128xf32>, vector<128x128xf32>, vector<16x128xf32> -> vector<16x128xf32>
    %c1_124 = arith.constant 1 : index
    %c0_125 = arith.constant 0 : index
    %c0_126 = arith.constant 0 : index
    %144 = vector.load %arg6[%c1_124, %c0_125, %c0_126] : memref<2x128x128xf32, #tpu.memory_space<vmem>>, vector<1x128x128xf32>
    %145 = vector.shape_cast %144 : vector<1x128x128xf32> to vector<128x128xf32>
    %cst_127 = arith.constant dense<0.000000e+00> : vector<16x128xf32>
    %146 = tpu.matmul %140, %145, %cst_127 {dimension_numbers = #tpu.dot_dimension_numbers<[1], [0], [0], [1], [0, 0, 1, 1], [], []>} : vector<16x128xf32>, vector<128x128xf32>, vector<16x128xf32> -> vector<16x128xf32>
    %147 = arith.addf %143, %146 : vector<16x128xf32>
    %c1_128 = arith.constant 1 : index
    %c0_129 = arith.constant 0 : index
    %c0_130 = arith.constant 0 : index
    %148 = vector.load %arg7[%c1_128, %c0_129, %c0_130] : memref<2x128x64xf32, #tpu.memory_space<vmem>>, vector<1x128x64xf32>
    %149 = vector.shape_cast %148 : vector<1x128x64xf32> to vector<128x64xf32>
    %cst_131 = arith.constant dense<0.000000e+00> : vector<16x64xf32>
    %150 = tpu.matmul %147, %149, %cst_131 {dimension_numbers = #tpu.dot_dimension_numbers<[1], [0], [0], [1], [0, 0, 1, 1], [], []>} : vector<16x128xf32>, vector<128x64xf32>, vector<16x64xf32> -> vector<16x64xf32>
    %cst_132 = arith.constant 0.000000e+00 : f32
    %151 = vector.broadcast %cst_132 : f32 to vector<16x128xf32>
    %c1_133 = arith.constant 1 : index
    %c0_134 = arith.constant 0 : index
    %c0_135 = arith.constant 0 : index
    %c0_136 = arith.constant 0 : index
    %152 = vector.load %arg8[%c1_133, %c0_134, %c0_135, %c0_136] : memref<2x4x128x32xf32, #tpu.memory_space<vmem>>, vector<1x1x128x32xf32>
    %153 = vector.shape_cast %152 : vector<1x1x128x32xf32> to vector<128x32xf32>
    %cst_137 = arith.constant dense<0.000000e+00> : vector<16x32xf32>
    %154 = tpu.matmul %140, %153, %cst_137 {dimension_numbers = #tpu.dot_dimension_numbers<[1], [0], [0], [1], [0, 0, 1, 1], [], []>} : vector<16x128xf32>, vector<128x32xf32>, vector<16x32xf32> -> vector<16x32xf32>
    %c1_138 = arith.constant 1 : index
    %c0_139 = arith.constant 0 : index
    %c0_140 = arith.constant 0 : index
    %c0_141 = arith.constant 0 : index
    %155 = vector.load %arg9[%c1_138, %c0_139, %c0_140, %c0_141] : memref<2x4x64x32xf32, #tpu.memory_space<vmem>>, vector<1x1x64x32xf32>
    %156 = vector.shape_cast %155 : vector<1x1x64x32xf32> to vector<64x32xf32>
    %cst_142 = arith.constant dense<0.000000e+00> : vector<16x32xf32>
    %157 = tpu.matmul %150, %156, %cst_142 {dimension_numbers = #tpu.dot_dimension_numbers<[1], [0], [0], [1], [0, 0, 1, 1], [], []>} : vector<16x64xf32>, vector<64x32xf32>, vector<16x32xf32> -> vector<16x32xf32>
    %c1_143 = arith.constant 1 : index
    %c0_144 = arith.constant 0 : index
    %c0_145 = arith.constant 0 : index
    %c0_146 = arith.constant 0 : index
    %158 = vector.load %arg10[%c1_143, %c0_144, %c0_145, %c0_146] : memref<2x4x64x32xf32, #tpu.memory_space<vmem>>, vector<1x1x64x32xf32>
    %159 = vector.shape_cast %158 : vector<1x1x64x32xf32> to vector<64x32xf32>
    %cst_147 = arith.constant dense<0.000000e+00> : vector<16x32xf32>
    %160 = tpu.matmul %150, %159, %cst_147 {dimension_numbers = #tpu.dot_dimension_numbers<[1], [0], [0], [1], [0, 0, 1, 1], [], []>} : vector<16x64xf32>, vector<64x32xf32>, vector<16x32xf32> -> vector<16x32xf32>
    %cst_148 = arith.constant dense<0.000000e+00> : vector<16x16xf32>
    %161 = tpu.matmul %154, %157, %cst_148 {dimension_numbers = #tpu.dot_dimension_numbers<[1], [1], [0], [0], [0, 0, 1, 0], [], []>} : vector<16x32xf32>, vector<16x32xf32>, vector<16x16xf32> -> vector<16x16xf32>
    %cst_149 = arith.constant 0.0883883461 : f32
    %162 = vector.broadcast %cst_149 : f32 to vector<16x16xf32>
    %163 = arith.mulf %161, %162 : vector<16x16xf32>
    %164 = arith.mulf %163, %16 : vector<16x16xf32>
    %165 = arith.addf %164, %17 : vector<16x16xf32>
    %cst_150 = arith.constant dense<0xFF800000> : vector<16xf32>
    %166 = vector.multi_reduction <maximumf>, %165, %cst_150 [1] : vector<16x16xf32> to vector<16xf32>
    %167 = vector.shape_cast %166 : vector<16xf32> to vector<16x1xf32>
    %168 = vector.broadcast %167 : vector<16x1xf32> to vector<16x16xf32>
    %169 = arith.subf %165, %168 : vector<16x16xf32>
    %170 = math.exp %169 : vector<16x16xf32>
    %cst_151 = arith.constant dense<0.000000e+00> : vector<16xf32>
    %171 = vector.multi_reduction <add>, %170, %cst_151 [1] : vector<16x16xf32> to vector<16xf32>
    %172 = vector.shape_cast %171 : vector<16xf32> to vector<16x1xf32>
    %173 = vector.broadcast %172 : vector<16x1xf32> to vector<16x16xf32>
    %174 = arith.divf %170, %173 : vector<16x16xf32>
    %cst_152 = arith.constant dense<0.000000e+00> : vector<16x32xf32>
    %175 = tpu.matmul %174, %160, %cst_152 {dimension_numbers = #tpu.dot_dimension_numbers<[1], [0], [0], [1], [0, 0, 1, 1], [], []>} : vector<16x16xf32>, vector<16x32xf32>, vector<16x32xf32> -> vector<16x32xf32>
    %c1_153 = arith.constant 1 : index
    %c0_154 = arith.constant 0 : index
    %c0_155 = arith.constant 0 : index
    %c0_156 = arith.constant 0 : index
    %176 = vector.load %arg11[%c1_153, %c0_154, %c0_155, %c0_156] : memref<2x4x32x128xf32, #tpu.memory_space<vmem>>, vector<1x1x32x128xf32>
    %177 = vector.shape_cast %176 : vector<1x1x32x128xf32> to vector<32x128xf32>
    %cst_157 = arith.constant dense<0.000000e+00> : vector<16x128xf32>
    %178 = tpu.matmul %175, %177, %cst_157 {dimension_numbers = #tpu.dot_dimension_numbers<[1], [0], [0], [1], [0, 0, 1, 1], [], []>} : vector<16x32xf32>, vector<32x128xf32>, vector<16x128xf32> -> vector<16x128xf32>
    %179 = arith.addf %151, %178 : vector<16x128xf32>
    %c1_158 = arith.constant 1 : index
    %c1_159 = arith.constant 1 : index
    %c0_160 = arith.constant 0 : index
    %c0_161 = arith.constant 0 : index
    %180 = vector.load %arg8[%c1_158, %c1_159, %c0_160, %c0_161] : memref<2x4x128x32xf32, #tpu.memory_space<vmem>>, vector<1x1x128x32xf32>
    %181 = vector.shape_cast %180 : vector<1x1x128x32xf32> to vector<128x32xf32>
    %cst_162 = arith.constant dense<0.000000e+00> : vector<16x32xf32>
    %182 = tpu.matmul %140, %181, %cst_162 {dimension_numbers = #tpu.dot_dimension_numbers<[1], [0], [0], [1], [0, 0, 1, 1], [], []>} : vector<16x128xf32>, vector<128x32xf32>, vector<16x32xf32> -> vector<16x32xf32>
    %c1_163 = arith.constant 1 : index
    %c1_164 = arith.constant 1 : index
    %c0_165 = arith.constant 0 : index
    %c0_166 = arith.constant 0 : index
    %183 = vector.load %arg9[%c1_163, %c1_164, %c0_165, %c0_166] : memref<2x4x64x32xf32, #tpu.memory_space<vmem>>, vector<1x1x64x32xf32>
    %184 = vector.shape_cast %183 : vector<1x1x64x32xf32> to vector<64x32xf32>
    %cst_167 = arith.constant dense<0.000000e+00> : vector<16x32xf32>
    %185 = tpu.matmul %150, %184, %cst_167 {dimension_numbers = #tpu.dot_dimension_numbers<[1], [0], [0], [1], [0, 0, 1, 1], [], []>} : vector<16x64xf32>, vector<64x32xf32>, vector<16x32xf32> -> vector<16x32xf32>
    %c1_168 = arith.constant 1 : index
    %c1_169 = arith.constant 1 : index
    %c0_170 = arith.constant 0 : index
    %c0_171 = arith.constant 0 : index
    %186 = vector.load %arg10[%c1_168, %c1_169, %c0_170, %c0_171] : memref<2x4x64x32xf32, #tpu.memory_space<vmem>>, vector<1x1x64x32xf32>
    %187 = vector.shape_cast %186 : vector<1x1x64x32xf32> to vector<64x32xf32>
    %cst_172 = arith.constant dense<0.000000e+00> : vector<16x32xf32>
    %188 = tpu.matmul %150, %187, %cst_172 {dimension_numbers = #tpu.dot_dimension_numbers<[1], [0], [0], [1], [0, 0, 1, 1], [], []>} : vector<16x64xf32>, vector<64x32xf32>, vector<16x32xf32> -> vector<16x32xf32>
    %cst_173 = arith.constant dense<0.000000e+00> : vector<16x16xf32>
    %189 = tpu.matmul %182, %185, %cst_173 {dimension_numbers = #tpu.dot_dimension_numbers<[1], [1], [0], [0], [0, 0, 1, 0], [], []>} : vector<16x32xf32>, vector<16x32xf32>, vector<16x16xf32> -> vector<16x16xf32>
    %cst_174 = arith.constant 0.0883883461 : f32
    %190 = vector.broadcast %cst_174 : f32 to vector<16x16xf32>
    %191 = arith.mulf %189, %190 : vector<16x16xf32>
    %192 = arith.mulf %191, %16 : vector<16x16xf32>
    %193 = arith.addf %192, %17 : vector<16x16xf32>
    %cst_175 = arith.constant dense<0xFF800000> : vector<16xf32>
    %194 = vector.multi_reduction <maximumf>, %193, %cst_175 [1] : vector<16x16xf32> to vector<16xf32>
    %195 = vector.shape_cast %194 : vector<16xf32> to vector<16x1xf32>
    %196 = vector.broadcast %195 : vector<16x1xf32> to vector<16x16xf32>
    %197 = arith.subf %193, %196 : vector<16x16xf32>
    %198 = math.exp %197 : vector<16x16xf32>
    %cst_176 = arith.constant dense<0.000000e+00> : vector<16xf32>
    %199 = vector.multi_reduction <add>, %198, %cst_176 [1] : vector<16x16xf32> to vector<16xf32>
    %200 = vector.shape_cast %199 : vector<16xf32> to vector<16x1xf32>
    %201 = vector.broadcast %200 : vector<16x1xf32> to vector<16x16xf32>
    %202 = arith.divf %198, %201 : vector<16x16xf32>
    %cst_177 = arith.constant dense<0.000000e+00> : vector<16x32xf32>
    %203 = tpu.matmul %202, %188, %cst_177 {dimension_numbers = #tpu.dot_dimension_numbers<[1], [0], [0], [1], [0, 0, 1, 1], [], []>} : vector<16x16xf32>, vector<16x32xf32>, vector<16x32xf32> -> vector<16x32xf32>
    %c1_178 = arith.constant 1 : index
    %c1_179 = arith.constant 1 : index
    %c0_180 = arith.constant 0 : index
    %c0_181 = arith.constant 0 : index
    %204 = vector.load %arg11[%c1_178, %c1_179, %c0_180, %c0_181] : memref<2x4x32x128xf32, #tpu.memory_space<vmem>>, vector<1x1x32x128xf32>
    %205 = vector.shape_cast %204 : vector<1x1x32x128xf32> to vector<32x128xf32>
    %cst_182 = arith.constant dense<0.000000e+00> : vector<16x128xf32>
    %206 = tpu.matmul %203, %205, %cst_182 {dimension_numbers = #tpu.dot_dimension_numbers<[1], [0], [0], [1], [0, 0, 1, 1], [], []>} : vector<16x32xf32>, vector<32x128xf32>, vector<16x128xf32> -> vector<16x128xf32>
    %207 = arith.addf %179, %206 : vector<16x128xf32>
    %c1_183 = arith.constant 1 : index
    %c2_184 = arith.constant 2 : index
    %c0_185 = arith.constant 0 : index
    %c0_186 = arith.constant 0 : index
    %208 = vector.load %arg8[%c1_183, %c2_184, %c0_185, %c0_186] : memref<2x4x128x32xf32, #tpu.memory_space<vmem>>, vector<1x1x128x32xf32>
    %209 = vector.shape_cast %208 : vector<1x1x128x32xf32> to vector<128x32xf32>
    %cst_187 = arith.constant dense<0.000000e+00> : vector<16x32xf32>
    %210 = tpu.matmul %140, %209, %cst_187 {dimension_numbers = #tpu.dot_dimension_numbers<[1], [0], [0], [1], [0, 0, 1, 1], [], []>} : vector<16x128xf32>, vector<128x32xf32>, vector<16x32xf32> -> vector<16x32xf32>
    %c1_188 = arith.constant 1 : index
    %c2_189 = arith.constant 2 : index
    %c0_190 = arith.constant 0 : index
    %c0_191 = arith.constant 0 : index
    %211 = vector.load %arg9[%c1_188, %c2_189, %c0_190, %c0_191] : memref<2x4x64x32xf32, #tpu.memory_space<vmem>>, vector<1x1x64x32xf32>
    %212 = vector.shape_cast %211 : vector<1x1x64x32xf32> to vector<64x32xf32>
    %cst_192 = arith.constant dense<0.000000e+00> : vector<16x32xf32>
    %213 = tpu.matmul %150, %212, %cst_192 {dimension_numbers = #tpu.dot_dimension_numbers<[1], [0], [0], [1], [0, 0, 1, 1], [], []>} : vector<16x64xf32>, vector<64x32xf32>, vector<16x32xf32> -> vector<16x32xf32>
    %c1_193 = arith.constant 1 : index
    %c2_194 = arith.constant 2 : index
    %c0_195 = arith.constant 0 : index
    %c0_196 = arith.constant 0 : index
    %214 = vector.load %arg10[%c1_193, %c2_194, %c0_195, %c0_196] : memref<2x4x64x32xf32, #tpu.memory_space<vmem>>, vector<1x1x64x32xf32>
    %215 = vector.shape_cast %214 : vector<1x1x64x32xf32> to vector<64x32xf32>
    %cst_197 = arith.constant dense<0.000000e+00> : vector<16x32xf32>
    %216 = tpu.matmul %150, %215, %cst_197 {dimension_numbers = #tpu.dot_dimension_numbers<[1], [0], [0], [1], [0, 0, 1, 1], [], []>} : vector<16x64xf32>, vector<64x32xf32>, vector<16x32xf32> -> vector<16x32xf32>
    %cst_198 = arith.constant dense<0.000000e+00> : vector<16x16xf32>
    %217 = tpu.matmul %210, %213, %cst_198 {dimension_numbers = #tpu.dot_dimension_numbers<[1], [1], [0], [0], [0, 0, 1, 0], [], []>} : vector<16x32xf32>, vector<16x32xf32>, vector<16x16xf32> -> vector<16x16xf32>
    %cst_199 = arith.constant 0.0883883461 : f32
    %218 = vector.broadcast %cst_199 : f32 to vector<16x16xf32>
    %219 = arith.mulf %217, %218 : vector<16x16xf32>
    %220 = arith.mulf %219, %16 : vector<16x16xf32>
    %221 = arith.addf %220, %17 : vector<16x16xf32>
    %cst_200 = arith.constant dense<0xFF800000> : vector<16xf32>
    %222 = vector.multi_reduction <maximumf>, %221, %cst_200 [1] : vector<16x16xf32> to vector<16xf32>
    %223 = vector.shape_cast %222 : vector<16xf32> to vector<16x1xf32>
    %224 = vector.broadcast %223 : vector<16x1xf32> to vector<16x16xf32>
    %225 = arith.subf %221, %224 : vector<16x16xf32>
    %226 = math.exp %225 : vector<16x16xf32>
    %cst_201 = arith.constant dense<0.000000e+00> : vector<16xf32>
    %227 = vector.multi_reduction <add>, %226, %cst_201 [1] : vector<16x16xf32> to vector<16xf32>
    %228 = vector.shape_cast %227 : vector<16xf32> to vector<16x1xf32>
    %229 = vector.broadcast %228 : vector<16x1xf32> to vector<16x16xf32>
    %230 = arith.divf %226, %229 : vector<16x16xf32>
    %cst_202 = arith.constant dense<0.000000e+00> : vector<16x32xf32>
    %231 = tpu.matmul %230, %216, %cst_202 {dimension_numbers = #tpu.dot_dimension_numbers<[1], [0], [0], [1], [0, 0, 1, 1], [], []>} : vector<16x16xf32>, vector<16x32xf32>, vector<16x32xf32> -> vector<16x32xf32>
    %c1_203 = arith.constant 1 : index
    %c2_204 = arith.constant 2 : index
    %c0_205 = arith.constant 0 : index
    %c0_206 = arith.constant 0 : index
    %232 = vector.load %arg11[%c1_203, %c2_204, %c0_205, %c0_206] : memref<2x4x32x128xf32, #tpu.memory_space<vmem>>, vector<1x1x32x128xf32>
    %233 = vector.shape_cast %232 : vector<1x1x32x128xf32> to vector<32x128xf32>
    %cst_207 = arith.constant dense<0.000000e+00> : vector<16x128xf32>
    %234 = tpu.matmul %231, %233, %cst_207 {dimension_numbers = #tpu.dot_dimension_numbers<[1], [0], [0], [1], [0, 0, 1, 1], [], []>} : vector<16x32xf32>, vector<32x128xf32>, vector<16x128xf32> -> vector<16x128xf32>
    %235 = arith.addf %207, %234 : vector<16x128xf32>
    %c1_208 = arith.constant 1 : index
    %c3_209 = arith.constant 3 : index
    %c0_210 = arith.constant 0 : index
    %c0_211 = arith.constant 0 : index
    %236 = vector.load %arg8[%c1_208, %c3_209, %c0_210, %c0_211] : memref<2x4x128x32xf32, #tpu.memory_space<vmem>>, vector<1x1x128x32xf32>
    %237 = vector.shape_cast %236 : vector<1x1x128x32xf32> to vector<128x32xf32>
    %cst_212 = arith.constant dense<0.000000e+00> : vector<16x32xf32>
    %238 = tpu.matmul %140, %237, %cst_212 {dimension_numbers = #tpu.dot_dimension_numbers<[1], [0], [0], [1], [0, 0, 1, 1], [], []>} : vector<16x128xf32>, vector<128x32xf32>, vector<16x32xf32> -> vector<16x32xf32>
    %c1_213 = arith.constant 1 : index
    %c3_214 = arith.constant 3 : index
    %c0_215 = arith.constant 0 : index
    %c0_216 = arith.constant 0 : index
    %239 = vector.load %arg9[%c1_213, %c3_214, %c0_215, %c0_216] : memref<2x4x64x32xf32, #tpu.memory_space<vmem>>, vector<1x1x64x32xf32>
    %240 = vector.shape_cast %239 : vector<1x1x64x32xf32> to vector<64x32xf32>
    %cst_217 = arith.constant dense<0.000000e+00> : vector<16x32xf32>
    %241 = tpu.matmul %150, %240, %cst_217 {dimension_numbers = #tpu.dot_dimension_numbers<[1], [0], [0], [1], [0, 0, 1, 1], [], []>} : vector<16x64xf32>, vector<64x32xf32>, vector<16x32xf32> -> vector<16x32xf32>
    %c1_218 = arith.constant 1 : index
    %c3_219 = arith.constant 3 : index
    %c0_220 = arith.constant 0 : index
    %c0_221 = arith.constant 0 : index
    %242 = vector.load %arg10[%c1_218, %c3_219, %c0_220, %c0_221] : memref<2x4x64x32xf32, #tpu.memory_space<vmem>>, vector<1x1x64x32xf32>
    %243 = vector.shape_cast %242 : vector<1x1x64x32xf32> to vector<64x32xf32>
    %cst_222 = arith.constant dense<0.000000e+00> : vector<16x32xf32>
    %244 = tpu.matmul %150, %243, %cst_222 {dimension_numbers = #tpu.dot_dimension_numbers<[1], [0], [0], [1], [0, 0, 1, 1], [], []>} : vector<16x64xf32>, vector<64x32xf32>, vector<16x32xf32> -> vector<16x32xf32>
    %cst_223 = arith.constant dense<0.000000e+00> : vector<16x16xf32>
    %245 = tpu.matmul %238, %241, %cst_223 {dimension_numbers = #tpu.dot_dimension_numbers<[1], [1], [0], [0], [0, 0, 1, 0], [], []>} : vector<16x32xf32>, vector<16x32xf32>, vector<16x16xf32> -> vector<16x16xf32>
    %cst_224 = arith.constant 0.0883883461 : f32
    %246 = vector.broadcast %cst_224 : f32 to vector<16x16xf32>
    %247 = arith.mulf %245, %246 : vector<16x16xf32>
    %248 = arith.mulf %247, %16 : vector<16x16xf32>
    %249 = arith.addf %248, %17 : vector<16x16xf32>
    %cst_225 = arith.constant dense<0xFF800000> : vector<16xf32>
    %250 = vector.multi_reduction <maximumf>, %249, %cst_225 [1] : vector<16x16xf32> to vector<16xf32>
    %251 = vector.shape_cast %250 : vector<16xf32> to vector<16x1xf32>
    %252 = vector.broadcast %251 : vector<16x1xf32> to vector<16x16xf32>
    %253 = arith.subf %249, %252 : vector<16x16xf32>
    %254 = math.exp %253 : vector<16x16xf32>
    %cst_226 = arith.constant dense<0.000000e+00> : vector<16xf32>
    %255 = vector.multi_reduction <add>, %254, %cst_226 [1] : vector<16x16xf32> to vector<16xf32>
    %256 = vector.shape_cast %255 : vector<16xf32> to vector<16x1xf32>
    %257 = vector.broadcast %256 : vector<16x1xf32> to vector<16x16xf32>
    %258 = arith.divf %254, %257 : vector<16x16xf32>
    %cst_227 = arith.constant dense<0.000000e+00> : vector<16x32xf32>
    %259 = tpu.matmul %258, %244, %cst_227 {dimension_numbers = #tpu.dot_dimension_numbers<[1], [0], [0], [1], [0, 0, 1, 1], [], []>} : vector<16x16xf32>, vector<16x32xf32>, vector<16x32xf32> -> vector<16x32xf32>
    %c1_228 = arith.constant 1 : index
    %c3_229 = arith.constant 3 : index
    %c0_230 = arith.constant 0 : index
    %c0_231 = arith.constant 0 : index
    %260 = vector.load %arg11[%c1_228, %c3_229, %c0_230, %c0_231] : memref<2x4x32x128xf32, #tpu.memory_space<vmem>>, vector<1x1x32x128xf32>
    %261 = vector.shape_cast %260 : vector<1x1x32x128xf32> to vector<32x128xf32>
    %cst_232 = arith.constant dense<0.000000e+00> : vector<16x128xf32>
    %262 = tpu.matmul %259, %261, %cst_232 {dimension_numbers = #tpu.dot_dimension_numbers<[1], [0], [0], [1], [0, 0, 1, 1], [], []>} : vector<16x32xf32>, vector<32x128xf32>, vector<16x128xf32> -> vector<16x128xf32>
    %263 = arith.addf %235, %262 : vector<16x128xf32>
    %c0_233 = arith.constant 0 : index
    %c0_234 = arith.constant 0 : index
    %264 = vector.load %arg14[%c0_233, %c0_234] : memref<128x128xf32, #tpu.memory_space<vmem>>, vector<128x128xf32>
    %cst_235 = arith.constant dense<0.000000e+00> : vector<16x128xf32>
    %265 = tpu.matmul %263, %264, %cst_235 {dimension_numbers = #tpu.dot_dimension_numbers<[1], [0], [0], [1], [0, 0, 1, 1], [], []>} : vector<16x128xf32>, vector<128x128xf32>, vector<16x128xf32> -> vector<16x128xf32>
    %c0_236 = arith.constant 0 : index
    %c0_237 = arith.constant 0 : index
    %266 = vector.load %arg15[%c0_236, %c0_237] : memref<1x128xf32, #tpu.memory_space<vmem>>, vector<1x128xf32>
    %267 = vector.broadcast %266 : vector<1x128xf32> to vector<16x128xf32>
    %268 = arith.addf %265, %267 : vector<16x128xf32>
    %c0_238 = arith.constant 0 : index
    %c0_239 = arith.constant 0 : index
    %269 = vector.load %arg16[%c0_238, %c0_239] : memref<16x128xf32, #tpu.memory_space<vmem>>, vector<16x128xf32>
    tpu.vector_store %arg16[%c0_238, %c0_239], %268 {strides = array<i32>} : memref<16x128xf32, #tpu.memory_space<vmem>>, vector<16x128xf32>,
    return
  }
  func.func @transform_0(%arg0: i32, %arg1: memref<1xi32, #tpu.memory_space<smem>>) -> (i32, i32) {
    %c0_i32 = arith.constant 0 : i32
    %c0_i32_0 = arith.constant 0 : i32
    %c0_i32_1 = arith.constant 0 : i32
    return %c0_i32, %c0_i32_0 : i32, i32
  }
  func.func @transform_1(%arg0: i32, %arg1: memref<1xi32, #tpu.memory_space<smem>>) -> (i32, i32, i32) {
    %c0 = arith.constant 0 : index
    %0 = memref.load %arg1[%c0] : memref<1xi32, #tpu.memory_space<smem>>
    %c0_i32 = arith.constant 0 : i32
    %c0_i32_0 = arith.constant 0 : i32
    %c0_i32_1 = arith.constant 0 : i32
    return %0, %c0_i32, %c0_i32_0 : i32, i32, i32
  }
  func.func @transform_2(%arg0: i32, %arg1: memref<1xi32, #tpu.memory_space<smem>>) -> (i32, i32) {
    %c0_i32 = arith.constant 0 : i32
    %c0_i32_0 = arith.constant 0 : i32
    %c0_i32_1 = arith.constant 0 : i32
    return %c0_i32, %c0_i32_0 : i32, i32
  }
  func.func @transform_3(%arg0: i32, %arg1: memref<1xi32, #tpu.memory_space<smem>>) -> (i32, i32, i32) {
    %c0_i32 = arith.constant 0 : i32
    %c0_i32_0 = arith.constant 0 : i32
    %c0_i32_1 = arith.constant 0 : i32
    %c0_i32_2 = arith.constant 0 : i32
    return %c0_i32, %c0_i32_0, %c0_i32_1 : i32, i32, i32
  }
  func.func @transform_4(%arg0: i32, %arg1: memref<1xi32, #tpu.memory_space<smem>>) -> (i32, i32, i32) {
    %c0_i32 = arith.constant 0 : i32
    %c0_i32_0 = arith.constant 0 : i32
    %c0_i32_1 = arith.constant 0 : i32
    %c0_i32_2 = arith.constant 0 : i32
    return %c0_i32, %c0_i32_0, %c0_i32_1 : i32, i32, i32
  }
  func.func @transform_5(%arg0: i32, %arg1: memref<1xi32, #tpu.memory_space<smem>>) -> (i32, i32, i32) {
    %c0_i32 = arith.constant 0 : i32
    %c0_i32_0 = arith.constant 0 : i32
    %c0_i32_1 = arith.constant 0 : i32
    %c0_i32_2 = arith.constant 0 : i32
    return %c0_i32, %c0_i32_0, %c0_i32_1 : i32, i32, i32
  }
  func.func @transform_6(%arg0: i32, %arg1: memref<1xi32, #tpu.memory_space<smem>>) -> (i32, i32, i32, i32) {
    %c0_i32 = arith.constant 0 : i32
    %c0_i32_0 = arith.constant 0 : i32
    %c0_i32_1 = arith.constant 0 : i32
    %c0_i32_2 = arith.constant 0 : i32
    %c0_i32_3 = arith.constant 0 : i32
    return %c0_i32, %c0_i32_0, %c0_i32_1, %c0_i32_2 : i32, i32, i32, i32
  }
  func.func @transform_7(%arg0: i32, %arg1: memref<1xi32, #tpu.memory_space<smem>>) -> (i32, i32, i32, i32) {
    %c0_i32 = arith.constant 0 : i32
    %c0_i32_0 = arith.constant 0 : i32
    %c0_i32_1 = arith.constant 0 : i32
    %c0_i32_2 = arith.constant 0 : i32
    %c0_i32_3 = arith.constant 0 : i32
    return %c0_i32, %c0_i32_0, %c0_i32_1, %c0_i32_2 : i32, i32, i32, i32
  }
  func.func @transform_8(%arg0: i32, %arg1: memref<1xi32, #tpu.memory_space<smem>>) -> (i32, i32, i32, i32) {
    %c0_i32 = arith.constant 0 : i32
    %c0_i32_0 = arith.constant 0 : i32
    %c0_i32_1 = arith.constant 0 : i32
    %c0_i32_2 = arith.constant 0 : i32
    %c0_i32_3 = arith.constant 0 : i32
    return %c0_i32, %c0_i32_0, %c0_i32_1, %c0_i32_2 : i32, i32, i32, i32
  }
  func.func @transform_9(%arg0: i32, %arg1: memref<1xi32, #tpu.memory_space<smem>>) -> (i32, i32, i32, i32) {
    %c0_i32 = arith.constant 0 : i32
    %c0_i32_0 = arith.constant 0 : i32
    %c0_i32_1 = arith.constant 0 : i32
    %c0_i32_2 = arith.constant 0 : i32
    %c0_i32_3 = arith.constant 0 : i32
    return %c0_i32, %c0_i32_0, %c0_i32_1, %c0_i32_2 : i32, i32, i32, i32
  }
  func.func @transform_10(%arg0: i32, %arg1: memref<1xi32, #tpu.memory_space<smem>>) -> (i32, i32) {
    %c0_i32 = arith.constant 0 : i32
    %c0_i32_0 = arith.constant 0 : i32
    %c0_i32_1 = arith.constant 0 : i32
    return %c0_i32, %c0_i32_0 : i32, i32
  }
  func.func @transform_11(%arg0: i32, %arg1: memref<1xi32, #tpu.memory_space<smem>>) -> (i32, i32) {
    %c0_i32 = arith.constant 0 : i32
    %c0_i32_0 = arith.constant 0 : i32
    %c0_i32_1 = arith.constant 0 : i32
    return %c0_i32, %c0_i32_0 : i32, i32
  }
  func.func @transform_12(%arg0: i32, %arg1: memref<1xi32, #tpu.memory_space<smem>>) -> (i32, i32) {
    %c0_i32 = arith.constant 0 : i32
    %c0_i32_0 = arith.constant 0 : i32
    %c0_i32_1 = arith.constant 0 : i32
    return %c0_i32, %c0_i32_0 : i32, i32
  }
  func.func @transform_13(%arg0: i32, %arg1: memref<1xi32, #tpu.memory_space<smem>>) -> (i32, i32) {
    %c0_i32 = arith.constant 0 : i32
    %c0_i32_0 = arith.constant 0 : i32
    %c0_i32_1 = arith.constant 0 : i32
    return %c0_i32, %c0_i32_0 : i32, i32
  }
  func.func @transform_14(%arg0: i32, %arg1: memref<1xi32, #tpu.memory_space<smem>>) -> (i32, i32) {
    %c0_i32 = arith.constant 0 : i32
    %c0_i32_0 = arith.constant 0 : i32
    %c0_i32_1 = arith.constant 0 : i32
    return %c0_i32, %c0_i32_0 : i32, i32
  }
}

</mosaic_0001>

<llo_original>
// kernel: transformer_model2_forward.1
$region0: #{transformer_model2_forward.1}
  #allocation0 [shape = 'u32[]', space=smem, size = 0x4, offset = 0x4, fixed_abs, tag = 'smem constant byte address 0x4 - core index']
  #allocation1 [shape = 'u32[144,128]{1,0:T(1,128)}', space=vmem, size = 0x12000, scoped, tag = 'internal scratch']
  #allocation2 [shape = 's32[1]{0}', space=sflag, size = 0x4, scoped, tag = 'scoped memory for transformer_model2_forward.1']
  #allocation3 [shape = 's32[1]{0:T(128)S(6)}', space=smem, size = 0x200, scoped, tag = 'prefetched SMEM operand 0']
  %s0 = inlined_call_operand.<no memory space> [shape: s32[1], index: 0, kind: input, shape index: {}]
  %s1 = inlined_call_operand.vmem [shape: s32[16,1], index: 1, kind: input, shape index: {}]
  %s2 = inlined_call_operand.vmem [shape: f32[3,128,128], index: 2, kind: input, shape index: {}]
  %s3 = inlined_call_operand.vmem [shape: f32[8,128], index: 3, kind: input, shape index: {}]
  %s4 = inlined_call_operand.vmem [shape: f32[2,128,128], index: 4, kind: input, shape index: {}]
  %s5 = inlined_call_operand.vmem [shape: f32[2,128,128], index: 5, kind: input, shape index: {}]
  %s6 = inlined_call_operand.vmem [shape: f32[2,128,64], index: 6, kind: input, shape index: {}]
  %s7 = inlined_call_operand.vmem [shape: f32[2,4,128,32], index: 7, kind: input, shape index: {}]
  %s8 = inlined_call_operand.vmem [shape: f32[2,4,64,32], index: 8, kind: input, shape index: {}]
  %s9 = inlined_call_operand.vmem [shape: f32[2,4,64,32], index: 9, kind: input, shape index: {}]
  %s10 = inlined_call_operand.vmem [shape: f32[2,4,32,128], index: 10, kind: input, shape index: {}]
  %s11 = inlined_call_operand.vmem [shape: f32[16,16], index: 11, kind: input, shape index: {}]
  %s12 = inlined_call_operand.vmem [shape: f32[16,16], index: 12, kind: input, shape index: {}]
  %s13 = inlined_call_operand.vmem [shape: f32[128,128], index: 13, kind: input, shape index: {}]
  %s14 = inlined_call_operand.vmem [shape: f32[1,128], index: 14, kind: input, shape index: {}]
  %s15 = inlined_call_operand.hbm [shape: f32[16,128], index: 15, kind: output, shape index: {}]
  %s16 = sld [smem:[#allocation0]]
  $region66: #{transformer_model2_forward.1} parent=0
    _
  %s18 = ssub.s32 1, %s16
  %s19 = scalar_select 0, %s18, %s16
  %20 = sst [smem:[#allocation3]] %s0
  $region1: #{transformer_model2_forward.1} parent=0
    #allocation4 [shape = 'u8[8192]{0}', space=vmem, size = 0x2000, scoped, tag = 'output window, operand 0, single buffered']
    #allocation5 [shape = 's32[1]{0}', space=sflag, size = 0x4, scoped, tag = 'scoped memory for transformer_model2_forward.1']
    %21 = vsyncpa [#allocation5], 0
    // Predicated region
    $region2: #{transformer_model2_forward.1} parent=1 // pred_check
      _
    $region3: #{transformer_model2_forward.1} parent=1 // pred_check_branch
      %23 = sbr.rel (0) target = $region5
    $region4: #{transformer_model2_forward.1} parent=1 // pred_region
      _
    $region5: #{transformer_model2_forward.1} parent=1 // pred_fallthru
      _
    // Predicated region
    $region6: #{transformer_model2_forward.1} parent=1 // pred_check
      _
    $region7: #{transformer_model2_forward.1} parent=1 // pred_check_branch
      %25 = sbr.rel (0) target = $region9
    $region8: #{transformer_model2_forward.1} parent=1 // pred_region
      %s26 = sld [smem:[#allocation3]]
      %p27 = scmp.lt.s32.totalorder %s26, 2
      %s28 = scalar_select %p27, %s26, 2
      %s29 = smul.addr %s28, 16
      %s30 = smul.addr %s29, 8
      %s31 = scalar_lea.vmem %s2, %s30
      %s32 = sld [smem:[#allocation3]]
    $region9: #{transformer_model2_forward.1} parent=1 // pred_fallthru
      _
    // Predicated region
    $region10: #{transformer_model2_forward.1} parent=1 // pred_check
      _
    $region11: #{transformer_model2_forward.1} parent=1 // pred_check_branch
      %34 = sbr.rel (0) target = $region13
    $region12: #{transformer_model2_forward.1} parent=1 // pred_region
      _
    $region13: #{transformer_model2_forward.1} parent=1 // pred_fallthru
      _
    // Predicated region
    $region14: #{transformer_model2_forward.1} parent=1 // pred_check
      _
    $region15: #{transformer_model2_forward.1} parent=1 // pred_check_branch
      %36 = sbr.rel (0) target = $region17
    $region16: #{transformer_model2_forward.1} parent=1 // pred_region
      _
    $region17: #{transformer_model2_forward.1} parent=1 // pred_fallthru
      _
    // Predicated region
    $region18: #{transformer_model2_forward.1} parent=1 // pred_check
      _
    $region19: #{transformer_model2_forward.1} parent=1 // pred_check_branch
      %38 = sbr.rel (0) target = $region21
    $region20: #{transformer_model2_forward.1} parent=1 // pred_region
      _
    $region21: #{transformer_model2_forward.1} parent=1 // pred_fallthru
      _
    // Predicated region
    $region22: #{transformer_model2_forward.1} parent=1 // pred_check
      _
    $region23: #{transformer_model2_forward.1} parent=1 // pred_check_branch
      %40 = sbr.rel (0) target = $region25
    $region24: #{transformer_model2_forward.1} parent=1 // pred_region
      _
    $region25: #{transformer_model2_forward.1} parent=1 // pred_fallthru
      _
    // Predicated region
    $region26: #{transformer_model2_forward.1} parent=1 // pred_check
      _
    $region27: #{transformer_model2_forward.1} parent=1 // pred_check_branch
      %42 = sbr.rel (0) target = $region29
    $region28: #{transformer_model2_forward.1} parent=1 // pred_region
      _
    $region29: #{transformer_model2_forward.1} parent=1 // pred_fallthru
      _
    // Predicated region
    $region30: #{transformer_model2_forward.1} parent=1 // pred_check
      _
    $region31: #{transformer_model2_forward.1} parent=1 // pred_check_branch
      %44 = sbr.rel (0) target = $region33
    $region32: #{transformer_model2_forward.1} parent=1 // pred_region
      _
    $region33: #{transformer_model2_forward.1} parent=1 // pred_fallthru
      _
    // Predicated region
    $region34: #{transformer_model2_forward.1} parent=1 // pred_check
      _
    $region35: #{transformer_model2_forward.1} parent=1 // pred_check_branch
      %46 = sbr.rel (0) target = $region37
    $region36: #{transformer_model2_forward.1} parent=1 // pred_region
      _
    $region37: #{transformer_model2_forward.1} parent=1 // pred_fallthru
      _
    // Predicated region
    $region38: #{transformer_model2_forward.1} parent=1 // pred_check
      _
    $region39: #{transformer_model2_forward.1} parent=1 // pred_check_branch
      %48 = sbr.rel (0) target = $region41
    $region40: #{transformer_model2_forward.1} parent=1 // pred_region
      _
    $region41: #{transformer_model2_forward.1} parent=1 // pred_fallthru
      _
    // Predicated region
    $region42: #{transformer_model2_forward.1} parent=1 // pred_check
      _
    $region43: #{transformer_model2_forward.1} parent=1 // pred_check_branch
      %50 = sbr.rel (0) target = $region45
    $region44: #{transformer_model2_forward.1} parent=1 // pred_region
      _
    $region45: #{transformer_model2_forward.1} parent=1 // pred_fallthru
      _
    // Predicated region
    $region46: #{transformer_model2_forward.1} parent=1 // pred_check
      _
    $region47: #{transformer_model2_forward.1} parent=1 // pred_check_branch
      %52 = sbr.rel (0) target = $region49
    $region48: #{transformer_model2_forward.1} parent=1 // pred_region
      _
    $region49: #{transformer_model2_forward.1} parent=1 // pred_fallthru
      _
    // Predicated region
    $region50: #{transformer_model2_forward.1} parent=1 // pred_check
      _
    $region51: #{transformer_model2_forward.1} parent=1 // pred_check_branch
      %54 = sbr.rel (0) target = $region53
    $region52: #{transformer_model2_forward.1} parent=1 // pred_region
      _
    $region53: #{transformer_model2_forward.1} parent=1 // pred_fallthru
      _
    // Predicated region
    $region54: #{transformer_model2_forward.1} parent=1 // pred_check
      _
    $region55: #{transformer_model2_forward.1} parent=1 // pred_check_branch
      %56 = sbr.rel (0) target = $region57
    $region56: #{transformer_model2_forward.1} parent=1 // pred_region
      _
    $region57: #{transformer_model2_forward.1} parent=1 // pred_fallthru
      _
    %s57 = sld [smem:[#allocation3]]
    %p58 = scmp.lt.s32.totalorder %s57, 2
    %s59 = scalar_select %p58, %s57, 2
    %s60 = smul.addr %s59, 16
    %s61 = smul.addr %s60, 8
    %s62 = scalar_lea.vmem %s2, %s61
    %s63 = sld [smem:[#allocation3]]
    %p64 = scmp.lt.s32.totalorder %s63, 2
    %s65 = scalar_select %p64, %s63, 2
    %s66 = smul.addr %s65, 16
    %s67 = smul.addr %s66, 8
    %s68 = scalar_lea.vmem %s2, %s67
    %s69 = sld [smem:[#allocation3]]
    %v70 = vld [vmem:[%s1] sm:$0xff]
    %v71 = vld [vmem:[%s1 + $0x8] sm:$0xff]
    %vm72 = vcmp.gt.s32.totalorder %v70, 0
    %v73 = vsel %vm72, %v70, 0
    %vm74 = vcmp.gt.s32.totalorder %v71, 0
    %v75 = vsel %vm74, %v71, 0
    %vm76 = vcmp.lt.s32.totalorder %v73, 127
    %v77 = vsel %vm76, %v73, 127
    %vm78 = vcmp.lt.s32.totalorder %v75, 127
    %v79 = vsel %vm78, %v75, 127
    %v80 = vlaneseq
    %v81 = vand.u32 %v80, 127
    %82 = vset.pattern.permute.xlu0 0
    %83 = vperm.xlu0 %82, %v77
    %v84 = vpop.permute.xlu0 %83
    %85 = vset.pattern.permute.xlu0 0
    %86 = vperm.xlu0 %85, %v79
    %v87 = vpop.permute.xlu0 %86
    %vm88 = vcmp.eq.s32.totalorder %v84, %v81
    %vm89 = vcmp.eq.s32.totalorder %v87, %v81
    %v90 = vsel %vm88, 1, 0
    %v91 = vsel %vm89, 1, 0
    %v92 = vcvt.s32.f32 %v90
    %v93 = vcvt.s32.f32 %v91
    %v94 = vld [vmem:[%s68] sm:$0xff]
    %v95 = vld [vmem:[%s68 + $0x8] sm:$0xff]
    %v96 = vld [vmem:[%s68 + $0x10] sm:$0xff]
    %v97 = vld [vmem:[%s68 + $0x18] sm:$0xff]
    %v98 = vld [vmem:[%s68 + $0x20] sm:$0xff]
    %v99 = vld [vmem:[%s68 + $0x28] sm:$0xff]
    %v100 = vld [vmem:[%s68 + $0x30] sm:$0xff]
    %v101 = vld [vmem:[%s68 + $0x38] sm:$0xff]
    %v102 = vld [vmem:[%s68 + $0x40] sm:$0xff]
    %v103 = vld [vmem:[%s68 + $0x48] sm:$0xff]
    %v104 = vld [vmem:[%s68 + $0x50] sm:$0xff]
    %v105 = vld [vmem:[%s68 + $0x58] sm:$0xff]
    %v106 = vld [vmem:[%s68 + $0x60] sm:$0xff]
    %v107 = vld [vmem:[%s68 + $0x68] sm:$0xff]
    %v108 = vld [vmem:[%s68 + $0x70] sm:$0xff]
    %v109 = vld [vmem:[%s68 + $0x78] sm:$0xff]
    %v110 = vld [vmem:[%s3] sm:$0xff]
    %111 = vmatprep.subr.mxu0 0.0
    %112 = vmatpush1.msra.mxu0 %v94
    %113 = vmatprep.subr.mxu0 0.0
    %114 = vmatpush1.msra.mxu0 %v95
    %115 = vmatprep.subr.mxu0 0.0
    %116 = vmatpush1.msra.mxu0 %v96
    %117 = vmatprep.subr.mxu0 0.0
    %118 = vmatpush1.msra.mxu0 %v97
    %119 = vmatprep.subr.mxu0 0.0
    %120 = vmatpush1.msra.mxu0 %v98
    %121 = vmatprep.subr.mxu0 0.0
    %122 = vmatpush1.msra.mxu0 %v99
    %123 = vmatprep.subr.mxu0 0.0
    %124 = vmatpush1.msra.mxu0 %v100
    %125 = vmatprep.subr.mxu0 0.0
    %126 = vmatpush1.msra.mxu0 %v101
    %127 = vmatprep.subr.mxu0 0.0
    %128 = vmatpush1.msra.mxu0 %v102
    %129 = vmatprep.subr.mxu0 0.0
    %130 = vmatpush1.msra.mxu0 %v103
    %131 = vmatprep.subr.mxu0 0.0
    %132 = vmatpush1.msra.mxu0 %v104
    %133 = vmatprep.subr.mxu0 0.0
    %134 = vmatpush1.msra.mxu0 %v105
    %135 = vmatprep.subr.mxu0 0.0
    %136 = vmatpush1.msra.mxu0 %v106
    %137 = vmatprep.subr.mxu0 0.0
    %138 = vmatpush1.msra.mxu0 %v107
    %139 = vmatprep.subr.mxu0 0.0
    %140 = vmatpush1.msra.mxu0 %v108
    %141 = vmatprep.subr.mxu0 0.0
    %142 = vmatpush1.msra.mxu0 %v109
    %143 = vmatprep.subr.mxu0 0.0
    %144 = vmatpush1.msra.mxu0 0.0
    %145 = vmatprep.subr.mxu0 0.0
    %146 = vmatpush1.msra.mxu0 0.0
    %147 = vmatprep.subr.mxu0 0.0
    %148 = vmatpush1.msra.mxu0 0.0
    %149 = vmatprep.subr.mxu0 0.0
    %150 = vmatpush1.msra.mxu0 0.0
    %151 = vmatprep.subr.mxu0 0.0
    %152 = vmatpush1.msra.mxu0 0.0
    %153 = vmatprep.subr.mxu0 0.0
    %154 = vmatpush1.msra.mxu0 0.0
    %155 = vmatprep.subr.mxu0 0.0
    %156 = vmatpush1.msra.mxu0 0.0
    %157 = vmatprep.subr.mxu0 0.0
    %158 = vmatpush1.msra.mxu0 0.0
    %159 = vmatprep.subr.mxu0 0.0
    %160 = vmatpush1.msra.mxu0 0.0
    %161 = vmatprep.subr.mxu0 0.0
    %162 = vmatpush1.msra.mxu0 0.0
    %163 = vmatprep.subr.mxu0 0.0
    %164 = vmatpush1.msra.mxu0 0.0
    %165 = vmatprep.subr.mxu0 0.0
    %166 = vmatpush1.msra.mxu0 0.0
    %167 = vmatprep.subr.mxu0 0.0
    %168 = vmatpush1.msra.mxu0 0.0
    %169 = vmatprep.subr.mxu0 0.0
    %170 = vmatpush1.msra.mxu0 0.0
    %171 = vmatprep.subr.mxu0 0.0
    %172 = vmatpush1.msra.mxu0 0.0
    %173 = vmatprep.subr.mxu0 0.0
    %174 = vmatpush1.msra.mxu0 0.0
    %175 = vmatprep.mubr.f32.mxu0 0.0
    %176 = vmatmul.mubr.f32.gmra.mrb[0].mxu0 %v92
    %v177 = vpop.f32.mrb[0].mxu0
    %v178 = vadd.f32 %v110, %v177
    %v179 = vpop.f32.mrb[0].mxu0
    %180 = vmatprep.mubr.f32.mxu0 0.0
    %181 = vmatmul.mubr.f32.gmra.mrb[0].mxu0 %v93
    %v182 = vpop.f32.mrb[0].mxu0
    %v183 = vadd.f32 %v110, %v182
    %v184 = vpop.f32.mrb[0].mxu0
    %185 = vdwg.mxu0
    %v186 = vld [vmem:[%s11] sm:$0xff]
    %v187 = vld [vmem:[%s11 + $0x8] sm:$0xff]
    %v188 = vld [vmem:[%s12] sm:$0xff]
    %v189 = vld [vmem:[%s12 + $0x8] sm:$0xff]
    %v190 = vld [vmem:[%s4] sm:$0xff]
    %v191 = vld [vmem:[%s4 + $0x8] sm:$0xff]
    %v192 = vld [vmem:[%s4 + $0x10] sm:$0xff]
    %v193 = vld [vmem:[%s4 + $0x18] sm:$0xff]
    %v194 = vld [vmem:[%s4 + $0x20] sm:$0xff]
    %v195 = vld [vmem:[%s4 + $0x28] sm:$0xff]
    %v196 = vld [vmem:[%s4 + $0x30] sm:$0xff]
    %v197 = vld [vmem:[%s4 + $0x38] sm:$0xff]
    %v198 = vld [vmem:[%s4 + $0x40] sm:$0xff]
    %v199 = vld [vmem:[%s4 + $0x48] sm:$0xff]
    %v200 = vld [vmem:[%s4 + $0x50] sm:$0xff]
    %v201 = vld [vmem:[%s4 + $0x58] sm:$0xff]
    %v202 = vld [vmem:[%s4 + $0x60] sm:$0xff]
    %v203 = vld [vmem:[%s4 + $0x68] sm:$0xff]
    %v204 = vld [vmem:[%s4 + $0x70] sm:$0xff]
    %v205 = vld [vmem:[%s4 + $0x78] sm:$0xff]
    %v206 = vld [vmem:[%s5] sm:$0xff]
    %v207 = vld [vmem:[%s5 + $0x8] sm:$0xff]
    %v208 = vld [vmem:[%s5 + $0x10] sm:$0xff]
    %v209 = vld [vmem:[%s5 + $0x18] sm:$0xff]
    %v210 = vld [vmem:[%s5 + $0x20] sm:$0xff]
    %v211 = vld [vmem:[%s5 + $0x28] sm:$0xff]
    %v212 = vld [vmem:[%s5 + $0x30] sm:$0xff]
    %v213 = vld [vmem:[%s5 + $0x38] sm:$0xff]
    %v214 = vld [vmem:[%s5 + $0x40] sm:$0xff]
    %v215 = vld [vmem:[%s5 + $0x48] sm:$0xff]
    %v216 = vld [vmem:[%s5 + $0x50] sm:$0xff]
    %v217 = vld [vmem:[%s5 + $0x58] sm:$0xff]
    %v218 = vld [vmem:[%s5 + $0x60] sm:$0xff]
    %v219 = vld [vmem:[%s5 + $0x68] sm:$0xff]
    %v220 = vld [vmem:[%s5 + $0x70] sm:$0xff]
    %v221 = vld [vmem:[%s5 + $0x78] sm:$0xff]
    %222 = vmatprep.subr.mxu0 0.0
    %223 = vmatpush1.msra.mxu0 %v206
    %224 = vmatprep.subr.mxu0 0.0
    %225 = vmatpush1.msra.mxu0 %v207
    %226 = vmatprep.subr.mxu0 0.0
    %227 = vmatpush1.msra.mxu0 %v208
    %228 = vmatprep.subr.mxu0 0.0
    %229 = vmatpush1.msra.mxu0 %v209
    %230 = vmatprep.subr.mxu0 0.0
    %231 = vmatpush1.msra.mxu0 %v210
    %232 = vmatprep.subr.mxu0 0.0
    %233 = vmatpush1.msra.mxu0 %v211
    %234 = vmatprep.subr.mxu0 0.0
    %235 = vmatpush1.msra.mxu0 %v212
    %236 = vmatprep.subr.mxu0 0.0
    %237 = vmatpush1.msra.mxu0 %v213
    %238 = vmatprep.subr.mxu0 0.0
    %239 = vmatpush1.msra.mxu0 %v214
    %240 = vmatprep.subr.mxu0 0.0
    %241 = vmatpush1.msra.mxu0 %v215
    %242 = vmatprep.subr.mxu0 0.0
    %243 = vmatpush1.msra.mxu0 %v216
    %244 = vmatprep.subr.mxu0 0.0
    %245 = vmatpush1.msra.mxu0 %v217
    %246 = vmatprep.subr.mxu0 0.0
    %247 = vmatpush1.msra.mxu0 %v218
    %248 = vmatprep.subr.mxu0 0.0
    %249 = vmatpush1.msra.mxu0 %v219
    %250 = vmatprep.subr.mxu0 0.0
    %251 = vmatpush1.msra.mxu0 %v220
    %252 = vmatprep.subr.mxu0 0.0
    %253 = vmatpush1.msra.mxu0 %v221
    %254 = vmatprep.subr.mxu0 0.0
    %255 = vmatpush1.msra.mxu0 0.0
    %256 = vmatprep.subr.mxu0 0.0
    %257 = vmatpush1.msra.mxu0 0.0
    %258 = vmatprep.subr.mxu0 0.0
    %259 = vmatpush1.msra.mxu0 0.0
    %260 = vmatprep.subr.mxu0 0.0
    %261 = vmatpush1.msra.mxu0 0.0
    %262 = vmatprep.subr.mxu0 0.0
    %263 = vmatpush1.msra.mxu0 0.0
    %264 = vmatprep.subr.mxu0 0.0
    %265 = vmatpush1.msra.mxu0 0.0
    %266 = vmatprep.subr.mxu0 0.0
    %267 = vmatpush1.msra.mxu0 0.0
    %268 = vmatprep.subr.mxu0 0.0
    %269 = vmatpush1.msra.mxu0 0.0
    %270 = vmatprep.subr.mxu0 0.0
    %271 = vmatpush1.msra.mxu0 0.0
    %272 = vmatprep.subr.mxu0 0.0
    %273 = vmatpush1.msra.mxu0 0.0
    %274 = vmatprep.subr.mxu0 0.0
    %275 = vmatpush1.msra.mxu0 0.0
    %276 = vmatprep.subr.mxu0 0.0
    %277 = vmatpush1.msra.mxu0 0.0
    %278 = vmatprep.subr.mxu0 0.0
    %279 = vmatpush1.msra.mxu0 0.0
    %280 = vmatprep.subr.mxu0 0.0
    %281 = vmatpush1.msra.mxu0 0.0
    %282 = vmatprep.subr.mxu0 0.0
    %283 = vmatpush1.msra.mxu0 0.0
    %284 = vmatprep.subr.mxu0 0.0
    %285 = vmatpush1.msra.mxu0 0.0
    %286 = vmatprep.mubr.f32.mxu0 0.0
    %287 = vmatmul.mubr.f32.gmra.mrb[0].mxu0 %v178
    %v288 = vpop.f32.mrb[0].mxu0
    %v289 = vadd.f32 0.0, %v288
    %v290 = vpop.f32.mrb[0].mxu0
    %291 = vmatprep.mubr.f32.mxu0 0.0
    %292 = vmatmul.mubr.f32.gmra.mrb[0].mxu0 %v183
    %v293 = vpop.f32.mrb[0].mxu0
    %v294 = vadd.f32 0.0, %v293
    %v295 = vpop.f32.mrb[0].mxu0
    %296 = vdwg.mxu0
    %297 = vmatprep.subr.mxu0 0.0
    %298 = vmatpush1.msra.mxu0 %v190
    %299 = vmatprep.subr.mxu0 0.0
    %300 = vmatpush1.msra.mxu0 %v191
    %301 = vmatprep.subr.mxu0 0.0
    %302 = vmatpush1.msra.mxu0 %v192
    %303 = vmatprep.subr.mxu0 0.0
    %304 = vmatpush1.msra.mxu0 %v193
    %305 = vmatprep.subr.mxu0 0.0
    %306 = vmatpush1.msra.mxu0 %v194
    %307 = vmatprep.subr.mxu0 0.0
    %308 = vmatpush1.msra.mxu0 %v195
    %309 = vmatprep.subr.mxu0 0.0
    %310 = vmatpush1.msra.mxu0 %v196
    %311 = vmatprep.subr.mxu0 0.0
    %312 = vmatpush1.msra.mxu0 %v197
    %313 = vmatprep.subr.mxu0 0.0
    %314 = vmatpush1.msra.mxu0 %v198
    %315 = vmatprep.subr.mxu0 0.0
    %316 = vmatpush1.msra.mxu0 %v199
    %317 = vmatprep.subr.mxu0 0.0
    %318 = vmatpush1.msra.mxu0 %v200
    %319 = vmatprep.subr.mxu0 0.0
    %320 = vmatpush1.msra.mxu0 %v201
    %321 = vmatprep.subr.mxu0 0.0
    %322 = vmatpush1.msra.mxu0 %v202
    %323 = vmatprep.subr.mxu0 0.0
    %324 = vmatpush1.msra.mxu0 %v203
    %325 = vmatprep.subr.mxu0 0.0
    %326 = vmatpush1.msra.mxu0 %v204
    %327 = vmatprep.subr.mxu0 0.0
    %328 = vmatpush1.msra.mxu0 %v205
    %329 = vmatprep.subr.mxu0 0.0
    %330 = vmatpush1.msra.mxu0 0.0
    %331 = vmatprep.subr.mxu0 0.0
    %332 = vmatpush1.msra.mxu0 0.0
    %333 = vmatprep.subr.mxu0 0.0
    %334 = vmatpush1.msra.mxu0 0.0
    %335 = vmatprep.subr.mxu0 0.0
    %336 = vmatpush1.msra.mxu0 0.0
    %337 = vmatprep.subr.mxu0 0.0
    %338 = vmatpush1.msra.mxu0 0.0
    %339 = vmatprep.subr.mxu0 0.0
    %340 = vmatpush1.msra.mxu0 0.0
    %341 = vmatprep.subr.mxu0 0.0
    %342 = vmatpush1.msra.mxu0 0.0
    %343 = vmatprep.subr.mxu0 0.0
    %344 = vmatpush1.msra.mxu0 0.0
    %345 = vmatprep.subr.mxu0 0.0
    %346 = vmatpush1.msra.mxu0 0.0
    %347 = vmatprep.subr.mxu0 0.0
    %348 = vmatpush1.msra.mxu0 0.0
    %349 = vmatprep.subr.mxu0 0.0
    %350 = vmatpush1.msra.mxu0 0.0
    %351 = vmatprep.subr.mxu0 0.0
    %352 = vmatpush1.msra.mxu0 0.0
    %353 = vmatprep.subr.mxu0 0.0
    %354 = vmatpush1.msra.mxu0 0.0
    %355 = vmatprep.subr.mxu0 0.0
    %356 = vmatpush1.msra.mxu0 0.0
    %357 = vmatprep.subr.mxu0 0.0
    %358 = vmatpush1.msra.mxu0 0.0
    %359 = vmatprep.subr.mxu0 0.0
    %360 = vmatpush1.msra.mxu0 0.0
    %361 = vmatprep.mubr.f32.mxu0 0.0
    %362 = vmatmul.mubr.f32.gmra.mrb[0].mxu0 %v178
    %v363 = vpop.f32.mrb[0].mxu0
    %v364 = vadd.f32 %v289, %v363
    %v365 = vpop.f32.mrb[0].mxu0
    %366 = vmatprep.mubr.f32.mxu0 0.0
    %367 = vmatmul.mubr.f32.gmra.mrb[0].mxu0 %v183
    %v368 = vpop.f32.mrb[0].mxu0
    %v369 = vadd.f32 %v294, %v368
    %v370 = vpop.f32.mrb[0].mxu0
    %371 = vdwg.mxu0
    %v372 = vld [vmem:[%s6] sm:$0xff]
    %v373 = vld [vmem:[%s6 + $0x8] sm:$0xff]
    %v374 = vld [vmem:[%s6 + $0x10] sm:$0xff]
    %v375 = vld [vmem:[%s6 + $0x18] sm:$0xff]
    %v376 = vld [vmem:[%s6 + $0x20] sm:$0xff]
    %v377 = vld [vmem:[%s6 + $0x28] sm:$0xff]
    %v378 = vld [vmem:[%s6 + $0x30] sm:$0xff]
    %v379 = vld [vmem:[%s6 + $0x38] sm:$0xff]
    %v380 = vld [vmem:[%s6 + $0x40] sm:$0xff]
    %v381 = vld [vmem:[%s6 + $0x48] sm:$0xff]
    %v382 = vld [vmem:[%s6 + $0x50] sm:$0xff]
    %v383 = vld [vmem:[%s6 + $0x58] sm:$0xff]
    %v384 = vld [vmem:[%s6 + $0x60] sm:$0xff]
    %v385 = vld [vmem:[%s6 + $0x68] sm:$0xff]
    %v386 = vld [vmem:[%s6 + $0x70] sm:$0xff]
    %v387 = vld [vmem:[%s6 + $0x78] sm:$0xff]
    %388 = vmatprep.subr.mxu0 0.0
    %389 = vmatpush1.msra.mxu0 %v372
    %390 = vmatprep.subr.mxu0 0.0
    %391 = vmatpush1.msra.mxu0 %v373
    %392 = vmatprep.subr.mxu0 0.0
    %393 = vmatpush1.msra.mxu0 %v374
    %394 = vmatprep.subr.mxu0 0.0
    %395 = vmatpush1.msra.mxu0 %v375
    %396 = vmatprep.subr.mxu0 0.0
    %397 = vmatpush1.msra.mxu0 %v376
    %398 = vmatprep.subr.mxu0 0.0
    %399 = vmatpush1.msra.mxu0 %v377
    %400 = vmatprep.subr.mxu0 0.0
    %401 = vmatpush1.msra.mxu0 %v378
    %402 = vmatprep.subr.mxu0 0.0
    %403 = vmatpush1.msra.mxu0 %v379
    %404 = vmatprep.subr.mxu0 0.0
    %405 = vmatpush1.msra.mxu0 %v380
    %406 = vmatprep.subr.mxu0 0.0
    %407 = vmatpush1.msra.mxu0 %v381
    %408 = vmatprep.subr.mxu0 0.0
    %409 = vmatpush1.msra.mxu0 %v382
    %410 = vmatprep.subr.mxu0 0.0
    %411 = vmatpush1.msra.mxu0 %v383
    %412 = vmatprep.subr.mxu0 0.0
    %413 = vmatpush1.msra.mxu0 %v384
    %414 = vmatprep.subr.mxu0 0.0
    %415 = vmatpush1.msra.mxu0 %v385
    %416 = vmatprep.subr.mxu0 0.0
    %417 = vmatpush1.msra.mxu0 %v386
    %418 = vmatprep.subr.mxu0 0.0
    %419 = vmatpush1.msra.mxu0 %v387
    %420 = vmatprep.subr.mxu0 0.0
    %421 = vmatpush1.msra.mxu0 0.0
    %422 = vmatprep.subr.mxu0 0.0
    %423 = vmatpush1.msra.mxu0 0.0
    %424 = vmatprep.subr.mxu0 0.0
    %425 = vmatpush1.msra.mxu0 0.0
    %426 = vmatprep.subr.mxu0 0.0
    %427 = vmatpush1.msra.mxu0 0.0
    %428 = vmatprep.subr.mxu0 0.0
    %429 = vmatpush1.msra.mxu0 0.0
    %430 = vmatprep.subr.mxu0 0.0
    %431 = vmatpush1.msra.mxu0 0.0
    %432 = vmatprep.subr.mxu0 0.0
    %433 = vmatpush1.msra.mxu0 0.0
    %434 = vmatprep.subr.mxu0 0.0
    %435 = vmatpush1.msra.mxu0 0.0
    %436 = vmatprep.subr.mxu0 0.0
    %437 = vmatpush1.msra.mxu0 0.0
    %438 = vmatprep.subr.mxu0 0.0
    %439 = vmatpush1.msra.mxu0 0.0
    %440 = vmatprep.subr.mxu0 0.0
    %441 = vmatpush1.msra.mxu0 0.0
    %442 = vmatprep.subr.mxu0 0.0
    %443 = vmatpush1.msra.mxu0 0.0
    %444 = vmatprep.subr.mxu0 0.0
    %445 = vmatpush1.msra.mxu0 0.0
    %446 = vmatprep.subr.mxu0 0.0
    %447 = vmatpush1.msra.mxu0 0.0
    %448 = vmatprep.subr.mxu0 0.0
    %449 = vmatpush1.msra.mxu0 0.0
    %450 = vmatprep.subr.mxu0 0.0
    %451 = vmatpush1.msra.mxu0 0.0
    %452 = vmatprep.mubr.f32.mxu0 0.0
    %453 = vmatmul.mubr.f32.gmra.mrb[0].mxu0 %v364
    %v454 = vpop.f32.mrb[0].mxu0
    %v455 = vadd.f32 0.0, %v454
    %v456 = vpop.f32.mrb[0].mxu0
    %457 = vmatprep.mubr.f32.mxu0 0.0
    %458 = vmatmul.mubr.f32.gmra.mrb[0].mxu0 %v369
    %v459 = vpop.f32.mrb[0].mxu0
    %v460 = vadd.f32 0.0, %v459
    %v461 = vpop.f32.mrb[0].mxu0
    %462 = vdwg.mxu0
    %v463 = vld [vmem:[%s7] sm:$0xff]
    %v464 = vld [vmem:[%s7 + $0x8] sm:$0xff]
    %v465 = vld [vmem:[%s7 + $0x10] sm:$0xff]
    %v466 = vld [vmem:[%s7 + $0x18] sm:$0xff]
    %v467 = vld [vmem:[%s7 + $0x20] sm:$0xff]
    %v468 = vld [vmem:[%s7 + $0x28] sm:$0xff]
    %v469 = vld [vmem:[%s7 + $0x30] sm:$0xff]
    %v470 = vld [vmem:[%s7 + $0x38] sm:$0xff]
    %v471 = vld [vmem:[%s7 + $0x40] sm:$0xff]
    %v472 = vld [vmem:[%s7 + $0x48] sm:$0xff]
    %v473 = vld [vmem:[%s7 + $0x50] sm:$0xff]
    %v474 = vld [vmem:[%s7 + $0x58] sm:$0xff]
    %v475 = vld [vmem:[%s7 + $0x60] sm:$0xff]
    %v476 = vld [vmem:[%s7 + $0x68] sm:$0xff]
    %v477 = vld [vmem:[%s7 + $0x70] sm:$0xff]
    %v478 = vld [vmem:[%s7 + $0x78] sm:$0xff]
    %479 = vmatprep.subr.mxu0 0.0
    %480 = vmatpush1.msra.mxu0 %v463
    %481 = vmatprep.subr.mxu0 0.0
    %482 = vmatpush1.msra.mxu0 %v464
    %483 = vmatprep.subr.mxu0 0.0
    %484 = vmatpush1.msra.mxu0 %v465
    %485 = vmatprep.subr.mxu0 0.0
    %486 = vmatpush1.msra.mxu0 %v466
    %487 = vmatprep.subr.mxu0 0.0
    %488 = vmatpush1.msra.mxu0 %v467
    %489 = vmatprep.subr.mxu0 0.0
    %490 = vmatpush1.msra.mxu0 %v468
    %491 = vmatprep.subr.mxu0 0.0
    %492 = vmatpush1.msra.mxu0 %v469
    %493 = vmatprep.subr.mxu0 0.0
    %494 = vmatpush1.msra.mxu0 %v470
    %495 = vmatprep.subr.mxu0 0.0
    %496 = vmatpush1.msra.mxu0 %v471
    %497 = vmatprep.subr.mxu0 0.0
    %498 = vmatpush1.msra.mxu0 %v472
    %499 = vmatprep.subr.mxu0 0.0
    %500 = vmatpush1.msra.mxu0 %v473
    %501 = vmatprep.subr.mxu0 0.0
    %502 = vmatpush1.msra.mxu0 %v474
    %503 = vmatprep.subr.mxu0 0.0
    %504 = vmatpush1.msra.mxu0 %v475
    %505 = vmatprep.subr.mxu0 0.0
    %506 = vmatpush1.msra.mxu0 %v476
    %507 = vmatprep.subr.mxu0 0.0
    %508 = vmatpush1.msra.mxu0 %v477
    %509 = vmatprep.subr.mxu0 0.0
    %510 = vmatpush1.msra.mxu0 %v478
    %511 = vmatprep.subr.mxu0 0.0
    %512 = vmatpush1.msra.mxu0 0.0
    %513 = vmatprep.subr.mxu0 0.0
    %514 = vmatpush1.msra.mxu0 0.0
    %515 = vmatprep.subr.mxu0 0.0
    %516 = vmatpush1.msra.mxu0 0.0
    %517 = vmatprep.subr.mxu0 0.0
    %518 = vmatpush1.msra.mxu0 0.0
    %519 = vmatprep.subr.mxu0 0.0
    %520 = vmatpush1.msra.mxu0 0.0
    %521 = vmatprep.subr.mxu0 0.0
    %522 = vmatpush1.msra.mxu0 0.0
    %523 = vmatprep.subr.mxu0 0.0
    %524 = vmatpush1.msra.mxu0 0.0
    %525 = vmatprep.subr.mxu0 0.0
    %526 = vmatpush1.msra.mxu0 0.0
    %527 = vmatprep.subr.mxu0 0.0
    %528 = vmatpush1.msra.mxu0 0.0
    %529 = vmatprep.subr.mxu0 0.0
    %530 = vmatpush1.msra.mxu0 0.0
    %531 = vmatprep.subr.mxu0 0.0
    %532 = vmatpush1.msra.mxu0 0.0
    %533 = vmatprep.subr.mxu0 0.0
    %534 = vmatpush1.msra.mxu0 0.0
    %535 = vmatprep.subr.mxu0 0.0
    %536 = vmatpush1.msra.mxu0 0.0
    %537 = vmatprep.subr.mxu0 0.0
    %538 = vmatpush1.msra.mxu0 0.0
    %539 = vmatprep.subr.mxu0 0.0
    %540 = vmatpush1.msra.mxu0 0.0
    %541 = vmatprep.subr.mxu0 0.0
    %542 = vmatpush1.msra.mxu0 0.0
    %543 = vmatprep.mubr.f32.mxu0 0.0
    %544 = vmatmul.mubr.f32.gmra.mrb[0].mxu0 %v178
    %v545 = vpop.f32.mrb[0].mxu0
    %v546 = vadd.f32 0.0, %v545
    %v547 = vpop.f32.mrb[0].mxu0
    %548 = vmatprep.mubr.f32.mxu0 0.0
    %549 = vmatmul.mubr.f32.gmra.mrb[0].mxu0 %v183
    %v550 = vpop.f32.mrb[0].mxu0
    %v551 = vadd.f32 0.0, %v550
    %v552 = vpop.f32.mrb[0].mxu0
    %553 = vdwg.mxu0
    %v554 = vld [vmem:[%s8] sm:$0xff]
    %v555 = vld [vmem:[%s8 + $0x8] sm:$0xff]
    %v556 = vld [vmem:[%s8 + $0x10] sm:$0xff]
    %v557 = vld [vmem:[%s8 + $0x18] sm:$0xff]
    %v558 = vld [vmem:[%s8 + $0x20] sm:$0xff]
    %v559 = vld [vmem:[%s8 + $0x28] sm:$0xff]
    %v560 = vld [vmem:[%s8 + $0x30] sm:$0xff]
    %v561 = vld [vmem:[%s8 + $0x38] sm:$0xff]
    %vm562 = vcmask 523264
    %v564 = vsel %vm562, %v455, 0
    %v567 = vsel %vm562, %v460, 0
    %569 = vmatprep.subr.mxu0 0.0
    %570 = vmatpush1.msra.mxu0 %v554
    %571 = vmatprep.subr.mxu0 0.0
    %572 = vmatpush1.msra.mxu0 %v555
    %573 = vmatprep.subr.mxu0 0.0
    %574 = vmatpush1.msra.mxu0 %v556
    %575 = vmatprep.subr.mxu0 0.0
    %576 = vmatpush1.msra.mxu0 %v557
    %577 = vmatprep.subr.mxu0 0.0
    %578 = vmatpush1.msra.mxu0 %v558
    %579 = vmatprep.subr.mxu0 0.0
    %580 = vmatpush1.msra.mxu0 %v559
    %581 = vmatprep.subr.mxu0 0.0
    %582 = vmatpush1.msra.mxu0 %v560
    %583 = vmatprep.subr.mxu0 0.0
    %584 = vmatpush1.msra.mxu0 %v561
    %585 = vmatprep.subr.mxu0 0.0
    %586 = vmatpush1.msra.mxu0 0.0
    %587 = vmatprep.subr.mxu0 0.0
    %588 = vmatpush1.msra.mxu0 0.0
    %589 = vmatprep.subr.mxu0 0.0
    %590 = vmatpush1.msra.mxu0 0.0
    %591 = vmatprep.subr.mxu0 0.0
    %592 = vmatpush1.msra.mxu0 0.0
    %593 = vmatprep.subr.mxu0 0.0
    %594 = vmatpush1.msra.mxu0 0.0
    %595 = vmatprep.subr.mxu0 0.0
    %596 = vmatpush1.msra.mxu0 0.0
    %597 = vmatprep.subr.mxu0 0.0
    %598 = vmatpush1.msra.mxu0 0.0
    %599 = vmatprep.subr.mxu0 0.0
    %600 = vmatpush1.msra.mxu0 0.0
    %601 = vmatprep.subr.mxu0 0.0
    %602 = vmatpush1.msra.mxu0 0.0
    %603 = vmatprep.subr.mxu0 0.0
    %604 = vmatpush1.msra.mxu0 0.0
    %605 = vmatprep.subr.mxu0 0.0
    %606 = vmatpush1.msra.mxu0 0.0
    %607 = vmatprep.subr.mxu0 0.0
    %608 = vmatpush1.msra.mxu0 0.0
    %609 = vmatprep.subr.mxu0 0.0
    %610 = vmatpush1.msra.mxu0 0.0
    %611 = vmatprep.subr.mxu0 0.0
    %612 = vmatpush1.msra.mxu0 0.0
    %613 = vmatprep.subr.mxu0 0.0
    %614 = vmatpush1.msra.mxu0 0.0
    %615 = vmatprep.subr.mxu0 0.0
    %616 = vmatpush1.msra.mxu0 0.0
    %617 = vmatprep.subr.mxu0 0.0
    %618 = vmatpush1.msra.mxu0 0.0
    %619 = vmatprep.subr.mxu0 0.0
    %620 = vmatpush1.msra.mxu0 0.0
    %621 = vmatprep.subr.mxu0 0.0
    %622 = vmatpush1.msra.mxu0 0.0
    %623 = vmatprep.subr.mxu0 0.0
    %624 = vmatpush1.msra.mxu0 0.0
    %625 = vmatprep.subr.mxu0 0.0
    %626 = vmatpush1.msra.mxu0 0.0
    %627 = vmatprep.subr.mxu0 0.0
    %628 = vmatpush1.msra.mxu0 0.0
    %629 = vmatprep.subr.mxu0 0.0
    %630 = vmatpush1.msra.mxu0 0.0
    %631 = vmatprep.subr.mxu0 0.0
    %632 = vmatpush1.msra.mxu0 0.0
    %633 = vmatprep.mubr.f32.mxu0 0.0
    %634 = vmatmul.mubr.f32.gmra.mrb[0].mxu0 %v564
    %v635 = vpop.f32.mrb[0].mxu0
    %v636 = vadd.f32 0.0, %v635
    %v637 = vpop.f32.mrb[0].mxu0
    %638 = vmatprep.mubr.f32.mxu0 0.0
    %639 = vmatmul.mubr.f32.gmra.mrb[0].mxu0 %v567
    %v640 = vpop.f32.mrb[0].mxu0
    %v641 = vadd.f32 0.0, %v640
    %v642 = vpop.f32.mrb[0].mxu0
    %643 = vdwg.mxu0
    %v644 = vld [vmem:[%s9] sm:$0xff]
    %v645 = vld [vmem:[%s9 + $0x8] sm:$0xff]
    %v646 = vld [vmem:[%s9 + $0x10] sm:$0xff]
    %v647 = vld [vmem:[%s9 + $0x18] sm:$0xff]
    %v648 = vld [vmem:[%s9 + $0x20] sm:$0xff]
    %v649 = vld [vmem:[%s9 + $0x28] sm:$0xff]
    %v650 = vld [vmem:[%s9 + $0x30] sm:$0xff]
    %v651 = vld [vmem:[%s9 + $0x38] sm:$0xff]
    %652 = vmatprep.subr.mxu0 0.0
    %653 = vmatpush1.msra.mxu0 %v644
    %654 = vmatprep.subr.mxu0 0.0
    %655 = vmatpush1.msra.mxu0 %v645
    %656 = vmatprep.subr.mxu0 0.0
    %657 = vmatpush1.msra.mxu0 %v646
    %658 = vmatprep.subr.mxu0 0.0
    %659 = vmatpush1.msra.mxu0 %v647
    %660 = vmatprep.subr.mxu0 0.0
    %661 = vmatpush1.msra.mxu0 %v648
    %662 = vmatprep.subr.mxu0 0.0
    %663 = vmatpush1.msra.mxu0 %v649
    %664 = vmatprep.subr.mxu0 0.0
    %665 = vmatpush1.msra.mxu0 %v650
    %666 = vmatprep.subr.mxu0 0.0
    %667 = vmatpush1.msra.mxu0 %v651
    %668 = vmatprep.subr.mxu0 0.0
    %669 = vmatpush1.msra.mxu0 0.0
    %670 = vmatprep.subr.mxu0 0.0
    %671 = vmatpush1.msra.mxu0 0.0
    %672 = vmatprep.subr.mxu0 0.0
    %673 = vmatpush1.msra.mxu0 0.0
    %674 = vmatprep.subr.mxu0 0.0
    %675 = vmatpush1.msra.mxu0 0.0
    %676 = vmatprep.subr.mxu0 0.0
    %677 = vmatpush1.msra.mxu0 0.0
    %678 = vmatprep.subr.mxu0 0.0
    %679 = vmatpush1.msra.mxu0 0.0
    %680 = vmatprep.subr.mxu0 0.0
    %681 = vmatpush1.msra.mxu0 0.0
    %682 = vmatprep.subr.mxu0 0.0
    %683 = vmatpush1.msra.mxu0 0.0
    %684 = vmatprep.subr.mxu0 0.0
    %685 = vmatpush1.msra.mxu0 0.0
    %686 = vmatprep.subr.mxu0 0.0
    %687 = vmatpush1.msra.mxu0 0.0
    %688 = vmatprep.subr.mxu0 0.0
    %689 = vmatpush1.msra.mxu0 0.0
    %690 = vmatprep.subr.mxu0 0.0
    %691 = vmatpush1.msra.mxu0 0.0
    %692 = vmatprep.subr.mxu0 0.0
    %693 = vmatpush1.msra.mxu0 0.0
    %694 = vmatprep.subr.mxu0 0.0
    %695 = vmatpush1.msra.mxu0 0.0
    %696 = vmatprep.subr.mxu0 0.0
    %697 = vmatpush1.msra.mxu0 0.0
    %698 = vmatprep.subr.mxu0 0.0
    %699 = vmatpush1.msra.mxu0 0.0
    %700 = vmatprep.subr.mxu0 0.0
    %701 = vmatpush1.msra.mxu0 0.0
    %702 = vmatprep.subr.mxu0 0.0
    %703 = vmatpush1.msra.mxu0 0.0
    %704 = vmatprep.subr.mxu0 0.0
    %705 = vmatpush1.msra.mxu0 0.0
    %706 = vmatprep.subr.mxu0 0.0
    %707 = vmatpush1.msra.mxu0 0.0
    %708 = vmatprep.subr.mxu0 0.0
    %709 = vmatpush1.msra.mxu0 0.0
    %710 = vmatprep.subr.mxu0 0.0
    %711 = vmatpush1.msra.mxu0 0.0
    %712 = vmatprep.subr.mxu0 0.0
    %713 = vmatpush1.msra.mxu0 0.0
    %714 = vmatprep.subr.mxu0 0.0
    %715 = vmatpush1.msra.mxu0 0.0
    %716 = vmatprep.mubr.f32.mxu0 0.0
    %717 = vmatmul.mubr.f32.gmra.mrb[0].mxu0 %v564
    %v718 = vpop.f32.mrb[0].mxu0
    %v719 = vadd.f32 0.0, %v718
    %v720 = vpop.f32.mrb[0].mxu0
    %721 = vmatprep.mubr.f32.mxu0 0.0
    %722 = vmatmul.mubr.f32.gmra.mrb[0].mxu0 %v567
    %v723 = vpop.f32.mrb[0].mxu0
    %v724 = vadd.f32 0.0, %v723
    %v725 = vpop.f32.mrb[0].mxu0
    %726 = vdwg.mxu0
    %vm727 = vcmask 261120
    %v729 = vsel %vm727, %v546, 0
    %v732 = vsel %vm727, %v551, 0
    %v735 = vsel %vm727, %v636, 0
    %v738 = vsel %vm727, %v641, 0
    %740 = vmatprep.subr.mxu0 0.0
    %741 = vmatpush1.xpose.msra.mxu0 %v735
    %742 = vmatprep.subr.mxu0 0.0
    %743 = vmatpush1.xpose.msra.mxu0 %v738
    %744 = vmatprep.subr.mxu0 0.0
    %745 = vmatpush1.xpose.msra.mxu0 0.0
    %746 = vmatprep.subr.mxu0 0.0
    %747 = vmatpush1.xpose.msra.mxu0 0.0
    %748 = vmatprep.subr.mxu0 0.0
    %749 = vmatpush1.xpose.msra.mxu0 0.0
    %750 = vmatprep.subr.mxu0 0.0
    %751 = vmatpush1.xpose.msra.mxu0 0.0
    %752 = vmatprep.subr.mxu0 0.0
    %753 = vmatpush1.xpose.msra.mxu0 0.0
    %754 = vmatprep.subr.mxu0 0.0
    %755 = vmatpush1.xpose.msra.mxu0 0.0
    %756 = vmatprep.subr.mxu0 0.0
    %757 = vmatpush1.xpose.msra.mxu0 0.0
    %758 = vmatprep.subr.mxu0 0.0
    %759 = vmatpush1.xpose.msra.mxu0 0.0
    %760 = vmatprep.subr.mxu0 0.0
    %761 = vmatpush1.xpose.msra.mxu0 0.0
    %762 = vmatprep.subr.mxu0 0.0
    %763 = vmatpush1.xpose.msra.mxu0 0.0
    %764 = vmatprep.subr.mxu0 0.0
    %765 = vmatpush1.xpose.msra.mxu0 0.0
    %766 = vmatprep.subr.mxu0 0.0
    %767 = vmatpush1.xpose.msra.mxu0 0.0
    %768 = vmatprep.subr.mxu0 0.0
    %769 = vmatpush1.xpose.msra.mxu0 0.0
    %770 = vmatprep.subr.mxu0 0.0
    %771 = vmatpush1.xpose.msra.mxu0 0.0
    %772 = vmatprep.subr.mxu0 0.0
    %773 = vmatpush1.xpose.msra.mxu0 0.0
    %774 = vmatprep.subr.mxu0 0.0
    %775 = vmatpush1.xpose.msra.mxu0 0.0
    %776 = vmatprep.subr.mxu0 0.0
    %777 = vmatpush1.xpose.msra.mxu0 0.0
    %778 = vmatprep.subr.mxu0 0.0
    %779 = vmatpush1.xpose.msra.mxu0 0.0
    %780 = vmatprep.subr.mxu0 0.0
    %781 = vmatpush1.xpose.msra.mxu0 0.0
    %782 = vmatprep.subr.mxu0 0.0
    %783 = vmatpush1.xpose.msra.mxu0 0.0
    %784 = vmatprep.subr.mxu0 0.0
    %785 = vmatpush1.xpose.msra.mxu0 0.0
    %786 = vmatprep.subr.mxu0 0.0
    %787 = vmatpush1.xpose.msra.mxu0 0.0
    %788 = vmatprep.subr.mxu0 0.0
    %789 = vmatpush1.xpose.msra.mxu0 0.0
    %790 = vmatprep.subr.mxu0 0.0
    %791 = vmatpush1.xpose.msra.mxu0 0.0
    %792 = vmatprep.subr.mxu0 0.0
    %793 = vmatpush1.xpose.msra.mxu0 0.0
    %794 = vmatprep.subr.mxu0 0.0
    %795 = vmatpush1.xpose.msra.mxu0 0.0
    %796 = vmatprep.subr.mxu0 0.0
    %797 = vmatpush1.xpose.msra.mxu0 0.0
    %798 = vmatprep.subr.mxu0 0.0
    %799 = vmatpush1.xpose.msra.mxu0 0.0
    %800 = vmatprep.subr.mxu0 0.0
    %801 = vmatpush1.xpose.msra.mxu0 0.0
    %802 = vmatprep.subr.mxu0 0.0
    %803 = vmatpush1.xpose.msra.mxu0 0.0
    %804 = vmatprep.mubr.f32.mxu0 0.0
    %805 = vmatmul.mubr.f32.gmra.mrb[0].mxu0 %v729
    %v806 = vpop.f32.mrb[0].mxu0
    %v807 = vadd.f32 0.0, %v806
    %v808 = vpop.f32.mrb[0].mxu0
    %809 = vmatprep.mubr.f32.mxu0 0.0
    %810 = vmatmul.mubr.f32.gmra.mrb[0].mxu0 %v732
    %v811 = vpop.f32.mrb[0].mxu0
    %v812 = vadd.f32 0.0, %v811
    %v813 = vpop.f32.mrb[0].mxu0
    %814 = vdwg.mxu0
    %v815 = vmul.f32 %v807, 0.088388346
    %v816 = vmul.f32 %v812, 0.088388346
    %v817 = vmul.f32 %v815, %v186
    %v818 = vmul.f32 %v816, %v187
    %v819 = vadd.f32 %v817, %v188
    %v820 = vadd.f32 %v818, %v189
    %vm821 = vcmask 130048
    %v822 = vsel %vm821, %v819, -inf
    %823 = vmax.xlane.f32.xlu0 %v822
    %v824 = vpop.xlane.xlu0 %823
    %v825 = vsel %vm821, %v820, -inf
    %826 = vmax.xlane.f32.xlu0 %v825
    %v827 = vpop.xlane.xlu0 %826
    %v828 = vsub.f32 %v819, %v824
    %v829 = vsub.f32 %v820, %v827
    %v830 = vmul.f32 %v828, 1.442695
    %v831 = vpow.pop %v830
    %v832 = vmul.f32 %v829, 1.442695
    %v833 = vpow.pop %v832
    %v834 = vsel %vm821, %v831, 0.0
    %835 = vadd.xlane.f32.xlu0 %v834
    %v836 = vpop.xlane.xlu0 %835
    %v837 = vsel %vm821, %v833, 0.0
    %838 = vadd.xlane.f32.xlu0 %v837
    %v839 = vpop.xlane.xlu0 %838
    %v840 = vrcp.pop %v836
    %v841 = vmul.f32 %v831, %v840
    %v842 = vrcp.pop %v839
    %v843 = vmul.f32 %v833, %v842
    %v845 = vsel %vm821, %v841, 0
    %v848 = vsel %vm821, %v843, 0
    %850 = vmatprep.subr.mxu0 0.0
    %851 = vmatpush1.msra.mxu0 %v719
    %852 = vmatprep.subr.mxu0 0.0
    %853 = vmatpush1.msra.mxu0 %v724
    %854 = vmatprep.subr.mxu0 0.0
    %855 = vmatpush1.msra.mxu0 0.0
    %856 = vmatprep.subr.mxu0 0.0
    %857 = vmatpush1.msra.mxu0 0.0
    %858 = vmatprep.subr.mxu0 0.0
    %859 = vmatpush1.msra.mxu0 0.0
    %860 = vmatprep.subr.mxu0 0.0
    %861 = vmatpush1.msra.mxu0 0.0
    %862 = vmatprep.subr.mxu0 0.0
    %863 = vmatpush1.msra.mxu0 0.0
    %864 = vmatprep.subr.mxu0 0.0
    %865 = vmatpush1.msra.mxu0 0.0
    %866 = vmatprep.subr.mxu0 0.0
    %867 = vmatpush1.msra.mxu0 0.0
    %868 = vmatprep.subr.mxu0 0.0
    %869 = vmatpush1.msra.mxu0 0.0
    %870 = vmatprep.subr.mxu0 0.0
    %871 = vmatpush1.msra.mxu0 0.0
    %872 = vmatprep.subr.mxu0 0.0
    %873 = vmatpush1.msra.mxu0 0.0
    %874 = vmatprep.subr.mxu0 0.0
    %875 = vmatpush1.msra.mxu0 0.0
    %876 = vmatprep.subr.mxu0 0.0
    %877 = vmatpush1.msra.mxu0 0.0
    %878 = vmatprep.subr.mxu0 0.0
    %879 = vmatpush1.msra.mxu0 0.0
    %880 = vmatprep.subr.mxu0 0.0
    %881 = vmatpush1.msra.mxu0 0.0
    %882 = vmatprep.subr.mxu0 0.0
    %883 = vmatpush1.msra.mxu0 0.0
    %884 = vmatprep.subr.mxu0 0.0
    %885 = vmatpush1.msra.mxu0 0.0
    %886 = vmatprep.subr.mxu0 0.0
    %887 = vmatpush1.msra.mxu0 0.0
    %888 = vmatprep.subr.mxu0 0.0
    %889 = vmatpush1.msra.mxu0 0.0
    %890 = vmatprep.subr.mxu0 0.0
    %891 = vmatpush1.msra.mxu0 0.0
    %892 = vmatprep.subr.mxu0 0.0
    %893 = vmatpush1.msra.mxu0 0.0
    %894 = vmatprep.subr.mxu0 0.0
    %895 = vmatpush1.msra.mxu0 0.0
    %896 = vmatprep.subr.mxu0 0.0
    %897 = vmatpush1.msra.mxu0 0.0
    %898 = vmatprep.subr.mxu0 0.0
    %899 = vmatpush1.msra.mxu0 0.0
    %900 = vmatprep.subr.mxu0 0.0
    %901 = vmatpush1.msra.mxu0 0.0
    %902 = vmatprep.subr.mxu0 0.0
    %903 = vmatpush1.msra.mxu0 0.0
    %904 = vmatprep.subr.mxu0 0.0
    %905 = vmatpush1.msra.mxu0 0.0
    %906 = vmatprep.subr.mxu0 0.0
    %907 = vmatpush1.msra.mxu0 0.0
    %908 = vmatprep.subr.mxu0 0.0
    %909 = vmatpush1.msra.mxu0 0.0
    %910 = vmatprep.subr.mxu0 0.0
    %911 = vmatpush1.msra.mxu0 0.0
    %912 = vmatprep.subr.mxu0 0.0
    %913 = vmatpush1.msra.mxu0 0.0
    %914 = vmatprep.mubr.f32.mxu0 0.0
    %915 = vmatmul.mubr.f32.gmra.mrb[0].mxu0 %v845
    %v916 = vpop.f32.mrb[0].mxu0
    %v917 = vadd.f32 0.0, %v916
    %v918 = vpop.f32.mrb[0].mxu0
    %919 = vmatprep.mubr.f32.mxu0 0.0
    %920 = vmatmul.mubr.f32.gmra.mrb[0].mxu0 %v848
    %v921 = vpop.f32.mrb[0].mxu0
    %v922 = vadd.f32 0.0, %v921
    %v923 = vpop.f32.mrb[0].mxu0
    %924 = vdwg.mxu0
    %v925 = vld [vmem:[%s10] sm:$0xff]
    %v926 = vld [vmem:[%s10 + $0x8] sm:$0xff]
    %v927 = vld [vmem:[%s10 + $0x10] sm:$0xff]
    %v928 = vld [vmem:[%s10 + $0x18] sm:$0xff]
    %s929 = scalar_lea.vmem %s7, 128
    %v930 = vld [vmem:[%s929] sm:$0xff]
    %v931 = vld [vmem:[%s929 + $0x8] sm:$0xff]
    %v932 = vld [vmem:[%s929 + $0x10] sm:$0xff]
    %v933 = vld [vmem:[%s929 + $0x18] sm:$0xff]
    %v934 = vld [vmem:[%s929 + $0x20] sm:$0xff]
    %v935 = vld [vmem:[%s929 + $0x28] sm:$0xff]
    %v936 = vld [vmem:[%s929 + $0x30] sm:$0xff]
    %v937 = vld [vmem:[%s929 + $0x38] sm:$0xff]
    %v938 = vld [vmem:[%s929 + $0x40] sm:$0xff]
    %v939 = vld [vmem:[%s929 + $0x48] sm:$0xff]
    %v940 = vld [vmem:[%s929 + $0x50] sm:$0xff]
    %v941 = vld [vmem:[%s929 + $0x58] sm:$0xff]
    %v942 = vld [vmem:[%s929 + $0x60] sm:$0xff]
    %v943 = vld [vmem:[%s929 + $0x68] sm:$0xff]
    %v944 = vld [vmem:[%s929 + $0x70] sm:$0xff]
    %v945 = vld [vmem:[%s929 + $0x78] sm:$0xff]
    %946 = vmatprep.subr.mxu0 0.0
    %947 = vmatpush1.msra.mxu0 %v930
    %948 = vmatprep.subr.mxu0 0.0
    %949 = vmatpush1.msra.mxu0 %v931
    %950 = vmatprep.subr.mxu0 0.0
    %951 = vmatpush1.msra.mxu0 %v932
    %952 = vmatprep.subr.mxu0 0.0
    %953 = vmatpush1.msra.mxu0 %v933
    %954 = vmatprep.subr.mxu0 0.0
    %955 = vmatpush1.msra.mxu0 %v934
    %956 = vmatprep.subr.mxu0 0.0
    %957 = vmatpush1.msra.mxu0 %v935
    %958 = vmatprep.subr.mxu0 0.0
    %959 = vmatpush1.msra.mxu0 %v936
    %960 = vmatprep.subr.mxu0 0.0
    %961 = vmatpush1.msra.mxu0 %v937
    %962 = vmatprep.subr.mxu0 0.0
    %963 = vmatpush1.msra.mxu0 %v938
    %964 = vmatprep.subr.mxu0 0.0
    %965 = vmatpush1.msra.mxu0 %v939
    %966 = vmatprep.subr.mxu0 0.0
    %967 = vmatpush1.msra.mxu0 %v940
    %968 = vmatprep.subr.mxu0 0.0
    %969 = vmatpush1.msra.mxu0 %v941
    %970 = vmatprep.subr.mxu0 0.0
    %971 = vmatpush1.msra.mxu0 %v942
    %972 = vmatprep.subr.mxu0 0.0
    %973 = vmatpush1.msra.mxu0 %v943
    %974 = vmatprep.subr.mxu0 0.0
    %975 = vmatpush1.msra.mxu0 %v944
    %976 = vmatprep.subr.mxu0 0.0
    %977 = vmatpush1.msra.mxu0 %v945
    %978 = vmatprep.subr.mxu0 0.0
    %979 = vmatpush1.msra.mxu0 0.0
    %980 = vmatprep.subr.mxu0 0.0
    %981 = vmatpush1.msra.mxu0 0.0
    %982 = vmatprep.subr.mxu0 0.0
    %983 = vmatpush1.msra.mxu0 0.0
    %984 = vmatprep.subr.mxu0 0.0
    %985 = vmatpush1.msra.mxu0 0.0
    %986 = vmatprep.subr.mxu0 0.0
    %987 = vmatpush1.msra.mxu0 0.0
    %988 = vmatprep.subr.mxu0 0.0
    %989 = vmatpush1.msra.mxu0 0.0
    %990 = vmatprep.subr.mxu0 0.0
    %991 = vmatpush1.msra.mxu0 0.0
    %992 = vmatprep.subr.mxu0 0.0
    %993 = vmatpush1.msra.mxu0 0.0
    %994 = vmatprep.subr.mxu0 0.0
    %995 = vmatpush1.msra.mxu0 0.0
    %996 = vmatprep.subr.mxu0 0.0
    %997 = vmatpush1.msra.mxu0 0.0
    %998 = vmatprep.subr.mxu0 0.0
    %999 = vmatpush1.msra.mxu0 0.0
    %1000 = vmatprep.subr.mxu0 0.0
    %1001 = vmatpush1.msra.mxu0 0.0
    %1002 = vmatprep.subr.mxu0 0.0
    %1003 = vmatpush1.msra.mxu0 0.0
    %1004 = vmatprep.subr.mxu0 0.0
    %1005 = vmatpush1.msra.mxu0 0.0
    %1006 = vmatprep.subr.mxu0 0.0
    %1007 = vmatpush1.msra.mxu0 0.0
    %1008 = vmatprep.subr.mxu0 0.0
    %1009 = vmatpush1.msra.mxu0 0.0
    %1010 = vmatprep.mubr.f32.mxu0 0.0
    %1011 = vmatmul.mubr.f32.gmra.mrb[0].mxu0 %v178
    %v1012 = vpop.f32.mrb[0].mxu0
    %v1013 = vadd.f32 0.0, %v1012
    %v1014 = vpop.f32.mrb[0].mxu0
    %1015 = vmatprep.mubr.f32.mxu0 0.0
    %1016 = vmatmul.mubr.f32.gmra.mrb[0].mxu0 %v183
    %v1017 = vpop.f32.mrb[0].mxu0
    %v1018 = vadd.f32 0.0, %v1017
    %v1019 = vpop.f32.mrb[0].mxu0
    %1020 = vdwg.mxu0
    %s1021 = scalar_lea.vmem %s8, 64
    %v1022 = vld [vmem:[%s1021] sm:$0xff]
    %v1023 = vld [vmem:[%s1021 + $0x8] sm:$0xff]
    %v1024 = vld [vmem:[%s1021 + $0x10] sm:$0xff]
    %v1025 = vld [vmem:[%s1021 + $0x18] sm:$0xff]
    %v1026 = vld [vmem:[%s1021 + $0x20] sm:$0xff]
    %v1027 = vld [vmem:[%s1021 + $0x28] sm:$0xff]
    %v1028 = vld [vmem:[%s1021 + $0x30] sm:$0xff]
    %v1029 = vld [vmem:[%s1021 + $0x38] sm:$0xff]
    %1030 = vmatprep.subr.mxu0 0.0
    %1031 = vmatpush1.msra.mxu0 %v1022
    %1032 = vmatprep.subr.mxu0 0.0
    %1033 = vmatpush1.msra.mxu0 %v1023
    %1034 = vmatprep.subr.mxu0 0.0
    %1035 = vmatpush1.msra.mxu0 %v1024
    %1036 = vmatprep.subr.mxu0 0.0
    %1037 = vmatpush1.msra.mxu0 %v1025
    %1038 = vmatprep.subr.mxu0 0.0
    %1039 = vmatpush1.msra.mxu0 %v1026
    %1040 = vmatprep.subr.mxu0 0.0
    %1041 = vmatpush1.msra.mxu0 %v1027
    %1042 = vmatprep.subr.mxu0 0.0
    %1043 = vmatpush1.msra.mxu0 %v1028
    %1044 = vmatprep.subr.mxu0 0.0
    %1045 = vmatpush1.msra.mxu0 %v1029
    %1046 = vmatprep.subr.mxu0 0.0
    %1047 = vmatpush1.msra.mxu0 0.0
    %1048 = vmatprep.subr.mxu0 0.0
    %1049 = vmatpush1.msra.mxu0 0.0
    %1050 = vmatprep.subr.mxu0 0.0
    %1051 = vmatpush1.msra.mxu0 0.0
    %1052 = vmatprep.subr.mxu0 0.0
    %1053 = vmatpush1.msra.mxu0 0.0
    %1054 = vmatprep.subr.mxu0 0.0
    %1055 = vmatpush1.msra.mxu0 0.0
    %1056 = vmatprep.subr.mxu0 0.0
    %1057 = vmatpush1.msra.mxu0 0.0
    %1058 = vmatprep.subr.mxu0 0.0
    %1059 = vmatpush1.msra.mxu0 0.0
    %1060 = vmatprep.subr.mxu0 0.0
    %1061 = vmatpush1.msra.mxu0 0.0
    %1062 = vmatprep.subr.mxu0 0.0
    %1063 = vmatpush1.msra.mxu0 0.0
    %1064 = vmatprep.subr.mxu0 0.0
    %1065 = vmatpush1.msra.mxu0 0.0
    %1066 = vmatprep.subr.mxu0 0.0
    %1067 = vmatpush1.msra.mxu0 0.0
    %1068 = vmatprep.subr.mxu0 0.0
    %1069 = vmatpush1.msra.mxu0 0.0
    %1070 = vmatprep.subr.mxu0 0.0
    %1071 = vmatpush1.msra.mxu0 0.0
    %1072 = vmatprep.subr.mxu0 0.0
    %1073 = vmatpush1.msra.mxu0 0.0
    %1074 = vmatprep.subr.mxu0 0.0
    %1075 = vmatpush1.msra.mxu0 0.0
    %1076 = vmatprep.subr.mxu0 0.0
    %1077 = vmatpush1.msra.mxu0 0.0
    %1078 = vmatprep.subr.mxu0 0.0
    %1079 = vmatpush1.msra.mxu0 0.0
    %1080 = vmatprep.subr.mxu0 0.0
    %1081 = vmatpush1.msra.mxu0 0.0
    %1082 = vmatprep.subr.mxu0 0.0
    %1083 = vmatpush1.msra.mxu0 0.0
    %1084 = vmatprep.subr.mxu0 0.0
    %1085 = vmatpush1.msra.mxu0 0.0
    %1086 = vmatprep.subr.mxu0 0.0
    %1087 = vmatpush1.msra.mxu0 0.0
    %1088 = vmatprep.subr.mxu0 0.0
    %1089 = vmatpush1.msra.mxu0 0.0
    %1090 = vmatprep.subr.mxu0 0.0
    %1091 = vmatpush1.msra.mxu0 0.0
    %1092 = vmatprep.subr.mxu0 0.0
    %1093 = vmatpush1.msra.mxu0 0.0
    %1094 = vmatprep.mubr.f32.mxu0 0.0
    %1095 = vmatmul.mubr.f32.gmra.mrb[0].mxu0 %v564
    %v1096 = vpop.f32.mrb[0].mxu0
    %v1097 = vadd.f32 0.0, %v1096
    %v1098 = vpop.f32.mrb[0].mxu0
    %1099 = vmatprep.mubr.f32.mxu0 0.0
    %1100 = vmatmul.mubr.f32.gmra.mrb[0].mxu0 %v567
    %v1101 = vpop.f32.mrb[0].mxu0
    %v1102 = vadd.f32 0.0, %v1101
    %v1103 = vpop.f32.mrb[0].mxu0
    %1104 = vdwg.mxu0
    %s1105 = scalar_lea.vmem %s9, 64
    %v1106 = vld [vmem:[%s1105] sm:$0xff]
    %v1107 = vld [vmem:[%s1105 + $0x8] sm:$0xff]
    %v1108 = vld [vmem:[%s1105 + $0x10] sm:$0xff]
    %v1109 = vld [vmem:[%s1105 + $0x18] sm:$0xff]
    %v1110 = vld [vmem:[%s1105 + $0x20] sm:$0xff]
    %v1111 = vld [vmem:[%s1105 + $0x28] sm:$0xff]
    %v1112 = vld [vmem:[%s1105 + $0x30] sm:$0xff]
    %v1113 = vld [vmem:[%s1105 + $0x38] sm:$0xff]
    %1114 = vmatprep.subr.mxu0 0.0
    %1115 = vmatpush1.msra.mxu0 %v1106
    %1116 = vmatprep.subr.mxu0 0.0
    %1117 = vmatpush1.msra.mxu0 %v1107
    %1118 = vmatprep.subr.mxu0 0.0
    %1119 = vmatpush1.msra.mxu0 %v1108
    %1120 = vmatprep.subr.mxu0 0.0
    %1121 = vmatpush1.msra.mxu0 %v1109
    %1122 = vmatprep.subr.mxu0 0.0
    %1123 = vmatpush1.msra.mxu0 %v1110
    %1124 = vmatprep.subr.mxu0 0.0
    %1125 = vmatpush1.msra.mxu0 %v1111
    %1126 = vmatprep.subr.mxu0 0.0
    %1127 = vmatpush1.msra.mxu0 %v1112
    %1128 = vmatprep.subr.mxu0 0.0
    %1129 = vmatpush1.msra.mxu0 %v1113
    %1130 = vmatprep.subr.mxu0 0.0
    %1131 = vmatpush1.msra.mxu0 0.0
    %1132 = vmatprep.subr.mxu0 0.0
    %1133 = vmatpush1.msra.mxu0 0.0
    %1134 = vmatprep.subr.mxu0 0.0
    %1135 = vmatpush1.msra.mxu0 0.0
    %1136 = vmatprep.subr.mxu0 0.0
    %1137 = vmatpush1.msra.mxu0 0.0
    %1138 = vmatprep.subr.mxu0 0.0
    %1139 = vmatpush1.msra.mxu0 0.0
    %1140 = vmatprep.subr.mxu0 0.0
    %1141 = vmatpush1.msra.mxu0 0.0
    %1142 = vmatprep.subr.mxu0 0.0
    %1143 = vmatpush1.msra.mxu0 0.0
    %1144 = vmatprep.subr.mxu0 0.0
    %1145 = vmatpush1.msra.mxu0 0.0
    %1146 = vmatprep.subr.mxu0 0.0
    %1147 = vmatpush1.msra.mxu0 0.0
    %1148 = vmatprep.subr.mxu0 0.0
    %1149 = vmatpush1.msra.mxu0 0.0
    %1150 = vmatprep.subr.mxu0 0.0
    %1151 = vmatpush1.msra.mxu0 0.0
    %1152 = vmatprep.subr.mxu0 0.0
    %1153 = vmatpush1.msra.mxu0 0.0
    %1154 = vmatprep.subr.mxu0 0.0
    %1155 = vmatpush1.msra.mxu0 0.0
    %1156 = vmatprep.subr.mxu0 0.0
    %1157 = vmatpush1.msra.mxu0 0.0
    %1158 = vmatprep.subr.mxu0 0.0
    %1159 = vmatpush1.msra.mxu0 0.0
    %1160 = vmatprep.subr.mxu0 0.0
    %1161 = vmatpush1.msra.mxu0 0.0
    %1162 = vmatprep.subr.mxu0 0.0
    %1163 = vmatpush1.msra.mxu0 0.0
    %1164 = vmatprep.subr.mxu0 0.0
    %1165 = vmatpush1.msra.mxu0 0.0
    %1166 = vmatprep.subr.mxu0 0.0
    %1167 = vmatpush1.msra.mxu0 0.0
    %1168 = vmatprep.subr.mxu0 0.0
    %1169 = vmatpush1.msra.mxu0 0.0
    %1170 = vmatprep.subr.mxu0 0.0
    %1171 = vmatpush1.msra.mxu0 0.0
    %1172 = vmatprep.subr.mxu0 0.0
    %1173 = vmatpush1.msra.mxu0 0.0
    %1174 = vmatprep.subr.mxu0 0.0
    %1175 = vmatpush1.msra.mxu0 0.0
    %1176 = vmatprep.subr.mxu0 0.0
    %1177 = vmatpush1.msra.mxu0 0.0
    %1178 = vmatprep.mubr.f32.mxu0 0.0
    %1179 = vmatmul.mubr.f32.gmra.mrb[0].mxu0 %v564
    %v1180 = vpop.f32.mrb[0].mxu0
    %v1181 = vadd.f32 0.0, %v1180
    %v1182 = vpop.f32.mrb[0].mxu0
    %1183 = vmatprep.mubr.f32.mxu0 0.0
    %1184 = vmatmul.mubr.f32.gmra.mrb[0].mxu0 %v567
    %v1185 = vpop.f32.mrb[0].mxu0
    %v1186 = vadd.f32 0.0, %v1185
    %v1187 = vpop.f32.mrb[0].mxu0
    %1188 = vdwg.mxu0
    %v1190 = vsel %vm727, %v1013, 0
    %v1193 = vsel %vm727, %v1018, 0
    %v1196 = vsel %vm727, %v1097, 0
    %v1199 = vsel %vm727, %v1102, 0
    %1201 = vmatprep.subr.mxu0 0.0
    %1202 = vmatpush1.xpose.msra.mxu0 %v1196
    %1203 = vmatprep.subr.mxu0 0.0
    %1204 = vmatpush1.xpose.msra.mxu0 %v1199
    %1205 = vmatprep.subr.mxu0 0.0
    %1206 = vmatpush1.xpose.msra.mxu0 0.0
    %1207 = vmatprep.subr.mxu0 0.0
    %1208 = vmatpush1.xpose.msra.mxu0 0.0
    %1209 = vmatprep.subr.mxu0 0.0
    %1210 = vmatpush1.xpose.msra.mxu0 0.0
    %1211 = vmatprep.subr.mxu0 0.0
    %1212 = vmatpush1.xpose.msra.mxu0 0.0
    %1213 = vmatprep.subr.mxu0 0.0
    %1214 = vmatpush1.xpose.msra.mxu0 0.0
    %1215 = vmatprep.subr.mxu0 0.0
    %1216 = vmatpush1.xpose.msra.mxu0 0.0
    %1217 = vmatprep.subr.mxu0 0.0
    %1218 = vmatpush1.xpose.msra.mxu0 0.0
    %1219 = vmatprep.subr.mxu0 0.0
    %1220 = vmatpush1.xpose.msra.mxu0 0.0
    %1221 = vmatprep.subr.mxu0 0.0
    %1222 = vmatpush1.xpose.msra.mxu0 0.0
    %1223 = vmatprep.subr.mxu0 0.0
    %1224 = vmatpush1.xpose.msra.mxu0 0.0
    %1225 = vmatprep.subr.mxu0 0.0
    %1226 = vmatpush1.xpose.msra.mxu0 0.0
    %1227 = vmatprep.subr.mxu0 0.0
    %1228 = vmatpush1.xpose.msra.mxu0 0.0
    %1229 = vmatprep.subr.mxu0 0.0
    %1230 = vmatpush1.xpose.msra.mxu0 0.0
    %1231 = vmatprep.subr.mxu0 0.0
    %1232 = vmatpush1.xpose.msra.mxu0 0.0
    %1233 = vmatprep.subr.mxu0 0.0
    %1234 = vmatpush1.xpose.msra.mxu0 0.0
    %1235 = vmatprep.subr.mxu0 0.0
    %1236 = vmatpush1.xpose.msra.mxu0 0.0
    %1237 = vmatprep.subr.mxu0 0.0
    %1238 = vmatpush1.xpose.msra.mxu0 0.0
    %1239 = vmatprep.subr.mxu0 0.0
    %1240 = vmatpush1.xpose.msra.mxu0 0.0
    %1241 = vmatprep.subr.mxu0 0.0
    %1242 = vmatpush1.xpose.msra.mxu0 0.0
    %1243 = vmatprep.subr.mxu0 0.0
    %1244 = vmatpush1.xpose.msra.mxu0 0.0
    %1245 = vmatprep.subr.mxu0 0.0
    %1246 = vmatpush1.xpose.msra.mxu0 0.0
    %1247 = vmatprep.subr.mxu0 0.0
    %1248 = vmatpush1.xpose.msra.mxu0 0.0
    %1249 = vmatprep.subr.mxu0 0.0
    %1250 = vmatpush1.xpose.msra.mxu0 0.0
    %1251 = vmatprep.subr.mxu0 0.0
    %1252 = vmatpush1.xpose.msra.mxu0 0.0
    %1253 = vmatprep.subr.mxu0 0.0
    %1254 = vmatpush1.xpose.msra.mxu0 0.0
    %1255 = vmatprep.subr.mxu0 0.0
    %1256 = vmatpush1.xpose.msra.mxu0 0.0
    %1257 = vmatprep.subr.mxu0 0.0
    %1258 = vmatpush1.xpose.msra.mxu0 0.0
    %1259 = vmatprep.subr.mxu0 0.0
    %1260 = vmatpush1.xpose.msra.mxu0 0.0
    %1261 = vmatprep.subr.mxu0 0.0
    %1262 = vmatpush1.xpose.msra.mxu0 0.0
    %1263 = vmatprep.subr.mxu0 0.0
    %1264 = vmatpush1.xpose.msra.mxu0 0.0
    %1265 = vmatprep.mubr.f32.mxu0 0.0
    %1266 = vmatmul.mubr.f32.gmra.mrb[0].mxu0 %v1190
    %v1267 = vpop.f32.mrb[0].mxu0
    %v1268 = vadd.f32 0.0, %v1267
    %v1269 = vpop.f32.mrb[0].mxu0
    %1270 = vmatprep.mubr.f32.mxu0 0.0
    %1271 = vmatmul.mubr.f32.gmra.mrb[0].mxu0 %v1193
    %v1272 = vpop.f32.mrb[0].mxu0
    %v1273 = vadd.f32 0.0, %v1272
    %v1274 = vpop.f32.mrb[0].mxu0
    %1275 = vdwg.mxu0
    %v1276 = vmul.f32 %v1268, 0.088388346
    %v1277 = vmul.f32 %v1273, 0.088388346
    %v1278 = vmul.f32 %v1276, %v186
    %v1279 = vmul.f32 %v1277, %v187
    %v1280 = vadd.f32 %v1278, %v188
    %v1281 = vadd.f32 %v1279, %v189
    %v1282 = vsel %vm821, %v1280, -inf
    %1283 = vmax.xlane.f32.xlu0 %v1282
    %v1284 = vpop.xlane.xlu0 %1283
    %v1285 = vsel %vm821, %v1281, -inf
    %1286 = vmax.xlane.f32.xlu0 %v1285
    %v1287 = vpop.xlane.xlu0 %1286
    %v1288 = vsub.f32 %v1280, %v1284
    %v1289 = vsub.f32 %v1281, %v1287
    %v1290 = vmul.f32 %v1288, 1.442695
    %v1291 = vpow.pop %v1290
    %v1292 = vmul.f32 %v1289, 1.442695
    %v1293 = vpow.pop %v1292
    %v1294 = vsel %vm821, %v1291, 0.0
    %1295 = vadd.xlane.f32.xlu0 %v1294
    %v1296 = vpop.xlane.xlu0 %1295
    %v1297 = vsel %vm821, %v1293, 0.0
    %1298 = vadd.xlane.f32.xlu0 %v1297
    %v1299 = vpop.xlane.xlu0 %1298
    %v1300 = vrcp.pop %v1296
    %v1301 = vmul.f32 %v1291, %v1300
    %v1302 = vrcp.pop %v1299
    %v1303 = vmul.f32 %v1293, %v1302
    %v1305 = vsel %vm821, %v1301, 0
    %v1308 = vsel %vm821, %v1303, 0
    %1310 = vmatprep.subr.mxu0 0.0
    %1311 = vmatpush1.msra.mxu0 %v1181
    %1312 = vmatprep.subr.mxu0 0.0
    %1313 = vmatpush1.msra.mxu0 %v1186
    %1314 = vmatprep.subr.mxu0 0.0
    %1315 = vmatpush1.msra.mxu0 0.0
    %1316 = vmatprep.subr.mxu0 0.0
    %1317 = vmatpush1.msra.mxu0 0.0
    %1318 = vmatprep.subr.mxu0 0.0
    %1319 = vmatpush1.msra.mxu0 0.0
    %1320 = vmatprep.subr.mxu0 0.0
    %1321 = vmatpush1.msra.mxu0 0.0
    %1322 = vmatprep.subr.mxu0 0.0
    %1323 = vmatpush1.msra.mxu0 0.0
    %1324 = vmatprep.subr.mxu0 0.0
    %1325 = vmatpush1.msra.mxu0 0.0
    %1326 = vmatprep.subr.mxu0 0.0
    %1327 = vmatpush1.msra.mxu0 0.0
    %1328 = vmatprep.subr.mxu0 0.0
    %1329 = vmatpush1.msra.mxu0 0.0
    %1330 = vmatprep.subr.mxu0 0.0
    %1331 = vmatpush1.msra.mxu0 0.0
    %1332 = vmatprep.subr.mxu0 0.0
    %1333 = vmatpush1.msra.mxu0 0.0
    %1334 = vmatprep.subr.mxu0 0.0
    %1335 = vmatpush1.msra.mxu0 0.0
    %1336 = vmatprep.subr.mxu0 0.0
    %1337 = vmatpush1.msra.mxu0 0.0
    %1338 = vmatprep.subr.mxu0 0.0
    %1339 = vmatpush1.msra.mxu0 0.0
    %1340 = vmatprep.subr.mxu0 0.0
    %1341 = vmatpush1.msra.mxu0 0.0
    %1342 = vmatprep.subr.mxu0 0.0
    %1343 = vmatpush1.msra.mxu0 0.0
    %1344 = vmatprep.subr.mxu0 0.0
    %1345 = vmatpush1.msra.mxu0 0.0
    %1346 = vmatprep.subr.mxu0 0.0
    %1347 = vmatpush1.msra.mxu0 0.0
    %1348 = vmatprep.subr.mxu0 0.0
    %1349 = vmatpush1.msra.mxu0 0.0
    %1350 = vmatprep.subr.mxu0 0.0
    %1351 = vmatpush1.msra.mxu0 0.0
    %1352 = vmatprep.subr.mxu0 0.0
    %1353 = vmatpush1.msra.mxu0 0.0
    %1354 = vmatprep.subr.mxu0 0.0
    %1355 = vmatpush1.msra.mxu0 0.0
    %1356 = vmatprep.subr.mxu0 0.0
    %1357 = vmatpush1.msra.mxu0 0.0
    %1358 = vmatprep.subr.mxu0 0.0
    %1359 = vmatpush1.msra.mxu0 0.0
    %1360 = vmatprep.subr.mxu0 0.0
    %1361 = vmatpush1.msra.mxu0 0.0
    %1362 = vmatprep.subr.mxu0 0.0
    %1363 = vmatpush1.msra.mxu0 0.0
    %1364 = vmatprep.subr.mxu0 0.0
    %1365 = vmatpush1.msra.mxu0 0.0
    %1366 = vmatprep.subr.mxu0 0.0
    %1367 = vmatpush1.msra.mxu0 0.0
    %1368 = vmatprep.subr.mxu0 0.0
    %1369 = vmatpush1.msra.mxu0 0.0
    %1370 = vmatprep.subr.mxu0 0.0
    %1371 = vmatpush1.msra.mxu0 0.0
    %1372 = vmatprep.subr.mxu0 0.0
    %1373 = vmatpush1.msra.mxu0 0.0
    %1374 = vmatprep.mubr.f32.mxu0 0.0
    %1375 = vmatmul.mubr.f32.gmra.mrb[0].mxu0 %v1305
    %v1376 = vpop.f32.mrb[0].mxu0
    %v1377 = vadd.f32 0.0, %v1376
    %v1378 = vpop.f32.mrb[0].mxu0
    %1379 = vmatprep.mubr.f32.mxu0 0.0
    %1380 = vmatmul.mubr.f32.gmra.mrb[0].mxu0 %v1308
    %v1381 = vpop.f32.mrb[0].mxu0
    %v1382 = vadd.f32 0.0, %v1381
    %v1383 = vpop.f32.mrb[0].mxu0
    %1384 = vdwg.mxu0
    %s1385 = scalar_lea.vmem %s10, 32
    %v1386 = vld [vmem:[%s1385] sm:$0xff]
    %v1387 = vld [vmem:[%s1385 + $0x8] sm:$0xff]
    %v1388 = vld [vmem:[%s1385 + $0x10] sm:$0xff]
    %v1389 = vld [vmem:[%s1385 + $0x18] sm:$0xff]
    %v1391 = vsel %vm727, %v1377, 0
    %v1394 = vsel %vm727, %v1382, 0
    %1396 = vmatprep.subr.mxu0 0.0
    %1397 = vmatpush1.msra.mxu0 %v1386
    %1398 = vmatprep.subr.mxu0 0.0
    %1399 = vmatpush1.msra.mxu0 %v1387
    %1400 = vmatprep.subr.mxu0 0.0
    %1401 = vmatpush1.msra.mxu0 %v1388
    %1402 = vmatprep.subr.mxu0 0.0
    %1403 = vmatpush1.msra.mxu0 %v1389
    %1404 = vmatprep.subr.mxu0 0.0
    %1405 = vmatpush1.msra.mxu0 0.0
    %1406 = vmatprep.subr.mxu0 0.0
    %1407 = vmatpush1.msra.mxu0 0.0
    %1408 = vmatprep.subr.mxu0 0.0
    %1409 = vmatpush1.msra.mxu0 0.0
    %1410 = vmatprep.subr.mxu0 0.0
    %1411 = vmatpush1.msra.mxu0 0.0
    %1412 = vmatprep.subr.mxu0 0.0
    %1413 = vmatpush1.msra.mxu0 0.0
    %1414 = vmatprep.subr.mxu0 0.0
    %1415 = vmatpush1.msra.mxu0 0.0
    %1416 = vmatprep.subr.mxu0 0.0
    %1417 = vmatpush1.msra.mxu0 0.0
    %1418 = vmatprep.subr.mxu0 0.0
    %1419 = vmatpush1.msra.mxu0 0.0
    %1420 = vmatprep.subr.mxu0 0.0
    %1421 = vmatpush1.msra.mxu0 0.0
    %1422 = vmatprep.subr.mxu0 0.0
    %1423 = vmatpush1.msra.mxu0 0.0
    %1424 = vmatprep.subr.mxu0 0.0
    %1425 = vmatpush1.msra.mxu0 0.0
    %1426 = vmatprep.subr.mxu0 0.0
    %1427 = vmatpush1.msra.mxu0 0.0
    %1428 = vmatprep.subr.mxu0 0.0
    %1429 = vmatpush1.msra.mxu0 0.0
    %1430 = vmatprep.subr.mxu0 0.0
    %1431 = vmatpush1.msra.mxu0 0.0
    %1432 = vmatprep.subr.mxu0 0.0
    %1433 = vmatpush1.msra.mxu0 0.0
    %1434 = vmatprep.subr.mxu0 0.0
    %1435 = vmatpush1.msra.mxu0 0.0
    %1436 = vmatprep.subr.mxu0 0.0
    %1437 = vmatpush1.msra.mxu0 0.0
    %1438 = vmatprep.subr.mxu0 0.0
    %1439 = vmatpush1.msra.mxu0 0.0
    %1440 = vmatprep.subr.mxu0 0.0
    %1441 = vmatpush1.msra.mxu0 0.0
    %1442 = vmatprep.subr.mxu0 0.0
    %1443 = vmatpush1.msra.mxu0 0.0
    %1444 = vmatprep.subr.mxu0 0.0
    %1445 = vmatpush1.msra.mxu0 0.0
    %1446 = vmatprep.subr.mxu0 0.0
    %1447 = vmatpush1.msra.mxu0 0.0
    %1448 = vmatprep.subr.mxu0 0.0
    %1449 = vmatpush1.msra.mxu0 0.0
    %1450 = vmatprep.subr.mxu0 0.0
    %1451 = vmatpush1.msra.mxu0 0.0
    %1452 = vmatprep.subr.mxu0 0.0
    %1453 = vmatpush1.msra.mxu0 0.0
    %1454 = vmatprep.subr.mxu0 0.0
    %1455 = vmatpush1.msra.mxu0 0.0
    %1456 = vmatprep.subr.mxu0 0.0
    %1457 = vmatpush1.msra.mxu0 0.0
    %1458 = vmatprep.subr.mxu0 0.0
    %1459 = vmatpush1.msra.mxu0 0.0
    %1460 = vmatprep.mubr.f32.mxu0 0.0
    %1461 = vmatmul.mubr.f32.gmra.mrb[0].mxu0 %v1391
    %v1462 = vpop.f32.mrb[0].mxu0
    %v1463 = vadd.f32 0.0, %v1462
    %v1464 = vpop.f32.mrb[0].mxu0
    %1465 = vmatprep.mubr.f32.mxu0 0.0
    %1466 = vmatmul.mubr.f32.gmra.mrb[0].mxu0 %v1394
    %v1467 = vpop.f32.mrb[0].mxu0
    %v1468 = vadd.f32 0.0, %v1467
    %v1469 = vpop.f32.mrb[0].mxu0
    %1470 = vdwg.mxu0
    %v1472 = vsel %vm727, %v917, 0
    %v1475 = vsel %vm727, %v922, 0
    %1477 = vmatprep.subr.mxu0 0.0
    %1478 = vmatpush1.msra.mxu0 %v925
    %1479 = vmatprep.subr.mxu0 0.0
    %1480 = vmatpush1.msra.mxu0 %v926
    %1481 = vmatprep.subr.mxu0 0.0
    %1482 = vmatpush1.msra.mxu0 %v927
    %1483 = vmatprep.subr.mxu0 0.0
    %1484 = vmatpush1.msra.mxu0 %v928
    %1485 = vmatprep.subr.mxu0 0.0
    %1486 = vmatpush1.msra.mxu0 0.0
    %1487 = vmatprep.subr.mxu0 0.0
    %1488 = vmatpush1.msra.mxu0 0.0
    %1489 = vmatprep.subr.mxu0 0.0
    %1490 = vmatpush1.msra.mxu0 0.0
    %1491 = vmatprep.subr.mxu0 0.0
    %1492 = vmatpush1.msra.mxu0 0.0
    %1493 = vmatprep.subr.mxu0 0.0
    %1494 = vmatpush1.msra.mxu0 0.0
    %1495 = vmatprep.subr.mxu0 0.0
    %1496 = vmatpush1.msra.mxu0 0.0
    %1497 = vmatprep.subr.mxu0 0.0
    %1498 = vmatpush1.msra.mxu0 0.0
    %1499 = vmatprep.subr.mxu0 0.0
    %1500 = vmatpush1.msra.mxu0 0.0
    %1501 = vmatprep.subr.mxu0 0.0
    %1502 = vmatpush1.msra.mxu0 0.0
    %1503 = vmatprep.subr.mxu0 0.0
    %1504 = vmatpush1.msra.mxu0 0.0
    %1505 = vmatprep.subr.mxu0 0.0
    %1506 = vmatpush1.msra.mxu0 0.0
    %1507 = vmatprep.subr.mxu0 0.0
    %1508 = vmatpush1.msra.mxu0 0.0
    %1509 = vmatprep.subr.mxu0 0.0
    %1510 = vmatpush1.msra.mxu0 0.0
    %1511 = vmatprep.subr.mxu0 0.0
    %1512 = vmatpush1.msra.mxu0 0.0
    %1513 = vmatprep.subr.mxu0 0.0
    %1514 = vmatpush1.msra.mxu0 0.0
    %1515 = vmatprep.subr.mxu0 0.0
    %1516 = vmatpush1.msra.mxu0 0.0
    %1517 = vmatprep.subr.mxu0 0.0
    %1518 = vmatpush1.msra.mxu0 0.0
    %1519 = vmatprep.subr.mxu0 0.0
    %1520 = vmatpush1.msra.mxu0 0.0
    %1521 = vmatprep.subr.mxu0 0.0
    %1522 = vmatpush1.msra.mxu0 0.0
    %1523 = vmatprep.subr.mxu0 0.0
    %1524 = vmatpush1.msra.mxu0 0.0
    %1525 = vmatprep.subr.mxu0 0.0
    %1526 = vmatpush1.msra.mxu0 0.0
    %1527 = vmatprep.subr.mxu0 0.0
    %1528 = vmatpush1.msra.mxu0 0.0
    %1529 = vmatprep.subr.mxu0 0.0
    %1530 = vmatpush1.msra.mxu0 0.0
    %1531 = vmatprep.subr.mxu0 0.0
    %1532 = vmatpush1.msra.mxu0 0.0
    %1533 = vmatprep.subr.mxu0 0.0
    %1534 = vmatpush1.msra.mxu0 0.0
    %1535 = vmatprep.subr.mxu0 0.0
    %1536 = vmatpush1.msra.mxu0 0.0
    %1537 = vmatprep.subr.mxu0 0.0
    %1538 = vmatpush1.msra.mxu0 0.0
    %1539 = vmatprep.subr.mxu0 0.0
    %1540 = vmatpush1.msra.mxu0 0.0
    %1541 = vmatprep.mubr.f32.mxu0 0.0
    %1542 = vmatmul.mubr.f32.gmra.mrb[0].mxu0 %v1472
    %v1543 = vpop.f32.mrb[0].mxu0
    %v1544 = vadd.f32 %v1463, %v1543
    %v1545 = vpop.f32.mrb[0].mxu0
    %1546 = vmatprep.mubr.f32.mxu0 0.0
    %1547 = vmatmul.mubr.f32.gmra.mrb[0].mxu0 %v1475
    %v1548 = vpop.f32.mrb[0].mxu0
    %v1549 = vadd.f32 %v1468, %v1548
    %v1550 = vpop.f32.mrb[0].mxu0
    %1551 = vdwg.mxu0
    %s1552 = scalar_lea.vmem %s7, 256
    %v1553 = vld [vmem:[%s1552] sm:$0xff]
    %v1554 = vld [vmem:[%s1552 + $0x8] sm:$0xff]
    %v1555 = vld [vmem:[%s1552 + $0x10] sm:$0xff]
    %v1556 = vld [vmem:[%s1552 + $0x18] sm:$0xff]
    %v1557 = vld [vmem:[%s1552 + $0x20] sm:$0xff]
    %v1558 = vld [vmem:[%s1552 + $0x28] sm:$0xff]
    %v1559 = vld [vmem:[%s1552 + $0x30] sm:$0xff]
    %v1560 = vld [vmem:[%s1552 + $0x38] sm:$0xff]
    %v1561 = vld [vmem:[%s1552 + $0x40] sm:$0xff]
    %v1562 = vld [vmem:[%s1552 + $0x48] sm:$0xff]
    %v1563 = vld [vmem:[%s1552 + $0x50] sm:$0xff]
    %v1564 = vld [vmem:[%s1552 + $0x58] sm:$0xff]
    %v1565 = vld [vmem:[%s1552 + $0x60] sm:$0xff]
    %v1566 = vld [vmem:[%s1552 + $0x68] sm:$0xff]
    %v1567 = vld [vmem:[%s1552 + $0x70] sm:$0xff]
    %v1568 = vld [vmem:[%s1552 + $0x78] sm:$0xff]
    %1569 = vmatprep.subr.mxu0 0.0
    %1570 = vmatpush1.msra.mxu0 %v1553
    %1571 = vmatprep.subr.mxu0 0.0
    %1572 = vmatpush1.msra.mxu0 %v1554
    %1573 = vmatprep.subr.mxu0 0.0
    %1574 = vmatpush1.msra.mxu0 %v1555
    %1575 = vmatprep.subr.mxu0 0.0
    %1576 = vmatpush1.msra.mxu0 %v1556
    %1577 = vmatprep.subr.mxu0 0.0
    %1578 = vmatpush1.msra.mxu0 %v1557
    %1579 = vmatprep.subr.mxu0 0.0
    %1580 = vmatpush1.msra.mxu0 %v1558
    %1581 = vmatprep.subr.mxu0 0.0
    %1582 = vmatpush1.msra.mxu0 %v1559
    %1583 = vmatprep.subr.mxu0 0.0
    %1584 = vmatpush1.msra.mxu0 %v1560
    %1585 = vmatprep.subr.mxu0 0.0
    %1586 = vmatpush1.msra.mxu0 %v1561
    %1587 = vmatprep.subr.mxu0 0.0
    %1588 = vmatpush1.msra.mxu0 %v1562
    %1589 = vmatprep.subr.mxu0 0.0
    %1590 = vmatpush1.msra.mxu0 %v1563
    %1591 = vmatprep.subr.mxu0 0.0
    %1592 = vmatpush1.msra.mxu0 %v1564
    %1593 = vmatprep.subr.mxu0 0.0
    %1594 = vmatpush1.msra.mxu0 %v1565
    %1595 = vmatprep.subr.mxu0 0.0
    %1596 = vmatpush1.msra.mxu0 %v1566
    %1597 = vmatprep.subr.mxu0 0.0
    %1598 = vmatpush1.msra.mxu0 %v1567
    %1599 = vmatprep.subr.mxu0 0.0
    %1600 = vmatpush1.msra.mxu0 %v1568
    %1601 = vmatprep.subr.mxu0 0.0
    %1602 = vmatpush1.msra.mxu0 0.0
    %1603 = vmatprep.subr.mxu0 0.0
    %1604 = vmatpush1.msra.mxu0 0.0
    %1605 = vmatprep.subr.mxu0 0.0
    %1606 = vmatpush1.msra.mxu0 0.0
    %1607 = vmatprep.subr.mxu0 0.0
    %1608 = vmatpush1.msra.mxu0 0.0
    %1609 = vmatprep.subr.mxu0 0.0
    %1610 = vmatpush1.msra.mxu0 0.0
    %1611 = vmatprep.subr.mxu0 0.0
    %1612 = vmatpush1.msra.mxu0 0.0
    %1613 = vmatprep.subr.mxu0 0.0
    %1614 = vmatpush1.msra.mxu0 0.0
    %1615 = vmatprep.subr.mxu0 0.0
    %1616 = vmatpush1.msra.mxu0 0.0
    %1617 = vmatprep.subr.mxu0 0.0
    %1618 = vmatpush1.msra.mxu0 0.0
    %1619 = vmatprep.subr.mxu0 0.0
    %1620 = vmatpush1.msra.mxu0 0.0
    %1621 = vmatprep.subr.mxu0 0.0
    %1622 = vmatpush1.msra.mxu0 0.0
    %1623 = vmatprep.subr.mxu0 0.0
    %1624 = vmatpush1.msra.mxu0 0.0
    %1625 = vmatprep.subr.mxu0 0.0
    %1626 = vmatpush1.msra.mxu0 0.0
    %1627 = vmatprep.subr.mxu0 0.0
    %1628 = vmatpush1.msra.mxu0 0.0
    %1629 = vmatprep.subr.mxu0 0.0
    %1630 = vmatpush1.msra.mxu0 0.0
    %1631 = vmatprep.subr.mxu0 0.0
    %1632 = vmatpush1.msra.mxu0 0.0
    %1633 = vmatprep.mubr.f32.mxu0 0.0
    %1634 = vmatmul.mubr.f32.gmra.mrb[0].mxu0 %v178
    %v1635 = vpop.f32.mrb[0].mxu0
    %v1636 = vadd.f32 0.0, %v1635
    %v1637 = vpop.f32.mrb[0].mxu0
    %1638 = vmatprep.mubr.f32.mxu0 0.0
    %1639 = vmatmul.mubr.f32.gmra.mrb[0].mxu0 %v183
    %v1640 = vpop.f32.mrb[0].mxu0
    %v1641 = vadd.f32 0.0, %v1640
    %v1642 = vpop.f32.mrb[0].mxu0
    %1643 = vdwg.mxu0
    %s1644 = scalar_lea.vmem %s8, 128
    %v1645 = vld [vmem:[%s1644] sm:$0xff]
    %v1646 = vld [vmem:[%s1644 + $0x8] sm:$0xff]
    %v1647 = vld [vmem:[%s1644 + $0x10] sm:$0xff]
    %v1648 = vld [vmem:[%s1644 + $0x18] sm:$0xff]
    %v1649 = vld [vmem:[%s1644 + $0x20] sm:$0xff]
    %v1650 = vld [vmem:[%s1644 + $0x28] sm:$0xff]
    %v1651 = vld [vmem:[%s1644 + $0x30] sm:$0xff]
    %v1652 = vld [vmem:[%s1644 + $0x38] sm:$0xff]
    %1653 = vmatprep.subr.mxu0 0.0
    %1654 = vmatpush1.msra.mxu0 %v1645
    %1655 = vmatprep.subr.mxu0 0.0
    %1656 = vmatpush1.msra.mxu0 %v1646
    %1657 = vmatprep.subr.mxu0 0.0
    %1658 = vmatpush1.msra.mxu0 %v1647
    %1659 = vmatprep.subr.mxu0 0.0
    %1660 = vmatpush1.msra.mxu0 %v1648
    %1661 = vmatprep.subr.mxu0 0.0
    %1662 = vmatpush1.msra.mxu0 %v1649
    %1663 = vmatprep.subr.mxu0 0.0
    %1664 = vmatpush1.msra.mxu0 %v1650
    %1665 = vmatprep.subr.mxu0 0.0
    %1666 = vmatpush1.msra.mxu0 %v1651
    %1667 = vmatprep.subr.mxu0 0.0
    %1668 = vmatpush1.msra.mxu0 %v1652
    %1669 = vmatprep.subr.mxu0 0.0
    %1670 = vmatpush1.msra.mxu0 0.0
    %1671 = vmatprep.subr.mxu0 0.0
    %1672 = vmatpush1.msra.mxu0 0.0
    %1673 = vmatprep.subr.mxu0 0.0
    %1674 = vmatpush1.msra.mxu0 0.0
    %1675 = vmatprep.subr.mxu0 0.0
    %1676 = vmatpush1.msra.mxu0 0.0
    %1677 = vmatprep.subr.mxu0 0.0
    %1678 = vmatpush1.msra.mxu0 0.0
    %1679 = vmatprep.subr.mxu0 0.0
    %1680 = vmatpush1.msra.mxu0 0.0
    %1681 = vmatprep.subr.mxu0 0.0
    %1682 = vmatpush1.msra.mxu0 0.0
    %1683 = vmatprep.subr.mxu0 0.0
    %1684 = vmatpush1.msra.mxu0 0.0
    %1685 = vmatprep.subr.mxu0 0.0
    %1686 = vmatpush1.msra.mxu0 0.0
    %1687 = vmatprep.subr.mxu0 0.0
    %1688 = vmatpush1.msra.mxu0 0.0
    %1689 = vmatprep.subr.mxu0 0.0
    %1690 = vmatpush1.msra.mxu0 0.0
    %1691 = vmatprep.subr.mxu0 0.0
    %1692 = vmatpush1.msra.mxu0 0.0
    %1693 = vmatprep.subr.mxu0 0.0
    %1694 = vmatpush1.msra.mxu0 0.0
    %1695 = vmatprep.subr.mxu0 0.0
    %1696 = vmatpush1.msra.mxu0 0.0
    %1697 = vmatprep.subr.mxu0 0.0
    %1698 = vmatpush1.msra.mxu0 0.0
    %1699 = vmatprep.subr.mxu0 0.0
    %1700 = vmatpush1.msra.mxu0 0.0
    %1701 = vmatprep.subr.mxu0 0.0
    %1702 = vmatpush1.msra.mxu0 0.0
    %1703 = vmatprep.subr.mxu0 0.0
    %1704 = vmatpush1.msra.mxu0 0.0
    %1705 = vmatprep.subr.mxu0 0.0
    %1706 = vmatpush1.msra.mxu0 0.0
    %1707 = vmatprep.subr.mxu0 0.0
    %1708 = vmatpush1.msra.mxu0 0.0
    %1709 = vmatprep.subr.mxu0 0.0
    %1710 = vmatpush1.msra.mxu0 0.0
    %1711 = vmatprep.subr.mxu0 0.0
    %1712 = vmatpush1.msra.mxu0 0.0
    %1713 = vmatprep.subr.mxu0 0.0
    %1714 = vmatpush1.msra.mxu0 0.0
    %1715 = vmatprep.subr.mxu0 0.0
    %1716 = vmatpush1.msra.mxu0 0.0
    %1717 = vmatprep.mubr.f32.mxu0 0.0
    %1718 = vmatmul.mubr.f32.gmra.mrb[0].mxu0 %v564
    %v1719 = vpop.f32.mrb[0].mxu0
    %v1720 = vadd.f32 0.0, %v1719
    %v1721 = vpop.f32.mrb[0].mxu0
    %1722 = vmatprep.mubr.f32.mxu0 0.0
    %1723 = vmatmul.mubr.f32.gmra.mrb[0].mxu0 %v567
    %v1724 = vpop.f32.mrb[0].mxu0
    %v1725 = vadd.f32 0.0, %v1724
    %v1726 = vpop.f32.mrb[0].mxu0
    %1727 = vdwg.mxu0
    %s1728 = scalar_lea.vmem %s9, 128
    %v1729 = vld [vmem:[%s1728] sm:$0xff]
    %v1730 = vld [vmem:[%s1728 + $0x8] sm:$0xff]
    %v1731 = vld [vmem:[%s1728 + $0x10] sm:$0xff]
    %v1732 = vld [vmem:[%s1728 + $0x18] sm:$0xff]
    %v1733 = vld [vmem:[%s1728 + $0x20] sm:$0xff]
    %v1734 = vld [vmem:[%s1728 + $0x28] sm:$0xff]
    %v1735 = vld [vmem:[%s1728 + $0x30] sm:$0xff]
    %v1736 = vld [vmem:[%s1728 + $0x38] sm:$0xff]
    %1737 = vmatprep.subr.mxu0 0.0
    %1738 = vmatpush1.msra.mxu0 %v1729
    %1739 = vmatprep.subr.mxu0 0.0
    %1740 = vmatpush1.msra.mxu0 %v1730
    %1741 = vmatprep.subr.mxu0 0.0
    %1742 = vmatpush1.msra.mxu0 %v1731
    %1743 = vmatprep.subr.mxu0 0.0
    %1744 = vmatpush1.msra.mxu0 %v1732
    %1745 = vmatprep.subr.mxu0 0.0
    %1746 = vmatpush1.msra.mxu0 %v1733
    %1747 = vmatprep.subr.mxu0 0.0
    %1748 = vmatpush1.msra.mxu0 %v1734
    %1749 = vmatprep.subr.mxu0 0.0
    %1750 = vmatpush1.msra.mxu0 %v1735
    %1751 = vmatprep.subr.mxu0 0.0
    %1752 = vmatpush1.msra.mxu0 %v1736
    %1753 = vmatprep.subr.mxu0 0.0
    %1754 = vmatpush1.msra.mxu0 0.0
    %1755 = vmatprep.subr.mxu0 0.0
    %1756 = vmatpush1.msra.mxu0 0.0
    %1757 = vmatprep.subr.mxu0 0.0
    %1758 = vmatpush1.msra.mxu0 0.0
    %1759 = vmatprep.subr.mxu0 0.0
    %1760 = vmatpush1.msra.mxu0 0.0
    %1761 = vmatprep.subr.mxu0 0.0
    %1762 = vmatpush1.msra.mxu0 0.0
    %1763 = vmatprep.subr.mxu0 0.0
    %1764 = vmatpush1.msra.mxu0 0.0
    %1765 = vmatprep.subr.mxu0 0.0
    %1766 = vmatpush1.msra.mxu0 0.0
    %1767 = vmatprep.subr.mxu0 0.0
    %1768 = vmatpush1.msra.mxu0 0.0
    %1769 = vmatprep.subr.mxu0 0.0
    %1770 = vmatpush1.msra.mxu0 0.0
    %1771 = vmatprep.subr.mxu0 0.0
    %1772 = vmatpush1.msra.mxu0 0.0
    %1773 = vmatprep.subr.mxu0 0.0
    %1774 = vmatpush1.msra.mxu0 0.0
    %1775 = vmatprep.subr.mxu0 0.0
    %1776 = vmatpush1.msra.mxu0 0.0
    %1777 = vmatprep.subr.mxu0 0.0
    %1778 = vmatpush1.msra.mxu0 0.0
    %1779 = vmatprep.subr.mxu0 0.0
    %1780 = vmatpush1.msra.mxu0 0.0
    %1781 = vmatprep.subr.mxu0 0.0
    %1782 = vmatpush1.msra.mxu0 0.0
    %1783 = vmatprep.subr.mxu0 0.0
    %1784 = vmatpush1.msra.mxu0 0.0
    %1785 = vmatprep.subr.mxu0 0.0
    %1786 = vmatpush1.msra.mxu0 0.0
    %1787 = vmatprep.subr.mxu0 0.0
    %1788 = vmatpush1.msra.mxu0 0.0
    %1789 = vmatprep.subr.mxu0 0.0
    %1790 = vmatpush1.msra.mxu0 0.0
    %1791 = vmatprep.subr.mxu0 0.0
    %1792 = vmatpush1.msra.mxu0 0.0
    %1793 = vmatprep.subr.mxu0 0.0
    %1794 = vmatpush1.msra.mxu0 0.0
    %1795 = vmatprep.subr.mxu0 0.0
    %1796 = vmatpush1.msra.mxu0 0.0
    %1797 = vmatprep.subr.mxu0 0.0
    %1798 = vmatpush1.msra.mxu0 0.0
    %1799 = vmatprep.subr.mxu0 0.0
    %1800 = vmatpush1.msra.mxu0 0.0
    %1801 = vmatprep.mubr.f32.mxu0 0.0
    %1802 = vmatmul.mubr.f32.gmra.mrb[0].mxu0 %v564
    %v1803 = vpop.f32.mrb[0].mxu0
    %v1804 = vadd.f32 0.0, %v1803
    %v1805 = vpop.f32.mrb[0].mxu0
    %1806 = vmatprep.mubr.f32.mxu0 0.0
    %1807 = vmatmul.mubr.f32.gmra.mrb[0].mxu0 %v567
    %v1808 = vpop.f32.mrb[0].mxu0
    %v1809 = vadd.f32 0.0, %v1808
    %v1810 = vpop.f32.mrb[0].mxu0
    %1811 = vdwg.mxu0
    %v1813 = vsel %vm727, %v1636, 0
    %v1816 = vsel %vm727, %v1641, 0
    %v1819 = vsel %vm727, %v1720, 0
    %v1822 = vsel %vm727, %v1725, 0
    %1824 = vmatprep.subr.mxu0 0.0
    %1825 = vmatpush1.xpose.msra.mxu0 %v1819
    %1826 = vmatprep.subr.mxu0 0.0
    %1827 = vmatpush1.xpose.msra.mxu0 %v1822
    %1828 = vmatprep.subr.mxu0 0.0
    %1829 = vmatpush1.xpose.msra.mxu0 0.0
    %1830 = vmatprep.subr.mxu0 0.0
    %1831 = vmatpush1.xpose.msra.mxu0 0.0
    %1832 = vmatprep.subr.mxu0 0.0
    %1833 = vmatpush1.xpose.msra.mxu0 0.0
    %1834 = vmatprep.subr.mxu0 0.0
    %1835 = vmatpush1.xpose.msra.mxu0 0.0
    %1836 = vmatprep.subr.mxu0 0.0
    %1837 = vmatpush1.xpose.msra.mxu0 0.0
    %1838 = vmatprep.subr.mxu0 0.0
    %1839 = vmatpush1.xpose.msra.mxu0 0.0
    %1840 = vmatprep.subr.mxu0 0.0
    %1841 = vmatpush1.xpose.msra.mxu0 0.0
    %1842 = vmatprep.subr.mxu0 0.0
    %1843 = vmatpush1.xpose.msra.mxu0 0.0
    %1844 = vmatprep.subr.mxu0 0.0
    %1845 = vmatpush1.xpose.msra.mxu0 0.0
    %1846 = vmatprep.subr.mxu0 0.0
    %1847 = vmatpush1.xpose.msra.mxu0 0.0
    %1848 = vmatprep.subr.mxu0 0.0
    %1849 = vmatpush1.xpose.msra.mxu0 0.0
    %1850 = vmatprep.subr.mxu0 0.0
    %1851 = vmatpush1.xpose.msra.mxu0 0.0
    %1852 = vmatprep.subr.mxu0 0.0
    %1853 = vmatpush1.xpose.msra.mxu0 0.0
    %1854 = vmatprep.subr.mxu0 0.0
    %1855 = vmatpush1.xpose.msra.mxu0 0.0
    %1856 = vmatprep.subr.mxu0 0.0
    %1857 = vmatpush1.xpose.msra.mxu0 0.0
    %1858 = vmatprep.subr.mxu0 0.0
    %1859 = vmatpush1.xpose.msra.mxu0 0.0
    %1860 = vmatprep.subr.mxu0 0.0
    %1861 = vmatpush1.xpose.msra.mxu0 0.0
    %1862 = vmatprep.subr.mxu0 0.0
    %1863 = vmatpush1.xpose.msra.mxu0 0.0
    %1864 = vmatprep.subr.mxu0 0.0
    %1865 = vmatpush1.xpose.msra.mxu0 0.0
    %1866 = vmatprep.subr.mxu0 0.0
    %1867 = vmatpush1.xpose.msra.mxu0 0.0
    %1868 = vmatprep.subr.mxu0 0.0
    %1869 = vmatpush1.xpose.msra.mxu0 0.0
    %1870 = vmatprep.subr.mxu0 0.0
    %1871 = vmatpush1.xpose.msra.mxu0 0.0
    %1872 = vmatprep.subr.mxu0 0.0
    %1873 = vmatpush1.xpose.msra.mxu0 0.0
    %1874 = vmatprep.subr.mxu0 0.0
    %1875 = vmatpush1.xpose.msra.mxu0 0.0
    %1876 = vmatprep.subr.mxu0 0.0
    %1877 = vmatpush1.xpose.msra.mxu0 0.0
    %1878 = vmatprep.subr.mxu0 0.0
    %1879 = vmatpush1.xpose.msra.mxu0 0.0
    %1880 = vmatprep.subr.mxu0 0.0
    %1881 = vmatpush1.xpose.msra.mxu0 0.0
    %1882 = vmatprep.subr.mxu0 0.0
    %1883 = vmatpush1.xpose.msra.mxu0 0.0
    %1884 = vmatprep.subr.mxu0 0.0
    %1885 = vmatpush1.xpose.msra.mxu0 0.0
    %1886 = vmatprep.subr.mxu0 0.0
    %1887 = vmatpush1.xpose.msra.mxu0 0.0
    %1888 = vmatprep.mubr.f32.mxu0 0.0
    %1889 = vmatmul.mubr.f32.gmra.mrb[0].mxu0 %v1813
    %v1890 = vpop.f32.mrb[0].mxu0
    %v1891 = vadd.f32 0.0, %v1890
    %v1892 = vpop.f32.mrb[0].mxu0
    %1893 = vmatprep.mubr.f32.mxu0 0.0
    %1894 = vmatmul.mubr.f32.gmra.mrb[0].mxu0 %v1816
    %v1895 = vpop.f32.mrb[0].mxu0
    %v1896 = vadd.f32 0.0, %v1895
    %v1897 = vpop.f32.mrb[0].mxu0
    %1898 = vdwg.mxu0
    %v1899 = vmul.f32 %v1891, 0.088388346
    %v1900 = vmul.f32 %v1896, 0.088388346
    %v1901 = vmul.f32 %v1899, %v186
    %v1902 = vmul.f32 %v1900, %v187
    %v1903 = vadd.f32 %v1901, %v188
    %v1904 = vadd.f32 %v1902, %v189
    %v1905 = vsel %vm821, %v1903, -inf
    %1906 = vmax.xlane.f32.xlu0 %v1905
    %v1907 = vpop.xlane.xlu0 %1906
    %v1908 = vsel %vm821, %v1904, -inf
    %1909 = vmax.xlane.f32.xlu0 %v1908
    %v1910 = vpop.xlane.xlu0 %1909
    %v1911 = vsub.f32 %v1903, %v1907
    %v1912 = vsub.f32 %v1904, %v1910
    %v1913 = vmul.f32 %v1911, 1.442695
    %v1914 = vpow.pop %v1913
    %v1915 = vmul.f32 %v1912, 1.442695
    %v1916 = vpow.pop %v1915
    %v1917 = vsel %vm821, %v1914, 0.0
    %1918 = vadd.xlane.f32.xlu0 %v1917
    %v1919 = vpop.xlane.xlu0 %1918
    %v1920 = vsel %vm821, %v1916, 0.0
    %1921 = vadd.xlane.f32.xlu0 %v1920
    %v1922 = vpop.xlane.xlu0 %1921
    %v1923 = vrcp.pop %v1919
    %v1924 = vmul.f32 %v1914, %v1923
    %v1925 = vrcp.pop %v1922
    %v1926 = vmul.f32 %v1916, %v1925
    %v1928 = vsel %vm821, %v1924, 0
    %v1931 = vsel %vm821, %v1926, 0
    %1933 = vmatprep.subr.mxu0 0.0
    %1934 = vmatpush1.msra.mxu0 %v1804
    %1935 = vmatprep.subr.mxu0 0.0
    %1936 = vmatpush1.msra.mxu0 %v1809
    %1937 = vmatprep.subr.mxu0 0.0
    %1938 = vmatpush1.msra.mxu0 0.0
    %1939 = vmatprep.subr.mxu0 0.0
    %1940 = vmatpush1.msra.mxu0 0.0
    %1941 = vmatprep.subr.mxu0 0.0
    %1942 = vmatpush1.msra.mxu0 0.0
    %1943 = vmatprep.subr.mxu0 0.0
    %1944 = vmatpush1.msra.mxu0 0.0
    %1945 = vmatprep.subr.mxu0 0.0
    %1946 = vmatpush1.msra.mxu0 0.0
    %1947 = vmatprep.subr.mxu0 0.0
    %1948 = vmatpush1.msra.mxu0 0.0
    %1949 = vmatprep.subr.mxu0 0.0
    %1950 = vmatpush1.msra.mxu0 0.0
    %1951 = vmatprep.subr.mxu0 0.0
    %1952 = vmatpush1.msra.mxu0 0.0
    %1953 = vmatprep.subr.mxu0 0.0
    %1954 = vmatpush1.msra.mxu0 0.0
    %1955 = vmatprep.subr.mxu0 0.0
    %1956 = vmatpush1.msra.mxu0 0.0
    %1957 = vmatprep.subr.mxu0 0.0
    %1958 = vmatpush1.msra.mxu0 0.0
    %1959 = vmatprep.subr.mxu0 0.0
    %1960 = vmatpush1.msra.mxu0 0.0
    %1961 = vmatprep.subr.mxu0 0.0
    %1962 = vmatpush1.msra.mxu0 0.0
    %1963 = vmatprep.subr.mxu0 0.0
    %1964 = vmatpush1.msra.mxu0 0.0
    %1965 = vmatprep.subr.mxu0 0.0
    %1966 = vmatpush1.msra.mxu0 0.0
    %1967 = vmatprep.subr.mxu0 0.0
    %1968 = vmatpush1.msra.mxu0 0.0
    %1969 = vmatprep.subr.mxu0 0.0
    %1970 = vmatpush1.msra.mxu0 0.0
    %1971 = vmatprep.subr.mxu0 0.0
    %1972 = vmatpush1.msra.mxu0 0.0
    %1973 = vmatprep.subr.mxu0 0.0
    %1974 = vmatpush1.msra.mxu0 0.0
    %1975 = vmatprep.subr.mxu0 0.0
    %1976 = vmatpush1.msra.mxu0 0.0
    %1977 = vmatprep.subr.mxu0 0.0
    %1978 = vmatpush1.msra.mxu0 0.0
    %1979 = vmatprep.subr.mxu0 0.0
    %1980 = vmatpush1.msra.mxu0 0.0
    %1981 = vmatprep.subr.mxu0 0.0
    %1982 = vmatpush1.msra.mxu0 0.0
    %1983 = vmatprep.subr.mxu0 0.0
    %1984 = vmatpush1.msra.mxu0 0.0
    %1985 = vmatprep.subr.mxu0 0.0
    %1986 = vmatpush1.msra.mxu0 0.0
    %1987 = vmatprep.subr.mxu0 0.0
    %1988 = vmatpush1.msra.mxu0 0.0
    %1989 = vmatprep.subr.mxu0 0.0
    %1990 = vmatpush1.msra.mxu0 0.0
    %1991 = vmatprep.subr.mxu0 0.0
    %1992 = vmatpush1.msra.mxu0 0.0
    %1993 = vmatprep.subr.mxu0 0.0
    %1994 = vmatpush1.msra.mxu0 0.0
    %1995 = vmatprep.subr.mxu0 0.0
    %1996 = vmatpush1.msra.mxu0 0.0
    %1997 = vmatprep.mubr.f32.mxu0 0.0
    %1998 = vmatmul.mubr.f32.gmra.mrb[0].mxu0 %v1928
    %v1999 = vpop.f32.mrb[0].mxu0
    %v2000 = vadd.f32 0.0, %v1999
    %v2001 = vpop.f32.mrb[0].mxu0
    %2002 = vmatprep.mubr.f32.mxu0 0.0
    %2003 = vmatmul.mubr.f32.gmra.mrb[0].mxu0 %v1931
    %v2004 = vpop.f32.mrb[0].mxu0
    %v2005 = vadd.f32 0.0, %v2004
    %v2006 = vpop.f32.mrb[0].mxu0
    %2007 = vdwg.mxu0
    %s2008 = scalar_lea.vmem %s10, 64
    %v2009 = vld [vmem:[%s2008] sm:$0xff]
    %v2010 = vld [vmem:[%s2008 + $0x8] sm:$0xff]
    %v2011 = vld [vmem:[%s2008 + $0x10] sm:$0xff]
    %v2012 = vld [vmem:[%s2008 + $0x18] sm:$0xff]
    %v2014 = vsel %vm727, %v2000, 0
    %v2017 = vsel %vm727, %v2005, 0
    %2019 = vmatprep.subr.mxu0 0.0
    %2020 = vmatpush1.msra.mxu0 %v2009
    %2021 = vmatprep.subr.mxu0 0.0
    %2022 = vmatpush1.msra.mxu0 %v2010
    %2023 = vmatprep.subr.mxu0 0.0
    %2024 = vmatpush1.msra.mxu0 %v2011
    %2025 = vmatprep.subr.mxu0 0.0
    %2026 = vmatpush1.msra.mxu0 %v2012
    %2027 = vmatprep.subr.mxu0 0.0
    %2028 = vmatpush1.msra.mxu0 0.0
    %2029 = vmatprep.subr.mxu0 0.0
    %2030 = vmatpush1.msra.mxu0 0.0
    %2031 = vmatprep.subr.mxu0 0.0
    %2032 = vmatpush1.msra.mxu0 0.0
    %2033 = vmatprep.subr.mxu0 0.0
    %2034 = vmatpush1.msra.mxu0 0.0
    %2035 = vmatprep.subr.mxu0 0.0
    %2036 = vmatpush1.msra.mxu0 0.0
    %2037 = vmatprep.subr.mxu0 0.0
    %2038 = vmatpush1.msra.mxu0 0.0
    %2039 = vmatprep.subr.mxu0 0.0
    %2040 = vmatpush1.msra.mxu0 0.0
    %2041 = vmatprep.subr.mxu0 0.0
    %2042 = vmatpush1.msra.mxu0 0.0
    %2043 = vmatprep.subr.mxu0 0.0
    %2044 = vmatpush1.msra.mxu0 0.0
    %2045 = vmatprep.subr.mxu0 0.0
    %2046 = vmatpush1.msra.mxu0 0.0
    %2047 = vmatprep.subr.mxu0 0.0
    %2048 = vmatpush1.msra.mxu0 0.0
    %2049 = vmatprep.subr.mxu0 0.0
    %2050 = vmatpush1.msra.mxu0 0.0
    %2051 = vmatprep.subr.mxu0 0.0
    %2052 = vmatpush1.msra.mxu0 0.0
    %2053 = vmatprep.subr.mxu0 0.0
    %2054 = vmatpush1.msra.mxu0 0.0
    %2055 = vmatprep.subr.mxu0 0.0
    %2056 = vmatpush1.msra.mxu0 0.0
    %2057 = vmatprep.subr.mxu0 0.0
    %2058 = vmatpush1.msra.mxu0 0.0
    %2059 = vmatprep.subr.mxu0 0.0
    %2060 = vmatpush1.msra.mxu0 0.0
    %2061 = vmatprep.subr.mxu0 0.0
    %2062 = vmatpush1.msra.mxu0 0.0
    %2063 = vmatprep.subr.mxu0 0.0
    %2064 = vmatpush1.msra.mxu0 0.0
    %2065 = vmatprep.subr.mxu0 0.0
    %2066 = vmatpush1.msra.mxu0 0.0
    %2067 = vmatprep.subr.mxu0 0.0
    %2068 = vmatpush1.msra.mxu0 0.0
    %2069 = vmatprep.subr.mxu0 0.0
    %2070 = vmatpush1.msra.mxu0 0.0
    %2071 = vmatprep.subr.mxu0 0.0
    %2072 = vmatpush1.msra.mxu0 0.0
    %2073 = vmatprep.subr.mxu0 0.0
    %2074 = vmatpush1.msra.mxu0 0.0
    %2075 = vmatprep.subr.mxu0 0.0
    %2076 = vmatpush1.msra.mxu0 0.0
    %2077 = vmatprep.subr.mxu0 0.0
    %2078 = vmatpush1.msra.mxu0 0.0
    %2079 = vmatprep.subr.mxu0 0.0
    %2080 = vmatpush1.msra.mxu0 0.0
    %2081 = vmatprep.subr.mxu0 0.0
    %2082 = vmatpush1.msra.mxu0 0.0
    %2083 = vmatprep.mubr.f32.mxu0 0.0
    %2084 = vmatmul.mubr.f32.gmra.mrb[0].mxu0 %v2014
    %v2085 = vpop.f32.mrb[0].mxu0
    %v2086 = vadd.f32 0.0, %v2085
    %v2087 = vpop.f32.mrb[0].mxu0
    %2088 = vmatprep.mubr.f32.mxu0 0.0
    %2089 = vmatmul.mubr.f32.gmra.mrb[0].mxu0 %v2017
    %v2090 = vpop.f32.mrb[0].mxu0
    %v2091 = vadd.f32 0.0, %v2090
    %v2092 = vpop.f32.mrb[0].mxu0
    %2093 = vdwg.mxu0
    %v2094 = vadd.f32 %v1544, %v2086
    %v2095 = vadd.f32 %v1549, %v2091
    %s2096 = scalar_lea.vmem %s7, 384
    %v2097 = vld [vmem:[%s2096] sm:$0xff]
    %v2098 = vld [vmem:[%s2096 + $0x8] sm:$0xff]
    %v2099 = vld [vmem:[%s2096 + $0x10] sm:$0xff]
    %v2100 = vld [vmem:[%s2096 + $0x18] sm:$0xff]
    %v2101 = vld [vmem:[%s2096 + $0x20] sm:$0xff]
    %v2102 = vld [vmem:[%s2096 + $0x28] sm:$0xff]
    %v2103 = vld [vmem:[%s2096 + $0x30] sm:$0xff]
    %v2104 = vld [vmem:[%s2096 + $0x38] sm:$0xff]
    %v2105 = vld [vmem:[%s2096 + $0x40] sm:$0xff]
    %v2106 = vld [vmem:[%s2096 + $0x48] sm:$0xff]
    %v2107 = vld [vmem:[%s2096 + $0x50] sm:$0xff]
    %v2108 = vld [vmem:[%s2096 + $0x58] sm:$0xff]
    %v2109 = vld [vmem:[%s2096 + $0x60] sm:$0xff]
    %v2110 = vld [vmem:[%s2096 + $0x68] sm:$0xff]
    %v2111 = vld [vmem:[%s2096 + $0x70] sm:$0xff]
    %v2112 = vld [vmem:[%s2096 + $0x78] sm:$0xff]
    %2113 = vmatprep.subr.mxu0 0.0
    %2114 = vmatpush1.msra.mxu0 %v2097
    %2115 = vmatprep.subr.mxu0 0.0
    %2116 = vmatpush1.msra.mxu0 %v2098
    %2117 = vmatprep.subr.mxu0 0.0
    %2118 = vmatpush1.msra.mxu0 %v2099
    %2119 = vmatprep.subr.mxu0 0.0
    %2120 = vmatpush1.msra.mxu0 %v2100
    %2121 = vmatprep.subr.mxu0 0.0
    %2122 = vmatpush1.msra.mxu0 %v2101
    %2123 = vmatprep.subr.mxu0 0.0
    %2124 = vmatpush1.msra.mxu0 %v2102
    %2125 = vmatprep.subr.mxu0 0.0
    %2126 = vmatpush1.msra.mxu0 %v2103
    %2127 = vmatprep.subr.mxu0 0.0
    %2128 = vmatpush1.msra.mxu0 %v2104
    %2129 = vmatprep.subr.mxu0 0.0
    %2130 = vmatpush1.msra.mxu0 %v2105
    %2131 = vmatprep.subr.mxu0 0.0
    %2132 = vmatpush1.msra.mxu0 %v2106
    %2133 = vmatprep.subr.mxu0 0.0
    %2134 = vmatpush1.msra.mxu0 %v2107
    %2135 = vmatprep.subr.mxu0 0.0
    %2136 = vmatpush1.msra.mxu0 %v2108
    %2137 = vmatprep.subr.mxu0 0.0
    %2138 = vmatpush1.msra.mxu0 %v2109
    %2139 = vmatprep.subr.mxu0 0.0
    %2140 = vmatpush1.msra.mxu0 %v2110
    %2141 = vmatprep.subr.mxu0 0.0
    %2142 = vmatpush1.msra.mxu0 %v2111
    %2143 = vmatprep.subr.mxu0 0.0
    %2144 = vmatpush1.msra.mxu0 %v2112
    %2145 = vmatprep.subr.mxu0 0.0
    %2146 = vmatpush1.msra.mxu0 0.0
    %2147 = vmatprep.subr.mxu0 0.0
    %2148 = vmatpush1.msra.mxu0 0.0
    %2149 = vmatprep.subr.mxu0 0.0
    %2150 = vmatpush1.msra.mxu0 0.0
    %2151 = vmatprep.subr.mxu0 0.0
    %2152 = vmatpush1.msra.mxu0 0.0
    %2153 = vmatprep.subr.mxu0 0.0
    %2154 = vmatpush1.msra.mxu0 0.0
    %2155 = vmatprep.subr.mxu0 0.0
    %2156 = vmatpush1.msra.mxu0 0.0
    %2157 = vmatprep.subr.mxu0 0.0
    %2158 = vmatpush1.msra.mxu0 0.0
    %2159 = vmatprep.subr.mxu0 0.0
    %2160 = vmatpush1.msra.mxu0 0.0
    %2161 = vmatprep.subr.mxu0 0.0
    %2162 = vmatpush1.msra.mxu0 0.0
    %2163 = vmatprep.subr.mxu0 0.0
    %2164 = vmatpush1.msra.mxu0 0.0
    %2165 = vmatprep.subr.mxu0 0.0
    %2166 = vmatpush1.msra.mxu0 0.0
    %2167 = vmatprep.subr.mxu0 0.0
    %2168 = vmatpush1.msra.mxu0 0.0
    %2169 = vmatprep.subr.mxu0 0.0
    %2170 = vmatpush1.msra.mxu0 0.0
    %2171 = vmatprep.subr.mxu0 0.0
    %2172 = vmatpush1.msra.mxu0 0.0
    %2173 = vmatprep.subr.mxu0 0.0
    %2174 = vmatpush1.msra.mxu0 0.0
    %2175 = vmatprep.subr.mxu0 0.0
    %2176 = vmatpush1.msra.mxu0 0.0
    %2177 = vmatprep.mubr.f32.mxu0 0.0
    %2178 = vmatmul.mubr.f32.gmra.mrb[0].mxu0 %v178
    %v2179 = vpop.f32.mrb[0].mxu0
    %v2180 = vadd.f32 0.0, %v2179
    %v2181 = vpop.f32.mrb[0].mxu0
    %2182 = vmatprep.mubr.f32.mxu0 0.0
    %2183 = vmatmul.mubr.f32.gmra.mrb[0].mxu0 %v183
    %v2184 = vpop.f32.mrb[0].mxu0
    %v2185 = vadd.f32 0.0, %v2184
    %v2186 = vpop.f32.mrb[0].mxu0
    %2187 = vdwg.mxu0
    %s2188 = scalar_lea.vmem %s8, 192
    %v2189 = vld [vmem:[%s2188] sm:$0xff]
    %v2190 = vld [vmem:[%s2188 + $0x8] sm:$0xff]
    %v2191 = vld [vmem:[%s2188 + $0x10] sm:$0xff]
    %v2192 = vld [vmem:[%s2188 + $0x18] sm:$0xff]
    %v2193 = vld [vmem:[%s2188 + $0x20] sm:$0xff]
    %v2194 = vld [vmem:[%s2188 + $0x28] sm:$0xff]
    %v2195 = vld [vmem:[%s2188 + $0x30] sm:$0xff]
    %v2196 = vld [vmem:[%s2188 + $0x38] sm:$0xff]
    %2197 = vmatprep.subr.mxu0 0.0
    %2198 = vmatpush1.msra.mxu0 %v2189
    %2199 = vmatprep.subr.mxu0 0.0
    %2200 = vmatpush1.msra.mxu0 %v2190
    %2201 = vmatprep.subr.mxu0 0.0
    %2202 = vmatpush1.msra.mxu0 %v2191
    %2203 = vmatprep.subr.mxu0 0.0
    %2204 = vmatpush1.msra.mxu0 %v2192
    %2205 = vmatprep.subr.mxu0 0.0
    %2206 = vmatpush1.msra.mxu0 %v2193
    %2207 = vmatprep.subr.mxu0 0.0
    %2208 = vmatpush1.msra.mxu0 %v2194
    %2209 = vmatprep.subr.mxu0 0.0
    %2210 = vmatpush1.msra.mxu0 %v2195
    %2211 = vmatprep.subr.mxu0 0.0
    %2212 = vmatpush1.msra.mxu0 %v2196
    %2213 = vmatprep.subr.mxu0 0.0
    %2214 = vmatpush1.msra.mxu0 0.0
    %2215 = vmatprep.subr.mxu0 0.0
    %2216 = vmatpush1.msra.mxu0 0.0
    %2217 = vmatprep.subr.mxu0 0.0
    %2218 = vmatpush1.msra.mxu0 0.0
    %2219 = vmatprep.subr.mxu0 0.0
    %2220 = vmatpush1.msra.mxu0 0.0
    %2221 = vmatprep.subr.mxu0 0.0
    %2222 = vmatpush1.msra.mxu0 0.0
    %2223 = vmatprep.subr.mxu0 0.0
    %2224 = vmatpush1.msra.mxu0 0.0
    %2225 = vmatprep.subr.mxu0 0.0
    %2226 = vmatpush1.msra.mxu0 0.0
    %2227 = vmatprep.subr.mxu0 0.0
    %2228 = vmatpush1.msra.mxu0 0.0
    %2229 = vmatprep.subr.mxu0 0.0
    %2230 = vmatpush1.msra.mxu0 0.0
    %2231 = vmatprep.subr.mxu0 0.0
    %2232 = vmatpush1.msra.mxu0 0.0
    %2233 = vmatprep.subr.mxu0 0.0
    %2234 = vmatpush1.msra.mxu0 0.0
    %2235 = vmatprep.subr.mxu0 0.0
    %2236 = vmatpush1.msra.mxu0 0.0
    %2237 = vmatprep.subr.mxu0 0.0
    %2238 = vmatpush1.msra.mxu0 0.0
    %2239 = vmatprep.subr.mxu0 0.0
    %2240 = vmatpush1.msra.mxu0 0.0
    %2241 = vmatprep.subr.mxu0 0.0
    %2242 = vmatpush1.msra.mxu0 0.0
    %2243 = vmatprep.subr.mxu0 0.0
    %2244 = vmatpush1.msra.mxu0 0.0
    %2245 = vmatprep.subr.mxu0 0.0
    %2246 = vmatpush1.msra.mxu0 0.0
    %2247 = vmatprep.subr.mxu0 0.0
    %2248 = vmatpush1.msra.mxu0 0.0
    %2249 = vmatprep.subr.mxu0 0.0
    %2250 = vmatpush1.msra.mxu0 0.0
    %2251 = vmatprep.subr.mxu0 0.0
    %2252 = vmatpush1.msra.mxu0 0.0
    %2253 = vmatprep.subr.mxu0 0.0
    %2254 = vmatpush1.msra.mxu0 0.0
    %2255 = vmatprep.subr.mxu0 0.0
    %2256 = vmatpush1.msra.mxu0 0.0
    %2257 = vmatprep.subr.mxu0 0.0
    %2258 = vmatpush1.msra.mxu0 0.0
    %2259 = vmatprep.subr.mxu0 0.0
    %2260 = vmatpush1.msra.mxu0 0.0
    %2261 = vmatprep.mubr.f32.mxu0 0.0
    %2262 = vmatmul.mubr.f32.gmra.mrb[0].mxu0 %v564
    %v2263 = vpop.f32.mrb[0].mxu0
    %v2264 = vadd.f32 0.0, %v2263
    %v2265 = vpop.f32.mrb[0].mxu0
    %2266 = vmatprep.mubr.f32.mxu0 0.0
    %2267 = vmatmul.mubr.f32.gmra.mrb[0].mxu0 %v567
    %v2268 = vpop.f32.mrb[0].mxu0
    %v2269 = vadd.f32 0.0, %v2268
    %v2270 = vpop.f32.mrb[0].mxu0
    %2271 = vdwg.mxu0
    %s2272 = scalar_lea.vmem %s9, 192
    %v2273 = vld [vmem:[%s2272] sm:$0xff]
    %v2274 = vld [vmem:[%s2272 + $0x8] sm:$0xff]
    %v2275 = vld [vmem:[%s2272 + $0x10] sm:$0xff]
    %v2276 = vld [vmem:[%s2272 + $0x18] sm:$0xff]
    %v2277 = vld [vmem:[%s2272 + $0x20] sm:$0xff]
    %v2278 = vld [vmem:[%s2272 + $0x28] sm:$0xff]
    %v2279 = vld [vmem:[%s2272 + $0x30] sm:$0xff]
    %v2280 = vld [vmem:[%s2272 + $0x38] sm:$0xff]
    %2281 = vmatprep.subr.mxu0 0.0
    %2282 = vmatpush1.msra.mxu0 %v2273
    %2283 = vmatprep.subr.mxu0 0.0
    %2284 = vmatpush1.msra.mxu0 %v2274
    %2285 = vmatprep.subr.mxu0 0.0
    %2286 = vmatpush1.msra.mxu0 %v2275
    %2287 = vmatprep.subr.mxu0 0.0
    %2288 = vmatpush1.msra.mxu0 %v2276
    %2289 = vmatprep.subr.mxu0 0.0
    %2290 = vmatpush1.msra.mxu0 %v2277
    %2291 = vmatprep.subr.mxu0 0.0
    %2292 = vmatpush1.msra.mxu0 %v2278
    %2293 = vmatprep.subr.mxu0 0.0
    %2294 = vmatpush1.msra.mxu0 %v2279
    %2295 = vmatprep.subr.mxu0 0.0
    %2296 = vmatpush1.msra.mxu0 %v2280
    %2297 = vmatprep.subr.mxu0 0.0
    %2298 = vmatpush1.msra.mxu0 0.0
    %2299 = vmatprep.subr.mxu0 0.0
    %2300 = vmatpush1.msra.mxu0 0.0
    %2301 = vmatprep.subr.mxu0 0.0
    %2302 = vmatpush1.msra.mxu0 0.0
    %2303 = vmatprep.subr.mxu0 0.0
    %2304 = vmatpush1.msra.mxu0 0.0
    %2305 = vmatprep.subr.mxu0 0.0
    %2306 = vmatpush1.msra.mxu0 0.0
    %2307 = vmatprep.subr.mxu0 0.0
    %2308 = vmatpush1.msra.mxu0 0.0
    %2309 = vmatprep.subr.mxu0 0.0
    %2310 = vmatpush1.msra.mxu0 0.0
    %2311 = vmatprep.subr.mxu0 0.0
    %2312 = vmatpush1.msra.mxu0 0.0
    %2313 = vmatprep.subr.mxu0 0.0
    %2314 = vmatpush1.msra.mxu0 0.0
    %2315 = vmatprep.subr.mxu0 0.0
    %2316 = vmatpush1.msra.mxu0 0.0
    %2317 = vmatprep.subr.mxu0 0.0
    %2318 = vmatpush1.msra.mxu0 0.0
    %2319 = vmatprep.subr.mxu0 0.0
    %2320 = vmatpush1.msra.mxu0 0.0
    %2321 = vmatprep.subr.mxu0 0.0
    %2322 = vmatpush1.msra.mxu0 0.0
    %2323 = vmatprep.subr.mxu0 0.0
    %2324 = vmatpush1.msra.mxu0 0.0
    %2325 = vmatprep.subr.mxu0 0.0
    %2326 = vmatpush1.msra.mxu0 0.0
    %2327 = vmatprep.subr.mxu0 0.0
    %2328 = vmatpush1.msra.mxu0 0.0
    %2329 = vmatprep.subr.mxu0 0.0
    %2330 = vmatpush1.msra.mxu0 0.0
    %2331 = vmatprep.subr.mxu0 0.0
    %2332 = vmatpush1.msra.mxu0 0.0
    %2333 = vmatprep.subr.mxu0 0.0
    %2334 = vmatpush1.msra.mxu0 0.0
    %2335 = vmatprep.subr.mxu0 0.0
    %2336 = vmatpush1.msra.mxu0 0.0
    %2337 = vmatprep.subr.mxu0 0.0
    %2338 = vmatpush1.msra.mxu0 0.0
    %2339 = vmatprep.subr.mxu0 0.0
    %2340 = vmatpush1.msra.mxu0 0.0
    %2341 = vmatprep.subr.mxu0 0.0
    %2342 = vmatpush1.msra.mxu0 0.0
    %2343 = vmatprep.subr.mxu0 0.0
    %2344 = vmatpush1.msra.mxu0 0.0
    %2345 = vmatprep.mubr.f32.mxu0 0.0
    %2346 = vmatmul.mubr.f32.gmra.mrb[0].mxu0 %v564
    %v2347 = vpop.f32.mrb[0].mxu0
    %v2348 = vadd.f32 0.0, %v2347
    %v2349 = vpop.f32.mrb[0].mxu0
    %2350 = vmatprep.mubr.f32.mxu0 0.0
    %2351 = vmatmul.mubr.f32.gmra.mrb[0].mxu0 %v567
    %v2352 = vpop.f32.mrb[0].mxu0
    %v2353 = vadd.f32 0.0, %v2352
    %v2354 = vpop.f32.mrb[0].mxu0
    %2355 = vdwg.mxu0
    %v2357 = vsel %vm727, %v2180, 0
    %v2360 = vsel %vm727, %v2185, 0
    %v2363 = vsel %vm727, %v2264, 0
    %v2366 = vsel %vm727, %v2269, 0
    %2368 = vmatprep.subr.mxu0 0.0
    %2369 = vmatpush1.xpose.msra.mxu0 %v2363
    %2370 = vmatprep.subr.mxu0 0.0
    %2371 = vmatpush1.xpose.msra.mxu0 %v2366
    %2372 = vmatprep.subr.mxu0 0.0
    %2373 = vmatpush1.xpose.msra.mxu0 0.0
    %2374 = vmatprep.subr.mxu0 0.0
    %2375 = vmatpush1.xpose.msra.mxu0 0.0
    %2376 = vmatprep.subr.mxu0 0.0
    %2377 = vmatpush1.xpose.msra.mxu0 0.0
    %2378 = vmatprep.subr.mxu0 0.0
    %2379 = vmatpush1.xpose.msra.mxu0 0.0
    %2380 = vmatprep.subr.mxu0 0.0
    %2381 = vmatpush1.xpose.msra.mxu0 0.0
    %2382 = vmatprep.subr.mxu0 0.0
    %2383 = vmatpush1.xpose.msra.mxu0 0.0
    %2384 = vmatprep.subr.mxu0 0.0
    %2385 = vmatpush1.xpose.msra.mxu0 0.0
    %2386 = vmatprep.subr.mxu0 0.0
    %2387 = vmatpush1.xpose.msra.mxu0 0.0
    %2388 = vmatprep.subr.mxu0 0.0
    %2389 = vmatpush1.xpose.msra.mxu0 0.0
    %2390 = vmatprep.subr.mxu0 0.0
    %2391 = vmatpush1.xpose.msra.mxu0 0.0
    %2392 = vmatprep.subr.mxu0 0.0
    %2393 = vmatpush1.xpose.msra.mxu0 0.0
    %2394 = vmatprep.subr.mxu0 0.0
    %2395 = vmatpush1.xpose.msra.mxu0 0.0
    %2396 = vmatprep.subr.mxu0 0.0
    %2397 = vmatpush1.xpose.msra.mxu0 0.0
    %2398 = vmatprep.subr.mxu0 0.0
    %2399 = vmatpush1.xpose.msra.mxu0 0.0
    %2400 = vmatprep.subr.mxu0 0.0
    %2401 = vmatpush1.xpose.msra.mxu0 0.0
    %2402 = vmatprep.subr.mxu0 0.0
    %2403 = vmatpush1.xpose.msra.mxu0 0.0
    %2404 = vmatprep.subr.mxu0 0.0
    %2405 = vmatpush1.xpose.msra.mxu0 0.0
    %2406 = vmatprep.subr.mxu0 0.0
    %2407 = vmatpush1.xpose.msra.mxu0 0.0
    %2408 = vmatprep.subr.mxu0 0.0
    %2409 = vmatpush1.xpose.msra.mxu0 0.0
    %2410 = vmatprep.subr.mxu0 0.0
    %2411 = vmatpush1.xpose.msra.mxu0 0.0
    %2412 = vmatprep.subr.mxu0 0.0
    %2413 = vmatpush1.xpose.msra.mxu0 0.0
    %2414 = vmatprep.subr.mxu0 0.0
    %2415 = vmatpush1.xpose.msra.mxu0 0.0
    %2416 = vmatprep.subr.mxu0 0.0
    %2417 = vmatpush1.xpose.msra.mxu0 0.0
    %2418 = vmatprep.subr.mxu0 0.0
    %2419 = vmatpush1.xpose.msra.mxu0 0.0
    %2420 = vmatprep.subr.mxu0 0.0
    %2421 = vmatpush1.xpose.msra.mxu0 0.0
    %2422 = vmatprep.subr.mxu0 0.0
    %2423 = vmatpush1.xpose.msra.mxu0 0.0
    %2424 = vmatprep.subr.mxu0 0.0
    %2425 = vmatpush1.xpose.msra.mxu0 0.0
    %2426 = vmatprep.subr.mxu0 0.0
    %2427 = vmatpush1.xpose.msra.mxu0 0.0
    %2428 = vmatprep.subr.mxu0 0.0
    %2429 = vmatpush1.xpose.msra.mxu0 0.0
    %2430 = vmatprep.subr.mxu0 0.0
    %2431 = vmatpush1.xpose.msra.mxu0 0.0
    %2432 = vmatprep.mubr.f32.mxu0 0.0
    %2433 = vmatmul.mubr.f32.gmra.mrb[0].mxu0 %v2357
    %v2434 = vpop.f32.mrb[0].mxu0
    %v2435 = vadd.f32 0.0, %v2434
    %v2436 = vpop.f32.mrb[0].mxu0
    %2437 = vmatprep.mubr.f32.mxu0 0.0
    %2438 = vmatmul.mubr.f32.gmra.mrb[0].mxu0 %v2360
    %v2439 = vpop.f32.mrb[0].mxu0
    %v2440 = vadd.f32 0.0, %v2439
    %v2441 = vpop.f32.mrb[0].mxu0
    %2442 = vdwg.mxu0
    %v2443 = vmul.f32 %v2435, 0.088388346
    %v2444 = vmul.f32 %v2440, 0.088388346
    %v2445 = vmul.f32 %v2443, %v186
    %v2446 = vmul.f32 %v2444, %v187
    %v2447 = vadd.f32 %v2445, %v188
    %v2448 = vadd.f32 %v2446, %v189
    %v2449 = vsel %vm821, %v2447, -inf
    %2450 = vmax.xlane.f32.xlu0 %v2449
    %v2451 = vpop.xlane.xlu0 %2450
    %v2452 = vsel %vm821, %v2448, -inf
    %2453 = vmax.xlane.f32.xlu0 %v2452
    %v2454 = vpop.xlane.xlu0 %2453
    %v2455 = vsub.f32 %v2447, %v2451
    %v2456 = vsub.f32 %v2448, %v2454
    %v2457 = vmul.f32 %v2455, 1.442695
    %v2458 = vpow.pop %v2457
    %v2459 = vmul.f32 %v2456, 1.442695
    %v2460 = vpow.pop %v2459
    %v2461 = vsel %vm821, %v2458, 0.0
    %2462 = vadd.xlane.f32.xlu0 %v2461
    %v2463 = vpop.xlane.xlu0 %2462
    %v2464 = vsel %vm821, %v2460, 0.0
    %2465 = vadd.xlane.f32.xlu0 %v2464
    %v2466 = vpop.xlane.xlu0 %2465
    %v2467 = vrcp.pop %v2463
    %v2468 = vmul.f32 %v2458, %v2467
    %v2469 = vrcp.pop %v2466
    %v2470 = vmul.f32 %v2460, %v2469
    %v2472 = vsel %vm821, %v2468, 0
    %v2475 = vsel %vm821, %v2470, 0
    %2477 = vmatprep.subr.mxu0 0.0
    %2478 = vmatpush1.msra.mxu0 %v2348
    %2479 = vmatprep.subr.mxu0 0.0
    %2480 = vmatpush1.msra.mxu0 %v2353
    %2481 = vmatprep.subr.mxu0 0.0
    %2482 = vmatpush1.msra.mxu0 0.0
    %2483 = vmatprep.subr.mxu0 0.0
    %2484 = vmatpush1.msra.mxu0 0.0
    %2485 = vmatprep.subr.mxu0 0.0
    %2486 = vmatpush1.msra.mxu0 0.0
    %2487 = vmatprep.subr.mxu0 0.0
    %2488 = vmatpush1.msra.mxu0 0.0
    %2489 = vmatprep.subr.mxu0 0.0
    %2490 = vmatpush1.msra.mxu0 0.0
    %2491 = vmatprep.subr.mxu0 0.0
    %2492 = vmatpush1.msra.mxu0 0.0
    %2493 = vmatprep.subr.mxu0 0.0
    %2494 = vmatpush1.msra.mxu0 0.0
    %2495 = vmatprep.subr.mxu0 0.0
    %2496 = vmatpush1.msra.mxu0 0.0
    %2497 = vmatprep.subr.mxu0 0.0
    %2498 = vmatpush1.msra.mxu0 0.0
    %2499 = vmatprep.subr.mxu0 0.0
    %2500 = vmatpush1.msra.mxu0 0.0
    %2501 = vmatprep.subr.mxu0 0.0
    %2502 = vmatpush1.msra.mxu0 0.0
    %2503 = vmatprep.subr.mxu0 0.0
    %2504 = vmatpush1.msra.mxu0 0.0
    %2505 = vmatprep.subr.mxu0 0.0
    %2506 = vmatpush1.msra.mxu0 0.0
    %2507 = vmatprep.subr.mxu0 0.0
    %2508 = vmatpush1.msra.mxu0 0.0
    %2509 = vmatprep.subr.mxu0 0.0
    %2510 = vmatpush1.msra.mxu0 0.0
    %2511 = vmatprep.subr.mxu0 0.0
    %2512 = vmatpush1.msra.mxu0 0.0
    %2513 = vmatprep.subr.mxu0 0.0
    %2514 = vmatpush1.msra.mxu0 0.0
    %2515 = vmatprep.subr.mxu0 0.0
    %2516 = vmatpush1.msra.mxu0 0.0
    %2517 = vmatprep.subr.mxu0 0.0
    %2518 = vmatpush1.msra.mxu0 0.0
    %2519 = vmatprep.subr.mxu0 0.0
    %2520 = vmatpush1.msra.mxu0 0.0
    %2521 = vmatprep.subr.mxu0 0.0
    %2522 = vmatpush1.msra.mxu0 0.0
    %2523 = vmatprep.subr.mxu0 0.0
    %2524 = vmatpush1.msra.mxu0 0.0
    %2525 = vmatprep.subr.mxu0 0.0
    %2526 = vmatpush1.msra.mxu0 0.0
    %2527 = vmatprep.subr.mxu0 0.0
    %2528 = vmatpush1.msra.mxu0 0.0
    %2529 = vmatprep.subr.mxu0 0.0
    %2530 = vmatpush1.msra.mxu0 0.0
    %2531 = vmatprep.subr.mxu0 0.0
    %2532 = vmatpush1.msra.mxu0 0.0
    %2533 = vmatprep.subr.mxu0 0.0
    %2534 = vmatpush1.msra.mxu0 0.0
    %2535 = vmatprep.subr.mxu0 0.0
    %2536 = vmatpush1.msra.mxu0 0.0
    %2537 = vmatprep.subr.mxu0 0.0
    %2538 = vmatpush1.msra.mxu0 0.0
    %2539 = vmatprep.subr.mxu0 0.0
    %2540 = vmatpush1.msra.mxu0 0.0
    %2541 = vmatprep.mubr.f32.mxu0 0.0
    %2542 = vmatmul.mubr.f32.gmra.mrb[0].mxu0 %v2472
    %v2543 = vpop.f32.mrb[0].mxu0
    %v2544 = vadd.f32 0.0, %v2543
    %v2545 = vpop.f32.mrb[0].mxu0
    %2546 = vmatprep.mubr.f32.mxu0 0.0
    %2547 = vmatmul.mubr.f32.gmra.mrb[0].mxu0 %v2475
    %v2548 = vpop.f32.mrb[0].mxu0
    %v2549 = vadd.f32 0.0, %v2548
    %v2550 = vpop.f32.mrb[0].mxu0
    %2551 = vdwg.mxu0
    %s2552 = scalar_lea.vmem %s10, 96
    %v2553 = vld [vmem:[%s2552] sm:$0xff]
    %v2554 = vld [vmem:[%s2552 + $0x8] sm:$0xff]
    %v2555 = vld [vmem:[%s2552 + $0x10] sm:$0xff]
    %v2556 = vld [vmem:[%s2552 + $0x18] sm:$0xff]
    %v2558 = vsel %vm727, %v2544, 0
    %v2561 = vsel %vm727, %v2549, 0
    %2563 = vmatprep.subr.mxu0 0.0
    %2564 = vmatpush1.msra.mxu0 %v2553
    %2565 = vmatprep.subr.mxu0 0.0
    %2566 = vmatpush1.msra.mxu0 %v2554
    %2567 = vmatprep.subr.mxu0 0.0
    %2568 = vmatpush1.msra.mxu0 %v2555
    %2569 = vmatprep.subr.mxu0 0.0
    %2570 = vmatpush1.msra.mxu0 %v2556
    %2571 = vmatprep.subr.mxu0 0.0
    %2572 = vmatpush1.msra.mxu0 0.0
    %2573 = vmatprep.subr.mxu0 0.0
    %2574 = vmatpush1.msra.mxu0 0.0
    %2575 = vmatprep.subr.mxu0 0.0
    %2576 = vmatpush1.msra.mxu0 0.0
    %2577 = vmatprep.subr.mxu0 0.0
    %2578 = vmatpush1.msra.mxu0 0.0
    %2579 = vmatprep.subr.mxu0 0.0
    %2580 = vmatpush1.msra.mxu0 0.0
    %2581 = vmatprep.subr.mxu0 0.0
    %2582 = vmatpush1.msra.mxu0 0.0
    %2583 = vmatprep.subr.mxu0 0.0
    %2584 = vmatpush1.msra.mxu0 0.0
    %2585 = vmatprep.subr.mxu0 0.0
    %2586 = vmatpush1.msra.mxu0 0.0
    %2587 = vmatprep.subr.mxu0 0.0
    %2588 = vmatpush1.msra.mxu0 0.0
    %2589 = vmatprep.subr.mxu0 0.0
    %2590 = vmatpush1.msra.mxu0 0.0
    %2591 = vmatprep.subr.mxu0 0.0
    %2592 = vmatpush1.msra.mxu0 0.0
    %2593 = vmatprep.subr.mxu0 0.0
    %2594 = vmatpush1.msra.mxu0 0.0
    %2595 = vmatprep.subr.mxu0 0.0
    %2596 = vmatpush1.msra.mxu0 0.0
    %2597 = vmatprep.subr.mxu0 0.0
    %2598 = vmatpush1.msra.mxu0 0.0
    %2599 = vmatprep.subr.mxu0 0.0
    %2600 = vmatpush1.msra.mxu0 0.0
    %2601 = vmatprep.subr.mxu0 0.0
    %2602 = vmatpush1.msra.mxu0 0.0
    %2603 = vmatprep.subr.mxu0 0.0
    %2604 = vmatpush1.msra.mxu0 0.0
    %2605 = vmatprep.subr.mxu0 0.0
    %2606 = vmatpush1.msra.mxu0 0.0
    %2607 = vmatprep.subr.mxu0 0.0
    %2608 = vmatpush1.msra.mxu0 0.0
    %2609 = vmatprep.subr.mxu0 0.0
    %2610 = vmatpush1.msra.mxu0 0.0
    %2611 = vmatprep.subr.mxu0 0.0
    %2612 = vmatpush1.msra.mxu0 0.0
    %2613 = vmatprep.subr.mxu0 0.0
    %2614 = vmatpush1.msra.mxu0 0.0
    %2615 = vmatprep.subr.mxu0 0.0
    %2616 = vmatpush1.msra.mxu0 0.0
    %2617 = vmatprep.subr.mxu0 0.0
    %2618 = vmatpush1.msra.mxu0 0.0
    %2619 = vmatprep.subr.mxu0 0.0
    %2620 = vmatpush1.msra.mxu0 0.0
    %2621 = vmatprep.subr.mxu0 0.0
    %2622 = vmatpush1.msra.mxu0 0.0
    %2623 = vmatprep.subr.mxu0 0.0
    %2624 = vmatpush1.msra.mxu0 0.0
    %2625 = vmatprep.subr.mxu0 0.0
    %2626 = vmatpush1.msra.mxu0 0.0
    %2627 = vmatprep.mubr.f32.mxu0 0.0
    %2628 = vmatmul.mubr.f32.gmra.mrb[0].mxu0 %v2558
    %v2629 = vpop.f32.mrb[0].mxu0
    %v2630 = vadd.f32 0.0, %v2629
    %v2631 = vpop.f32.mrb[0].mxu0
    %2632 = vmatprep.mubr.f32.mxu0 0.0
    %2633 = vmatmul.mubr.f32.gmra.mrb[0].mxu0 %v2561
    %v2634 = vpop.f32.mrb[0].mxu0
    %v2635 = vadd.f32 0.0, %v2634
    %v2636 = vpop.f32.mrb[0].mxu0
    %2637 = vdwg.mxu0
    %v2638 = vadd.f32 %v2094, %v2630
    %v2639 = vadd.f32 %v2095, %v2635
    %s2640 = scalar_lea.vmem %s4, 128
    %v2641 = vld [vmem:[%s2640] sm:$0xff]
    %v2642 = vld [vmem:[%s2640 + $0x8] sm:$0xff]
    %v2643 = vld [vmem:[%s2640 + $0x10] sm:$0xff]
    %v2644 = vld [vmem:[%s2640 + $0x18] sm:$0xff]
    %v2645 = vld [vmem:[%s2640 + $0x20] sm:$0xff]
    %v2646 = vld [vmem:[%s2640 + $0x28] sm:$0xff]
    %v2647 = vld [vmem:[%s2640 + $0x30] sm:$0xff]
    %v2648 = vld [vmem:[%s2640 + $0x38] sm:$0xff]
    %v2649 = vld [vmem:[%s2640 + $0x40] sm:$0xff]
    %v2650 = vld [vmem:[%s2640 + $0x48] sm:$0xff]
    %v2651 = vld [vmem:[%s2640 + $0x50] sm:$0xff]
    %v2652 = vld [vmem:[%s2640 + $0x58] sm:$0xff]
    %v2653 = vld [vmem:[%s2640 + $0x60] sm:$0xff]
    %v2654 = vld [vmem:[%s2640 + $0x68] sm:$0xff]
    %v2655 = vld [vmem:[%s2640 + $0x70] sm:$0xff]
    %v2656 = vld [vmem:[%s2640 + $0x78] sm:$0xff]
    %s2657 = scalar_lea.vmem %s5, 128
    %v2658 = vld [vmem:[%s2657] sm:$0xff]
    %v2659 = vld [vmem:[%s2657 + $0x8] sm:$0xff]
    %v2660 = vld [vmem:[%s2657 + $0x10] sm:$0xff]
    %v2661 = vld [vmem:[%s2657 + $0x18] sm:$0xff]
    %v2662 = vld [vmem:[%s2657 + $0x20] sm:$0xff]
    %v2663 = vld [vmem:[%s2657 + $0x28] sm:$0xff]
    %v2664 = vld [vmem:[%s2657 + $0x30] sm:$0xff]
    %v2665 = vld [vmem:[%s2657 + $0x38] sm:$0xff]
    %v2666 = vld [vmem:[%s2657 + $0x40] sm:$0xff]
    %v2667 = vld [vmem:[%s2657 + $0x48] sm:$0xff]
    %v2668 = vld [vmem:[%s2657 + $0x50] sm:$0xff]
    %v2669 = vld [vmem:[%s2657 + $0x58] sm:$0xff]
    %v2670 = vld [vmem:[%s2657 + $0x60] sm:$0xff]
    %v2671 = vld [vmem:[%s2657 + $0x68] sm:$0xff]
    %v2672 = vld [vmem:[%s2657 + $0x70] sm:$0xff]
    %v2673 = vld [vmem:[%s2657 + $0x78] sm:$0xff]
    %2674 = vmatprep.subr.mxu0 0.0
    %2675 = vmatpush1.msra.mxu0 %v2658
    %2676 = vmatprep.subr.mxu0 0.0
    %2677 = vmatpush1.msra.mxu0 %v2659
    %2678 = vmatprep.subr.mxu0 0.0
    %2679 = vmatpush1.msra.mxu0 %v2660
    %2680 = vmatprep.subr.mxu0 0.0
    %2681 = vmatpush1.msra.mxu0 %v2661
    %2682 = vmatprep.subr.mxu0 0.0
    %2683 = vmatpush1.msra.mxu0 %v2662
    %2684 = vmatprep.subr.mxu0 0.0
    %2685 = vmatpush1.msra.mxu0 %v2663
    %2686 = vmatprep.subr.mxu0 0.0
    %2687 = vmatpush1.msra.mxu0 %v2664
    %2688 = vmatprep.subr.mxu0 0.0
    %2689 = vmatpush1.msra.mxu0 %v2665
    %2690 = vmatprep.subr.mxu0 0.0
    %2691 = vmatpush1.msra.mxu0 %v2666
    %2692 = vmatprep.subr.mxu0 0.0
    %2693 = vmatpush1.msra.mxu0 %v2667
    %2694 = vmatprep.subr.mxu0 0.0
    %2695 = vmatpush1.msra.mxu0 %v2668
    %2696 = vmatprep.subr.mxu0 0.0
    %2697 = vmatpush1.msra.mxu0 %v2669
    %2698 = vmatprep.subr.mxu0 0.0
    %2699 = vmatpush1.msra.mxu0 %v2670
    %2700 = vmatprep.subr.mxu0 0.0
    %2701 = vmatpush1.msra.mxu0 %v2671
    %2702 = vmatprep.subr.mxu0 0.0
    %2703 = vmatpush1.msra.mxu0 %v2672
    %2704 = vmatprep.subr.mxu0 0.0
    %2705 = vmatpush1.msra.mxu0 %v2673
    %2706 = vmatprep.subr.mxu0 0.0
    %2707 = vmatpush1.msra.mxu0 0.0
    %2708 = vmatprep.subr.mxu0 0.0
    %2709 = vmatpush1.msra.mxu0 0.0
    %2710 = vmatprep.subr.mxu0 0.0
    %2711 = vmatpush1.msra.mxu0 0.0
    %2712 = vmatprep.subr.mxu0 0.0
    %2713 = vmatpush1.msra.mxu0 0.0
    %2714 = vmatprep.subr.mxu0 0.0
    %2715 = vmatpush1.msra.mxu0 0.0
    %2716 = vmatprep.subr.mxu0 0.0
    %2717 = vmatpush1.msra.mxu0 0.0
    %2718 = vmatprep.subr.mxu0 0.0
    %2719 = vmatpush1.msra.mxu0 0.0
    %2720 = vmatprep.subr.mxu0 0.0
    %2721 = vmatpush1.msra.mxu0 0.0
    %2722 = vmatprep.subr.mxu0 0.0
    %2723 = vmatpush1.msra.mxu0 0.0
    %2724 = vmatprep.subr.mxu0 0.0
    %2725 = vmatpush1.msra.mxu0 0.0
    %2726 = vmatprep.subr.mxu0 0.0
    %2727 = vmatpush1.msra.mxu0 0.0
    %2728 = vmatprep.subr.mxu0 0.0
    %2729 = vmatpush1.msra.mxu0 0.0
    %2730 = vmatprep.subr.mxu0 0.0
    %2731 = vmatpush1.msra.mxu0 0.0
    %2732 = vmatprep.subr.mxu0 0.0
    %2733 = vmatpush1.msra.mxu0 0.0
    %2734 = vmatprep.subr.mxu0 0.0
    %2735 = vmatpush1.msra.mxu0 0.0
    %2736 = vmatprep.subr.mxu0 0.0
    %2737 = vmatpush1.msra.mxu0 0.0
    %2738 = vmatprep.mubr.f32.mxu0 0.0
    %2739 = vmatmul.mubr.f32.gmra.mrb[0].mxu0 %v2638
    %v2740 = vpop.f32.mrb[0].mxu0
    %v2741 = vadd.f32 0.0, %v2740
    %v2742 = vpop.f32.mrb[0].mxu0
    %2743 = vmatprep.mubr.f32.mxu0 0.0
    %2744 = vmatmul.mubr.f32.gmra.mrb[0].mxu0 %v2639
    %v2745 = vpop.f32.mrb[0].mxu0
    %v2746 = vadd.f32 0.0, %v2745
    %v2747 = vpop.f32.mrb[0].mxu0
    %2748 = vdwg.mxu0
    %2749 = vmatprep.subr.mxu0 0.0
    %2750 = vmatpush1.msra.mxu0 %v2641
    %2751 = vmatprep.subr.mxu0 0.0
    %2752 = vmatpush1.msra.mxu0 %v2642
    %2753 = vmatprep.subr.mxu0 0.0
    %2754 = vmatpush1.msra.mxu0 %v2643
    %2755 = vmatprep.subr.mxu0 0.0
    %2756 = vmatpush1.msra.mxu0 %v2644
    %2757 = vmatprep.subr.mxu0 0.0
    %2758 = vmatpush1.msra.mxu0 %v2645
    %2759 = vmatprep.subr.mxu0 0.0
    %2760 = vmatpush1.msra.mxu0 %v2646
    %2761 = vmatprep.subr.mxu0 0.0
    %2762 = vmatpush1.msra.mxu0 %v2647
    %2763 = vmatprep.subr.mxu0 0.0
    %2764 = vmatpush1.msra.mxu0 %v2648
    %2765 = vmatprep.subr.mxu0 0.0
    %2766 = vmatpush1.msra.mxu0 %v2649
    %2767 = vmatprep.subr.mxu0 0.0
    %2768 = vmatpush1.msra.mxu0 %v2650
    %2769 = vmatprep.subr.mxu0 0.0
    %2770 = vmatpush1.msra.mxu0 %v2651
    %2771 = vmatprep.subr.mxu0 0.0
    %2772 = vmatpush1.msra.mxu0 %v2652
    %2773 = vmatprep.subr.mxu0 0.0
    %2774 = vmatpush1.msra.mxu0 %v2653
    %2775 = vmatprep.subr.mxu0 0.0
    %2776 = vmatpush1.msra.mxu0 %v2654
    %2777 = vmatprep.subr.mxu0 0.0
    %2778 = vmatpush1.msra.mxu0 %v2655
    %2779 = vmatprep.subr.mxu0 0.0
    %2780 = vmatpush1.msra.mxu0 %v2656
    %2781 = vmatprep.subr.mxu0 0.0
    %2782 = vmatpush1.msra.mxu0 0.0
    %2783 = vmatprep.subr.mxu0 0.0
    %2784 = vmatpush1.msra.mxu0 0.0
    %2785 = vmatprep.subr.mxu0 0.0
    %2786 = vmatpush1.msra.mxu0 0.0
    %2787 = vmatprep.subr.mxu0 0.0
    %2788 = vmatpush1.msra.mxu0 0.0
    %2789 = vmatprep.subr.mxu0 0.0
    %2790 = vmatpush1.msra.mxu0 0.0
    %2791 = vmatprep.subr.mxu0 0.0
    %2792 = vmatpush1.msra.mxu0 0.0
    %2793 = vmatprep.subr.mxu0 0.0
    %2794 = vmatpush1.msra.mxu0 0.0
    %2795 = vmatprep.subr.mxu0 0.0
    %2796 = vmatpush1.msra.mxu0 0.0
    %2797 = vmatprep.subr.mxu0 0.0
    %2798 = vmatpush1.msra.mxu0 0.0
    %2799 = vmatprep.subr.mxu0 0.0
    %2800 = vmatpush1.msra.mxu0 0.0
    %2801 = vmatprep.subr.mxu0 0.0
    %2802 = vmatpush1.msra.mxu0 0.0
    %2803 = vmatprep.subr.mxu0 0.0
    %2804 = vmatpush1.msra.mxu0 0.0
    %2805 = vmatprep.subr.mxu0 0.0
    %2806 = vmatpush1.msra.mxu0 0.0
    %2807 = vmatprep.subr.mxu0 0.0
    %2808 = vmatpush1.msra.mxu0 0.0
    %2809 = vmatprep.subr.mxu0 0.0
    %2810 = vmatpush1.msra.mxu0 0.0
    %2811 = vmatprep.subr.mxu0 0.0
    %2812 = vmatpush1.msra.mxu0 0.0
    %2813 = vmatprep.mubr.f32.mxu0 0.0
    %2814 = vmatmul.mubr.f32.gmra.mrb[0].mxu0 %v2638
    %v2815 = vpop.f32.mrb[0].mxu0
    %v2816 = vadd.f32 %v2741, %v2815
    %v2817 = vpop.f32.mrb[0].mxu0
    %2818 = vmatprep.mubr.f32.mxu0 0.0
    %2819 = vmatmul.mubr.f32.gmra.mrb[0].mxu0 %v2639
    %v2820 = vpop.f32.mrb[0].mxu0
    %v2821 = vadd.f32 %v2746, %v2820
    %v2822 = vpop.f32.mrb[0].mxu0
    %2823 = vdwg.mxu0
    %s2824 = scalar_lea.vmem %s6, 128
    %v2825 = vld [vmem:[%s2824] sm:$0xff]
    %v2826 = vld [vmem:[%s2824 + $0x8] sm:$0xff]
    %v2827 = vld [vmem:[%s2824 + $0x10] sm:$0xff]
    %v2828 = vld [vmem:[%s2824 + $0x18] sm:$0xff]
    %v2829 = vld [vmem:[%s2824 + $0x20] sm:$0xff]
    %v2830 = vld [vmem:[%s2824 + $0x28] sm:$0xff]
    %v2831 = vld [vmem:[%s2824 + $0x30] sm:$0xff]
    %v2832 = vld [vmem:[%s2824 + $0x38] sm:$0xff]
    %v2833 = vld [vmem:[%s2824 + $0x40] sm:$0xff]
    %v2834 = vld [vmem:[%s2824 + $0x48] sm:$0xff]
    %v2835 = vld [vmem:[%s2824 + $0x50] sm:$0xff]
    %v2836 = vld [vmem:[%s2824 + $0x58] sm:$0xff]
    %v2837 = vld [vmem:[%s2824 + $0x60] sm:$0xff]
    %v2838 = vld [vmem:[%s2824 + $0x68] sm:$0xff]
    %v2839 = vld [vmem:[%s2824 + $0x70] sm:$0xff]
    %v2840 = vld [vmem:[%s2824 + $0x78] sm:$0xff]
    %2841 = vmatprep.subr.mxu0 0.0
    %2842 = vmatpush1.msra.mxu0 %v2825
    %2843 = vmatprep.subr.mxu0 0.0
    %2844 = vmatpush1.msra.mxu0 %v2826
    %2845 = vmatprep.subr.mxu0 0.0
    %2846 = vmatpush1.msra.mxu0 %v2827
    %2847 = vmatprep.subr.mxu0 0.0
    %2848 = vmatpush1.msra.mxu0 %v2828
    %2849 = vmatprep.subr.mxu0 0.0
    %2850 = vmatpush1.msra.mxu0 %v2829
    %2851 = vmatprep.subr.mxu0 0.0
    %2852 = vmatpush1.msra.mxu0 %v2830
    %2853 = vmatprep.subr.mxu0 0.0
    %2854 = vmatpush1.msra.mxu0 %v2831
    %2855 = vmatprep.subr.mxu0 0.0
    %2856 = vmatpush1.msra.mxu0 %v2832
    %2857 = vmatprep.subr.mxu0 0.0
    %2858 = vmatpush1.msra.mxu0 %v2833
    %2859 = vmatprep.subr.mxu0 0.0
    %2860 = vmatpush1.msra.mxu0 %v2834
    %2861 = vmatprep.subr.mxu0 0.0
    %2862 = vmatpush1.msra.mxu0 %v2835
    %2863 = vmatprep.subr.mxu0 0.0
    %2864 = vmatpush1.msra.mxu0 %v2836
    %2865 = vmatprep.subr.mxu0 0.0
    %2866 = vmatpush1.msra.mxu0 %v2837
    %2867 = vmatprep.subr.mxu0 0.0
    %2868 = vmatpush1.msra.mxu0 %v2838
    %2869 = vmatprep.subr.mxu0 0.0
    %2870 = vmatpush1.msra.mxu0 %v2839
    %2871 = vmatprep.subr.mxu0 0.0
    %2872 = vmatpush1.msra.mxu0 %v2840
    %2873 = vmatprep.subr.mxu0 0.0
    %2874 = vmatpush1.msra.mxu0 0.0
    %2875 = vmatprep.subr.mxu0 0.0
    %2876 = vmatpush1.msra.mxu0 0.0
    %2877 = vmatprep.subr.mxu0 0.0
    %2878 = vmatpush1.msra.mxu0 0.0
    %2879 = vmatprep.subr.mxu0 0.0
    %2880 = vmatpush1.msra.mxu0 0.0
    %2881 = vmatprep.subr.mxu0 0.0
    %2882 = vmatpush1.msra.mxu0 0.0
    %2883 = vmatprep.subr.mxu0 0.0
    %2884 = vmatpush1.msra.mxu0 0.0
    %2885 = vmatprep.subr.mxu0 0.0
    %2886 = vmatpush1.msra.mxu0 0.0
    %2887 = vmatprep.subr.mxu0 0.0
    %2888 = vmatpush1.msra.mxu0 0.0
    %2889 = vmatprep.subr.mxu0 0.0
    %2890 = vmatpush1.msra.mxu0 0.0
    %2891 = vmatprep.subr.mxu0 0.0
    %2892 = vmatpush1.msra.mxu0 0.0
    %2893 = vmatprep.subr.mxu0 0.0
    %2894 = vmatpush1.msra.mxu0 0.0
    %2895 = vmatprep.subr.mxu0 0.0
    %2896 = vmatpush1.msra.mxu0 0.0
    %2897 = vmatprep.subr.mxu0 0.0
    %2898 = vmatpush1.msra.mxu0 0.0
    %2899 = vmatprep.subr.mxu0 0.0
    %2900 = vmatpush1.msra.mxu0 0.0
    %2901 = vmatprep.subr.mxu0 0.0
    %2902 = vmatpush1.msra.mxu0 0.0
    %2903 = vmatprep.subr.mxu0 0.0
    %2904 = vmatpush1.msra.mxu0 0.0
    %2905 = vmatprep.mubr.f32.mxu0 0.0
    %2906 = vmatmul.mubr.f32.gmra.mrb[0].mxu0 %v2816
    %v2907 = vpop.f32.mrb[0].mxu0
    %v2908 = vadd.f32 0.0, %v2907
    %v2909 = vpop.f32.mrb[0].mxu0
    %2910 = vmatprep.mubr.f32.mxu0 0.0
    %2911 = vmatmul.mubr.f32.gmra.mrb[0].mxu0 %v2821
    %v2912 = vpop.f32.mrb[0].mxu0
    %v2913 = vadd.f32 0.0, %v2912
    %v2914 = vpop.f32.mrb[0].mxu0
    %2915 = vdwg.mxu0
    %s2916 = scalar_lea.vmem %s7, 512
    %v2917 = vld [vmem:[%s2916] sm:$0xff]
    %v2918 = vld [vmem:[%s2916 + $0x8] sm:$0xff]
    %v2919 = vld [vmem:[%s2916 + $0x10] sm:$0xff]
    %v2920 = vld [vmem:[%s2916 + $0x18] sm:$0xff]
    %v2921 = vld [vmem:[%s2916 + $0x20] sm:$0xff]
    %v2922 = vld [vmem:[%s2916 + $0x28] sm:$0xff]
    %v2923 = vld [vmem:[%s2916 + $0x30] sm:$0xff]
    %v2924 = vld [vmem:[%s2916 + $0x38] sm:$0xff]
    %v2925 = vld [vmem:[%s2916 + $0x40] sm:$0xff]
    %v2926 = vld [vmem:[%s2916 + $0x48] sm:$0xff]
    %v2927 = vld [vmem:[%s2916 + $0x50] sm:$0xff]
    %v2928 = vld [vmem:[%s2916 + $0x58] sm:$0xff]
    %v2929 = vld [vmem:[%s2916 + $0x60] sm:$0xff]
    %v2930 = vld [vmem:[%s2916 + $0x68] sm:$0xff]
    %v2931 = vld [vmem:[%s2916 + $0x70] sm:$0xff]
    %v2932 = vld [vmem:[%s2916 + $0x78] sm:$0xff]
    %2933 = vmatprep.subr.mxu0 0.0
    %2934 = vmatpush1.msra.mxu0 %v2917
    %2935 = vmatprep.subr.mxu0 0.0
    %2936 = vmatpush1.msra.mxu0 %v2918
    %2937 = vmatprep.subr.mxu0 0.0
    %2938 = vmatpush1.msra.mxu0 %v2919
    %2939 = vmatprep.subr.mxu0 0.0
    %2940 = vmatpush1.msra.mxu0 %v2920
    %2941 = vmatprep.subr.mxu0 0.0
    %2942 = vmatpush1.msra.mxu0 %v2921
    %2943 = vmatprep.subr.mxu0 0.0
    %2944 = vmatpush1.msra.mxu0 %v2922
    %2945 = vmatprep.subr.mxu0 0.0
    %2946 = vmatpush1.msra.mxu0 %v2923
    %2947 = vmatprep.subr.mxu0 0.0
    %2948 = vmatpush1.msra.mxu0 %v2924
    %2949 = vmatprep.subr.mxu0 0.0
    %2950 = vmatpush1.msra.mxu0 %v2925
    %2951 = vmatprep.subr.mxu0 0.0
    %2952 = vmatpush1.msra.mxu0 %v2926
    %2953 = vmatprep.subr.mxu0 0.0
    %2954 = vmatpush1.msra.mxu0 %v2927
    %2955 = vmatprep.subr.mxu0 0.0
    %2956 = vmatpush1.msra.mxu0 %v2928
    %2957 = vmatprep.subr.mxu0 0.0
    %2958 = vmatpush1.msra.mxu0 %v2929
    %2959 = vmatprep.subr.mxu0 0.0
    %2960 = vmatpush1.msra.mxu0 %v2930
    %2961 = vmatprep.subr.mxu0 0.0
    %2962 = vmatpush1.msra.mxu0 %v2931
    %2963 = vmatprep.subr.mxu0 0.0
    %2964 = vmatpush1.msra.mxu0 %v2932
    %2965 = vmatprep.subr.mxu0 0.0
    %2966 = vmatpush1.msra.mxu0 0.0
    %2967 = vmatprep.subr.mxu0 0.0
    %2968 = vmatpush1.msra.mxu0 0.0
    %2969 = vmatprep.subr.mxu0 0.0
    %2970 = vmatpush1.msra.mxu0 0.0
    %2971 = vmatprep.subr.mxu0 0.0
    %2972 = vmatpush1.msra.mxu0 0.0
    %2973 = vmatprep.subr.mxu0 0.0
    %2974 = vmatpush1.msra.mxu0 0.0
    %2975 = vmatprep.subr.mxu0 0.0
    %2976 = vmatpush1.msra.mxu0 0.0
    %2977 = vmatprep.subr.mxu0 0.0
    %2978 = vmatpush1.msra.mxu0 0.0
    %2979 = vmatprep.subr.mxu0 0.0
    %2980 = vmatpush1.msra.mxu0 0.0
    %2981 = vmatprep.subr.mxu0 0.0
    %2982 = vmatpush1.msra.mxu0 0.0
    %2983 = vmatprep.subr.mxu0 0.0
    %2984 = vmatpush1.msra.mxu0 0.0
    %2985 = vmatprep.subr.mxu0 0.0
    %2986 = vmatpush1.msra.mxu0 0.0
    %2987 = vmatprep.subr.mxu0 0.0
    %2988 = vmatpush1.msra.mxu0 0.0
    %2989 = vmatprep.subr.mxu0 0.0
    %2990 = vmatpush1.msra.mxu0 0.0
    %2991 = vmatprep.subr.mxu0 0.0
    %2992 = vmatpush1.msra.mxu0 0.0
    %2993 = vmatprep.subr.mxu0 0.0
    %2994 = vmatpush1.msra.mxu0 0.0
    %2995 = vmatprep.subr.mxu0 0.0
    %2996 = vmatpush1.msra.mxu0 0.0
    %2997 = vmatprep.mubr.f32.mxu0 0.0
    %2998 = vmatmul.mubr.f32.gmra.mrb[0].mxu0 %v2638
    %v2999 = vpop.f32.mrb[0].mxu0
    %v3000 = vadd.f32 0.0, %v2999
    %v3001 = vpop.f32.mrb[0].mxu0
    %3002 = vmatprep.mubr.f32.mxu0 0.0
    %3003 = vmatmul.mubr.f32.gmra.mrb[0].mxu0 %v2639
    %v3004 = vpop.f32.mrb[0].mxu0
    %v3005 = vadd.f32 0.0, %v3004
    %v3006 = vpop.f32.mrb[0].mxu0
    %3007 = vdwg.mxu0
    %s3008 = scalar_lea.vmem %s8, 256
    %v3009 = vld [vmem:[%s3008] sm:$0xff]
    %v3010 = vld [vmem:[%s3008 + $0x8] sm:$0xff]
    %v3011 = vld [vmem:[%s3008 + $0x10] sm:$0xff]
    %v3012 = vld [vmem:[%s3008 + $0x18] sm:$0xff]
    %v3013 = vld [vmem:[%s3008 + $0x20] sm:$0xff]
    %v3014 = vld [vmem:[%s3008 + $0x28] sm:$0xff]
    %v3015 = vld [vmem:[%s3008 + $0x30] sm:$0xff]
    %v3016 = vld [vmem:[%s3008 + $0x38] sm:$0xff]
    %v3018 = vsel %vm562, %v2908, 0
    %v3021 = vsel %vm562, %v2913, 0
    %3023 = vmatprep.subr.mxu0 0.0
    %3024 = vmatpush1.msra.mxu0 %v3009
    %3025 = vmatprep.subr.mxu0 0.0
    %3026 = vmatpush1.msra.mxu0 %v3010
    %3027 = vmatprep.subr.mxu0 0.0
    %3028 = vmatpush1.msra.mxu0 %v3011
    %3029 = vmatprep.subr.mxu0 0.0
    %3030 = vmatpush1.msra.mxu0 %v3012
    %3031 = vmatprep.subr.mxu0 0.0
    %3032 = vmatpush1.msra.mxu0 %v3013
    %3033 = vmatprep.subr.mxu0 0.0
    %3034 = vmatpush1.msra.mxu0 %v3014
    %3035 = vmatprep.subr.mxu0 0.0
    %3036 = vmatpush1.msra.mxu0 %v3015
    %3037 = vmatprep.subr.mxu0 0.0
    %3038 = vmatpush1.msra.mxu0 %v3016
    %3039 = vmatprep.subr.mxu0 0.0
    %3040 = vmatpush1.msra.mxu0 0.0
    %3041 = vmatprep.subr.mxu0 0.0
    %3042 = vmatpush1.msra.mxu0 0.0
    %3043 = vmatprep.subr.mxu0 0.0
    %3044 = vmatpush1.msra.mxu0 0.0
    %3045 = vmatprep.subr.mxu0 0.0
    %3046 = vmatpush1.msra.mxu0 0.0
    %3047 = vmatprep.subr.mxu0 0.0
    %3048 = vmatpush1.msra.mxu0 0.0
    %3049 = vmatprep.subr.mxu0 0.0
    %3050 = vmatpush1.msra.mxu0 0.0
    %3051 = vmatprep.subr.mxu0 0.0
    %3052 = vmatpush1.msra.mxu0 0.0
    %3053 = vmatprep.subr.mxu0 0.0
    %3054 = vmatpush1.msra.mxu0 0.0
    %3055 = vmatprep.subr.mxu0 0.0
    %3056 = vmatpush1.msra.mxu0 0.0
    %3057 = vmatprep.subr.mxu0 0.0
    %3058 = vmatpush1.msra.mxu0 0.0
    %3059 = vmatprep.subr.mxu0 0.0
    %3060 = vmatpush1.msra.mxu0 0.0
    %3061 = vmatprep.subr.mxu0 0.0
    %3062 = vmatpush1.msra.mxu0 0.0
    %3063 = vmatprep.subr.mxu0 0.0
    %3064 = vmatpush1.msra.mxu0 0.0
    %3065 = vmatprep.subr.mxu0 0.0
    %3066 = vmatpush1.msra.mxu0 0.0
    %3067 = vmatprep.subr.mxu0 0.0
    %3068 = vmatpush1.msra.mxu0 0.0
    %3069 = vmatprep.subr.mxu0 0.0
    %3070 = vmatpush1.msra.mxu0 0.0
    %3071 = vmatprep.subr.mxu0 0.0
    %3072 = vmatpush1.msra.mxu0 0.0
    %3073 = vmatprep.subr.mxu0 0.0
    %3074 = vmatpush1.msra.mxu0 0.0
    %3075 = vmatprep.subr.mxu0 0.0
    %3076 = vmatpush1.msra.mxu0 0.0
    %3077 = vmatprep.subr.mxu0 0.0
    %3078 = vmatpush1.msra.mxu0 0.0
    %3079 = vmatprep.subr.mxu0 0.0
    %3080 = vmatpush1.msra.mxu0 0.0
    %3081 = vmatprep.subr.mxu0 0.0
    %3082 = vmatpush1.msra.mxu0 0.0
    %3083 = vmatprep.subr.mxu0 0.0
    %3084 = vmatpush1.msra.mxu0 0.0
    %3085 = vmatprep.subr.mxu0 0.0
    %3086 = vmatpush1.msra.mxu0 0.0
    %3087 = vmatprep.mubr.f32.mxu0 0.0
    %3088 = vmatmul.mubr.f32.gmra.mrb[0].mxu0 %v3018
    %v3089 = vpop.f32.mrb[0].mxu0
    %v3090 = vadd.f32 0.0, %v3089
    %v3091 = vpop.f32.mrb[0].mxu0
    %3092 = vmatprep.mubr.f32.mxu0 0.0
    %3093 = vmatmul.mubr.f32.gmra.mrb[0].mxu0 %v3021
    %v3094 = vpop.f32.mrb[0].mxu0
    %v3095 = vadd.f32 0.0, %v3094
    %v3096 = vpop.f32.mrb[0].mxu0
    %3097 = vdwg.mxu0
    %s3098 = scalar_lea.vmem %s9, 256
    %v3099 = vld [vmem:[%s3098] sm:$0xff]
    %v3100 = vld [vmem:[%s3098 + $0x8] sm:$0xff]
    %v3101 = vld [vmem:[%s3098 + $0x10] sm:$0xff]
    %v3102 = vld [vmem:[%s3098 + $0x18] sm:$0xff]
    %v3103 = vld [vmem:[%s3098 + $0x20] sm:$0xff]
    %v3104 = vld [vmem:[%s3098 + $0x28] sm:$0xff]
    %v3105 = vld [vmem:[%s3098 + $0x30] sm:$0xff]
    %v3106 = vld [vmem:[%s3098 + $0x38] sm:$0xff]
    %3107 = vmatprep.subr.mxu0 0.0
    %3108 = vmatpush1.msra.mxu0 %v3099
    %3109 = vmatprep.subr.mxu0 0.0
    %3110 = vmatpush1.msra.mxu0 %v3100
    %3111 = vmatprep.subr.mxu0 0.0
    %3112 = vmatpush1.msra.mxu0 %v3101
    %3113 = vmatprep.subr.mxu0 0.0
    %3114 = vmatpush1.msra.mxu0 %v3102
    %3115 = vmatprep.subr.mxu0 0.0
    %3116 = vmatpush1.msra.mxu0 %v3103
    %3117 = vmatprep.subr.mxu0 0.0
    %3118 = vmatpush1.msra.mxu0 %v3104
    %3119 = vmatprep.subr.mxu0 0.0
    %3120 = vmatpush1.msra.mxu0 %v3105
    %3121 = vmatprep.subr.mxu0 0.0
    %3122 = vmatpush1.msra.mxu0 %v3106
    %3123 = vmatprep.subr.mxu0 0.0
    %3124 = vmatpush1.msra.mxu0 0.0
    %3125 = vmatprep.subr.mxu0 0.0
    %3126 = vmatpush1.msra.mxu0 0.0
    %3127 = vmatprep.subr.mxu0 0.0
    %3128 = vmatpush1.msra.mxu0 0.0
    %3129 = vmatprep.subr.mxu0 0.0
    %3130 = vmatpush1.msra.mxu0 0.0
    %3131 = vmatprep.subr.mxu0 0.0
    %3132 = vmatpush1.msra.mxu0 0.0
    %3133 = vmatprep.subr.mxu0 0.0
    %3134 = vmatpush1.msra.mxu0 0.0
    %3135 = vmatprep.subr.mxu0 0.0
    %3136 = vmatpush1.msra.mxu0 0.0
    %3137 = vmatprep.subr.mxu0 0.0
    %3138 = vmatpush1.msra.mxu0 0.0
    %3139 = vmatprep.subr.mxu0 0.0
    %3140 = vmatpush1.msra.mxu0 0.0
    %3141 = vmatprep.subr.mxu0 0.0
    %3142 = vmatpush1.msra.mxu0 0.0
    %3143 = vmatprep.subr.mxu0 0.0
    %3144 = vmatpush1.msra.mxu0 0.0
    %3145 = vmatprep.subr.mxu0 0.0
    %3146 = vmatpush1.msra.mxu0 0.0
    %3147 = vmatprep.subr.mxu0 0.0
    %3148 = vmatpush1.msra.mxu0 0.0
    %3149 = vmatprep.subr.mxu0 0.0
    %3150 = vmatpush1.msra.mxu0 0.0
    %3151 = vmatprep.subr.mxu0 0.0
    %3152 = vmatpush1.msra.mxu0 0.0
    %3153 = vmatprep.subr.mxu0 0.0
    %3154 = vmatpush1.msra.mxu0 0.0
    %3155 = vmatprep.subr.mxu0 0.0
    %3156 = vmatpush1.msra.mxu0 0.0
    %3157 = vmatprep.subr.mxu0 0.0
    %3158 = vmatpush1.msra.mxu0 0.0
    %3159 = vmatprep.subr.mxu0 0.0
    %3160 = vmatpush1.msra.mxu0 0.0
    %3161 = vmatprep.subr.mxu0 0.0
    %3162 = vmatpush1.msra.mxu0 0.0
    %3163 = vmatprep.subr.mxu0 0.0
    %3164 = vmatpush1.msra.mxu0 0.0
    %3165 = vmatprep.subr.mxu0 0.0
    %3166 = vmatpush1.msra.mxu0 0.0
    %3167 = vmatprep.subr.mxu0 0.0
    %3168 = vmatpush1.msra.mxu0 0.0
    %3169 = vmatprep.subr.mxu0 0.0
    %3170 = vmatpush1.msra.mxu0 0.0
    %3171 = vmatprep.mubr.f32.mxu0 0.0
    %3172 = vmatmul.mubr.f32.gmra.mrb[0].mxu0 %v3018
    %v3173 = vpop.f32.mrb[0].mxu0
    %v3174 = vadd.f32 0.0, %v3173
    %v3175 = vpop.f32.mrb[0].mxu0
    %3176 = vmatprep.mubr.f32.mxu0 0.0
    %3177 = vmatmul.mubr.f32.gmra.mrb[0].mxu0 %v3021
    %v3178 = vpop.f32.mrb[0].mxu0
    %v3179 = vadd.f32 0.0, %v3178
    %v3180 = vpop.f32.mrb[0].mxu0
    %3181 = vdwg.mxu0
    %v3183 = vsel %vm727, %v3000, 0
    %v3186 = vsel %vm727, %v3005, 0
    %v3189 = vsel %vm727, %v3090, 0
    %v3192 = vsel %vm727, %v3095, 0
    %3194 = vmatprep.subr.mxu0 0.0
    %3195 = vmatpush1.xpose.msra.mxu0 %v3189
    %3196 = vmatprep.subr.mxu0 0.0
    %3197 = vmatpush1.xpose.msra.mxu0 %v3192
    %3198 = vmatprep.subr.mxu0 0.0
    %3199 = vmatpush1.xpose.msra.mxu0 0.0
    %3200 = vmatprep.subr.mxu0 0.0
    %3201 = vmatpush1.xpose.msra.mxu0 0.0
    %3202 = vmatprep.subr.mxu0 0.0
    %3203 = vmatpush1.xpose.msra.mxu0 0.0
    %3204 = vmatprep.subr.mxu0 0.0
    %3205 = vmatpush1.xpose.msra.mxu0 0.0
    %3206 = vmatprep.subr.mxu0 0.0
    %3207 = vmatpush1.xpose.msra.mxu0 0.0
    %3208 = vmatprep.subr.mxu0 0.0
    %3209 = vmatpush1.xpose.msra.mxu0 0.0
    %3210 = vmatprep.subr.mxu0 0.0
    %3211 = vmatpush1.xpose.msra.mxu0 0.0
    %3212 = vmatprep.subr.mxu0 0.0
    %3213 = vmatpush1.xpose.msra.mxu0 0.0
    %3214 = vmatprep.subr.mxu0 0.0
    %3215 = vmatpush1.xpose.msra.mxu0 0.0
    %3216 = vmatprep.subr.mxu0 0.0
    %3217 = vmatpush1.xpose.msra.mxu0 0.0
    %3218 = vmatprep.subr.mxu0 0.0
    %3219 = vmatpush1.xpose.msra.mxu0 0.0
    %3220 = vmatprep.subr.mxu0 0.0
    %3221 = vmatpush1.xpose.msra.mxu0 0.0
    %3222 = vmatprep.subr.mxu0 0.0
    %3223 = vmatpush1.xpose.msra.mxu0 0.0
    %3224 = vmatprep.subr.mxu0 0.0
    %3225 = vmatpush1.xpose.msra.mxu0 0.0
    %3226 = vmatprep.subr.mxu0 0.0
    %3227 = vmatpush1.xpose.msra.mxu0 0.0
    %3228 = vmatprep.subr.mxu0 0.0
    %3229 = vmatpush1.xpose.msra.mxu0 0.0
    %3230 = vmatprep.subr.mxu0 0.0
    %3231 = vmatpush1.xpose.msra.mxu0 0.0
    %3232 = vmatprep.subr.mxu0 0.0
    %3233 = vmatpush1.xpose.msra.mxu0 0.0
    %3234 = vmatprep.subr.mxu0 0.0
    %3235 = vmatpush1.xpose.msra.mxu0 0.0
    %3236 = vmatprep.subr.mxu0 0.0
    %3237 = vmatpush1.xpose.msra.mxu0 0.0
    %3238 = vmatprep.subr.mxu0 0.0
    %3239 = vmatpush1.xpose.msra.mxu0 0.0
    %3240 = vmatprep.subr.mxu0 0.0
    %3241 = vmatpush1.xpose.msra.mxu0 0.0
    %3242 = vmatprep.subr.mxu0 0.0
    %3243 = vmatpush1.xpose.msra.mxu0 0.0
    %3244 = vmatprep.subr.mxu0 0.0
    %3245 = vmatpush1.xpose.msra.mxu0 0.0
    %3246 = vmatprep.subr.mxu0 0.0
    %3247 = vmatpush1.xpose.msra.mxu0 0.0
    %3248 = vmatprep.subr.mxu0 0.0
    %3249 = vmatpush1.xpose.msra.mxu0 0.0
    %3250 = vmatprep.subr.mxu0 0.0
    %3251 = vmatpush1.xpose.msra.mxu0 0.0
    %3252 = vmatprep.subr.mxu0 0.0
    %3253 = vmatpush1.xpose.msra.mxu0 0.0
    %3254 = vmatprep.subr.mxu0 0.0
    %3255 = vmatpush1.xpose.msra.mxu0 0.0
    %3256 = vmatprep.subr.mxu0 0.0
    %3257 = vmatpush1.xpose.msra.mxu0 0.0
    %3258 = vmatprep.mubr.f32.mxu0 0.0
    %3259 = vmatmul.mubr.f32.gmra.mrb[0].mxu0 %v3183
    %v3260 = vpop.f32.mrb[0].mxu0
    %v3261 = vadd.f32 0.0, %v3260
    %v3262 = vpop.f32.mrb[0].mxu0
    %3263 = vmatprep.mubr.f32.mxu0 0.0
    %3264 = vmatmul.mubr.f32.gmra.mrb[0].mxu0 %v3186
    %v3265 = vpop.f32.mrb[0].mxu0
    %v3266 = vadd.f32 0.0, %v3265
    %v3267 = vpop.f32.mrb[0].mxu0
    %3268 = vdwg.mxu0
    %v3269 = vmul.f32 %v3261, 0.088388346
    %v3270 = vmul.f32 %v3266, 0.088388346
    %v3271 = vmul.f32 %v3269, %v186
    %v3272 = vmul.f32 %v3270, %v187
    %v3273 = vadd.f32 %v3271, %v188
    %v3274 = vadd.f32 %v3272, %v189
    %v3275 = vsel %vm821, %v3273, -inf
    %3276 = vmax.xlane.f32.xlu0 %v3275
    %v3277 = vpop.xlane.xlu0 %3276
    %v3278 = vsel %vm821, %v3274, -inf
    %3279 = vmax.xlane.f32.xlu0 %v3278
    %v3280 = vpop.xlane.xlu0 %3279
    %v3281 = vsub.f32 %v3273, %v3277
    %v3282 = vsub.f32 %v3274, %v3280
    %v3283 = vmul.f32 %v3281, 1.442695
    %v3284 = vpow.pop %v3283
    %v3285 = vmul.f32 %v3282, 1.442695
    %v3286 = vpow.pop %v3285
    %v3287 = vsel %vm821, %v3284, 0.0
    %3288 = vadd.xlane.f32.xlu0 %v3287
    %v3289 = vpop.xlane.xlu0 %3288
    %v3290 = vsel %vm821, %v3286, 0.0
    %3291 = vadd.xlane.f32.xlu0 %v3290
    %v3292 = vpop.xlane.xlu0 %3291
    %v3293 = vrcp.pop %v3289
    %v3294 = vmul.f32 %v3284, %v3293
    %v3295 = vrcp.pop %v3292
    %v3296 = vmul.f32 %v3286, %v3295
    %v3298 = vsel %vm821, %v3294, 0
    %v3301 = vsel %vm821, %v3296, 0
    %3303 = vmatprep.subr.mxu0 0.0
    %3304 = vmatpush1.msra.mxu0 %v3174
    %3305 = vmatprep.subr.mxu0 0.0
    %3306 = vmatpush1.msra.mxu0 %v3179
    %3307 = vmatprep.subr.mxu0 0.0
    %3308 = vmatpush1.msra.mxu0 0.0
    %3309 = vmatprep.subr.mxu0 0.0
    %3310 = vmatpush1.msra.mxu0 0.0
    %3311 = vmatprep.subr.mxu0 0.0
    %3312 = vmatpush1.msra.mxu0 0.0
    %3313 = vmatprep.subr.mxu0 0.0
    %3314 = vmatpush1.msra.mxu0 0.0
    %3315 = vmatprep.subr.mxu0 0.0
    %3316 = vmatpush1.msra.mxu0 0.0
    %3317 = vmatprep.subr.mxu0 0.0
    %3318 = vmatpush1.msra.mxu0 0.0
    %3319 = vmatprep.subr.mxu0 0.0
    %3320 = vmatpush1.msra.mxu0 0.0
    %3321 = vmatprep.subr.mxu0 0.0
    %3322 = vmatpush1.msra.mxu0 0.0
    %3323 = vmatprep.subr.mxu0 0.0
    %3324 = vmatpush1.msra.mxu0 0.0
    %3325 = vmatprep.subr.mxu0 0.0
    %3326 = vmatpush1.msra.mxu0 0.0
    %3327 = vmatprep.subr.mxu0 0.0
    %3328 = vmatpush1.msra.mxu0 0.0
    %3329 = vmatprep.subr.mxu0 0.0
    %3330 = vmatpush1.msra.mxu0 0.0
    %3331 = vmatprep.subr.mxu0 0.0
    %3332 = vmatpush1.msra.mxu0 0.0
    %3333 = vmatprep.subr.mxu0 0.0
    %3334 = vmatpush1.msra.mxu0 0.0
    %3335 = vmatprep.subr.mxu0 0.0
    %3336 = vmatpush1.msra.mxu0 0.0
    %3337 = vmatprep.subr.mxu0 0.0
    %3338 = vmatpush1.msra.mxu0 0.0
    %3339 = vmatprep.subr.mxu0 0.0
    %3340 = vmatpush1.msra.mxu0 0.0
    %3341 = vmatprep.subr.mxu0 0.0
    %3342 = vmatpush1.msra.mxu0 0.0
    %3343 = vmatprep.subr.mxu0 0.0
    %3344 = vmatpush1.msra.mxu0 0.0
    %3345 = vmatprep.subr.mxu0 0.0
    %3346 = vmatpush1.msra.mxu0 0.0
    %3347 = vmatprep.subr.mxu0 0.0
    %3348 = vmatpush1.msra.mxu0 0.0
    %3349 = vmatprep.subr.mxu0 0.0
    %3350 = vmatpush1.msra.mxu0 0.0
    %3351 = vmatprep.subr.mxu0 0.0
    %3352 = vmatpush1.msra.mxu0 0.0
    %3353 = vmatprep.subr.mxu0 0.0
    %3354 = vmatpush1.msra.mxu0 0.0
    %3355 = vmatprep.subr.mxu0 0.0
    %3356 = vmatpush1.msra.mxu0 0.0
    %3357 = vmatprep.subr.mxu0 0.0
    %3358 = vmatpush1.msra.mxu0 0.0
    %3359 = vmatprep.subr.mxu0 0.0
    %3360 = vmatpush1.msra.mxu0 0.0
    %3361 = vmatprep.subr.mxu0 0.0
    %3362 = vmatpush1.msra.mxu0 0.0
    %3363 = vmatprep.subr.mxu0 0.0
    %3364 = vmatpush1.msra.mxu0 0.0
    %3365 = vmatprep.subr.mxu0 0.0
    %3366 = vmatpush1.msra.mxu0 0.0
    %3367 = vmatprep.mubr.f32.mxu0 0.0
    %3368 = vmatmul.mubr.f32.gmra.mrb[0].mxu0 %v3298
    %v3369 = vpop.f32.mrb[0].mxu0
    %v3370 = vadd.f32 0.0, %v3369
    %v3371 = vpop.f32.mrb[0].mxu0
    %3372 = vmatprep.mubr.f32.mxu0 0.0
    %3373 = vmatmul.mubr.f32.gmra.mrb[0].mxu0 %v3301
    %v3374 = vpop.f32.mrb[0].mxu0
    %v3375 = vadd.f32 0.0, %v3374
    %v3376 = vpop.f32.mrb[0].mxu0
    %3377 = vdwg.mxu0
    %s3378 = scalar_lea.vmem %s10, 128
    %v3379 = vld [vmem:[%s3378] sm:$0xff]
    %v3380 = vld [vmem:[%s3378 + $0x8] sm:$0xff]
    %v3381 = vld [vmem:[%s3378 + $0x10] sm:$0xff]
    %v3382 = vld [vmem:[%s3378 + $0x18] sm:$0xff]
    %s3383 = scalar_lea.vmem %s7, 640
    %v3384 = vld [vmem:[%s3383] sm:$0xff]
    %v3385 = vld [vmem:[%s3383 + $0x8] sm:$0xff]
    %v3386 = vld [vmem:[%s3383 + $0x10] sm:$0xff]
    %v3387 = vld [vmem:[%s3383 + $0x18] sm:$0xff]
    %v3388 = vld [vmem:[%s3383 + $0x20] sm:$0xff]
    %v3389 = vld [vmem:[%s3383 + $0x28] sm:$0xff]
    %v3390 = vld [vmem:[%s3383 + $0x30] sm:$0xff]
    %v3391 = vld [vmem:[%s3383 + $0x38] sm:$0xff]
    %v3392 = vld [vmem:[%s3383 + $0x40] sm:$0xff]
    %v3393 = vld [vmem:[%s3383 + $0x48] sm:$0xff]
    %v3394 = vld [vmem:[%s3383 + $0x50] sm:$0xff]
    %v3395 = vld [vmem:[%s3383 + $0x58] sm:$0xff]
    %v3396 = vld [vmem:[%s3383 + $0x60] sm:$0xff]
    %v3397 = vld [vmem:[%s3383 + $0x68] sm:$0xff]
    %v3398 = vld [vmem:[%s3383 + $0x70] sm:$0xff]
    %v3399 = vld [vmem:[%s3383 + $0x78] sm:$0xff]
    %3400 = vmatprep.subr.mxu0 0.0
    %3401 = vmatpush1.msra.mxu0 %v3384
    %3402 = vmatprep.subr.mxu0 0.0
    %3403 = vmatpush1.msra.mxu0 %v3385
    %3404 = vmatprep.subr.mxu0 0.0
    %3405 = vmatpush1.msra.mxu0 %v3386
    %3406 = vmatprep.subr.mxu0 0.0
    %3407 = vmatpush1.msra.mxu0 %v3387
    %3408 = vmatprep.subr.mxu0 0.0
    %3409 = vmatpush1.msra.mxu0 %v3388
    %3410 = vmatprep.subr.mxu0 0.0
    %3411 = vmatpush1.msra.mxu0 %v3389
    %3412 = vmatprep.subr.mxu0 0.0
    %3413 = vmatpush1.msra.mxu0 %v3390
    %3414 = vmatprep.subr.mxu0 0.0
    %3415 = vmatpush1.msra.mxu0 %v3391
    %3416 = vmatprep.subr.mxu0 0.0
    %3417 = vmatpush1.msra.mxu0 %v3392
    %3418 = vmatprep.subr.mxu0 0.0
    %3419 = vmatpush1.msra.mxu0 %v3393
    %3420 = vmatprep.subr.mxu0 0.0
    %3421 = vmatpush1.msra.mxu0 %v3394
    %3422 = vmatprep.subr.mxu0 0.0
    %3423 = vmatpush1.msra.mxu0 %v3395
    %3424 = vmatprep.subr.mxu0 0.0
    %3425 = vmatpush1.msra.mxu0 %v3396
    %3426 = vmatprep.subr.mxu0 0.0
    %3427 = vmatpush1.msra.mxu0 %v3397
    %3428 = vmatprep.subr.mxu0 0.0
    %3429 = vmatpush1.msra.mxu0 %v3398
    %3430 = vmatprep.subr.mxu0 0.0
    %3431 = vmatpush1.msra.mxu0 %v3399
    %3432 = vmatprep.subr.mxu0 0.0
    %3433 = vmatpush1.msra.mxu0 0.0
    %3434 = vmatprep.subr.mxu0 0.0
    %3435 = vmatpush1.msra.mxu0 0.0
    %3436 = vmatprep.subr.mxu0 0.0
    %3437 = vmatpush1.msra.mxu0 0.0
    %3438 = vmatprep.subr.mxu0 0.0
    %3439 = vmatpush1.msra.mxu0 0.0
    %3440 = vmatprep.subr.mxu0 0.0
    %3441 = vmatpush1.msra.mxu0 0.0
    %3442 = vmatprep.subr.mxu0 0.0
    %3443 = vmatpush1.msra.mxu0 0.0
    %3444 = vmatprep.subr.mxu0 0.0
    %3445 = vmatpush1.msra.mxu0 0.0
    %3446 = vmatprep.subr.mxu0 0.0
    %3447 = vmatpush1.msra.mxu0 0.0
    %3448 = vmatprep.subr.mxu0 0.0
    %3449 = vmatpush1.msra.mxu0 0.0
    %3450 = vmatprep.subr.mxu0 0.0
    %3451 = vmatpush1.msra.mxu0 0.0
    %3452 = vmatprep.subr.mxu0 0.0
    %3453 = vmatpush1.msra.mxu0 0.0
    %3454 = vmatprep.subr.mxu0 0.0
    %3455 = vmatpush1.msra.mxu0 0.0
    %3456 = vmatprep.subr.mxu0 0.0
    %3457 = vmatpush1.msra.mxu0 0.0
    %3458 = vmatprep.subr.mxu0 0.0
    %3459 = vmatpush1.msra.mxu0 0.0
    %3460 = vmatprep.subr.mxu0 0.0
    %3461 = vmatpush1.msra.mxu0 0.0
    %3462 = vmatprep.subr.mxu0 0.0
    %3463 = vmatpush1.msra.mxu0 0.0
    %3464 = vmatprep.mubr.f32.mxu0 0.0
    %3465 = vmatmul.mubr.f32.gmra.mrb[0].mxu0 %v2638
    %v3466 = vpop.f32.mrb[0].mxu0
    %v3467 = vadd.f32 0.0, %v3466
    %v3468 = vpop.f32.mrb[0].mxu0
    %3469 = vmatprep.mubr.f32.mxu0 0.0
    %3470 = vmatmul.mubr.f32.gmra.mrb[0].mxu0 %v2639
    %v3471 = vpop.f32.mrb[0].mxu0
    %v3472 = vadd.f32 0.0, %v3471
    %v3473 = vpop.f32.mrb[0].mxu0
    %3474 = vdwg.mxu0
    %s3475 = scalar_lea.vmem %s8, 320
    %v3476 = vld [vmem:[%s3475] sm:$0xff]
    %v3477 = vld [vmem:[%s3475 + $0x8] sm:$0xff]
    %v3478 = vld [vmem:[%s3475 + $0x10] sm:$0xff]
    %v3479 = vld [vmem:[%s3475 + $0x18] sm:$0xff]
    %v3480 = vld [vmem:[%s3475 + $0x20] sm:$0xff]
    %v3481 = vld [vmem:[%s3475 + $0x28] sm:$0xff]
    %v3482 = vld [vmem:[%s3475 + $0x30] sm:$0xff]
    %v3483 = vld [vmem:[%s3475 + $0x38] sm:$0xff]
    %3484 = vmatprep.subr.mxu0 0.0
    %3485 = vmatpush1.msra.mxu0 %v3476
    %3486 = vmatprep.subr.mxu0 0.0
    %3487 = vmatpush1.msra.mxu0 %v3477
    %3488 = vmatprep.subr.mxu0 0.0
    %3489 = vmatpush1.msra.mxu0 %v3478
    %3490 = vmatprep.subr.mxu0 0.0
    %3491 = vmatpush1.msra.mxu0 %v3479
    %3492 = vmatprep.subr.mxu0 0.0
    %3493 = vmatpush1.msra.mxu0 %v3480
    %3494 = vmatprep.subr.mxu0 0.0
    %3495 = vmatpush1.msra.mxu0 %v3481
    %3496 = vmatprep.subr.mxu0 0.0
    %3497 = vmatpush1.msra.mxu0 %v3482
    %3498 = vmatprep.subr.mxu0 0.0
    %3499 = vmatpush1.msra.mxu0 %v3483
    %3500 = vmatprep.subr.mxu0 0.0
    %3501 = vmatpush1.msra.mxu0 0.0
    %3502 = vmatprep.subr.mxu0 0.0
    %3503 = vmatpush1.msra.mxu0 0.0
    %3504 = vmatprep.subr.mxu0 0.0
    %3505 = vmatpush1.msra.mxu0 0.0
    %3506 = vmatprep.subr.mxu0 0.0
    %3507 = vmatpush1.msra.mxu0 0.0
    %3508 = vmatprep.subr.mxu0 0.0
    %3509 = vmatpush1.msra.mxu0 0.0
    %3510 = vmatprep.subr.mxu0 0.0
    %3511 = vmatpush1.msra.mxu0 0.0
    %3512 = vmatprep.subr.mxu0 0.0
    %3513 = vmatpush1.msra.mxu0 0.0
    %3514 = vmatprep.subr.mxu0 0.0
    %3515 = vmatpush1.msra.mxu0 0.0
    %3516 = vmatprep.subr.mxu0 0.0
    %3517 = vmatpush1.msra.mxu0 0.0
    %3518 = vmatprep.subr.mxu0 0.0
    %3519 = vmatpush1.msra.mxu0 0.0
    %3520 = vmatprep.subr.mxu0 0.0
    %3521 = vmatpush1.msra.mxu0 0.0
    %3522 = vmatprep.subr.mxu0 0.0
    %3523 = vmatpush1.msra.mxu0 0.0
    %3524 = vmatprep.subr.mxu0 0.0
    %3525 = vmatpush1.msra.mxu0 0.0
    %3526 = vmatprep.subr.mxu0 0.0
    %3527 = vmatpush1.msra.mxu0 0.0
    %3528 = vmatprep.subr.mxu0 0.0
    %3529 = vmatpush1.msra.mxu0 0.0
    %3530 = vmatprep.subr.mxu0 0.0
    %3531 = vmatpush1.msra.mxu0 0.0
    %3532 = vmatprep.subr.mxu0 0.0
    %3533 = vmatpush1.msra.mxu0 0.0
    %3534 = vmatprep.subr.mxu0 0.0
    %3535 = vmatpush1.msra.mxu0 0.0
    %3536 = vmatprep.subr.mxu0 0.0
    %3537 = vmatpush1.msra.mxu0 0.0
    %3538 = vmatprep.subr.mxu0 0.0
    %3539 = vmatpush1.msra.mxu0 0.0
    %3540 = vmatprep.subr.mxu0 0.0
    %3541 = vmatpush1.msra.mxu0 0.0
    %3542 = vmatprep.subr.mxu0 0.0
    %3543 = vmatpush1.msra.mxu0 0.0
    %3544 = vmatprep.subr.mxu0 0.0
    %3545 = vmatpush1.msra.mxu0 0.0
    %3546 = vmatprep.subr.mxu0 0.0
    %3547 = vmatpush1.msra.mxu0 0.0
    %3548 = vmatprep.mubr.f32.mxu0 0.0
    %3549 = vmatmul.mubr.f32.gmra.mrb[0].mxu0 %v3018
    %v3550 = vpop.f32.mrb[0].mxu0
    %v3551 = vadd.f32 0.0, %v3550
    %v3552 = vpop.f32.mrb[0].mxu0
    %3553 = vmatprep.mubr.f32.mxu0 0.0
    %3554 = vmatmul.mubr.f32.gmra.mrb[0].mxu0 %v3021
    %v3555 = vpop.f32.mrb[0].mxu0
    %v3556 = vadd.f32 0.0, %v3555
    %v3557 = vpop.f32.mrb[0].mxu0
    %3558 = vdwg.mxu0
    %s3559 = scalar_lea.vmem %s9, 320
    %v3560 = vld [vmem:[%s3559] sm:$0xff]
    %v3561 = vld [vmem:[%s3559 + $0x8] sm:$0xff]
    %v3562 = vld [vmem:[%s3559 + $0x10] sm:$0xff]
    %v3563 = vld [vmem:[%s3559 + $0x18] sm:$0xff]
    %v3564 = vld [vmem:[%s3559 + $0x20] sm:$0xff]
    %v3565 = vld [vmem:[%s3559 + $0x28] sm:$0xff]
    %v3566 = vld [vmem:[%s3559 + $0x30] sm:$0xff]
    %v3567 = vld [vmem:[%s3559 + $0x38] sm:$0xff]
    %3568 = vmatprep.subr.mxu0 0.0
    %3569 = vmatpush1.msra.mxu0 %v3560
    %3570 = vmatprep.subr.mxu0 0.0
    %3571 = vmatpush1.msra.mxu0 %v3561
    %3572 = vmatprep.subr.mxu0 0.0
    %3573 = vmatpush1.msra.mxu0 %v3562
    %3574 = vmatprep.subr.mxu0 0.0
    %3575 = vmatpush1.msra.mxu0 %v3563
    %3576 = vmatprep.subr.mxu0 0.0
    %3577 = vmatpush1.msra.mxu0 %v3564
    %3578 = vmatprep.subr.mxu0 0.0
    %3579 = vmatpush1.msra.mxu0 %v3565
    %3580 = vmatprep.subr.mxu0 0.0
    %3581 = vmatpush1.msra.mxu0 %v3566
    %3582 = vmatprep.subr.mxu0 0.0
    %3583 = vmatpush1.msra.mxu0 %v3567
    %3584 = vmatprep.subr.mxu0 0.0
    %3585 = vmatpush1.msra.mxu0 0.0
    %3586 = vmatprep.subr.mxu0 0.0
    %3587 = vmatpush1.msra.mxu0 0.0
    %3588 = vmatprep.subr.mxu0 0.0
    %3589 = vmatpush1.msra.mxu0 0.0
    %3590 = vmatprep.subr.mxu0 0.0
    %3591 = vmatpush1.msra.mxu0 0.0
    %3592 = vmatprep.subr.mxu0 0.0
    %3593 = vmatpush1.msra.mxu0 0.0
    %3594 = vmatprep.subr.mxu0 0.0
    %3595 = vmatpush1.msra.mxu0 0.0
    %3596 = vmatprep.subr.mxu0 0.0
    %3597 = vmatpush1.msra.mxu0 0.0
    %3598 = vmatprep.subr.mxu0 0.0
    %3599 = vmatpush1.msra.mxu0 0.0
    %3600 = vmatprep.subr.mxu0 0.0
    %3601 = vmatpush1.msra.mxu0 0.0
    %3602 = vmatprep.subr.mxu0 0.0
    %3603 = vmatpush1.msra.mxu0 0.0
    %3604 = vmatprep.subr.mxu0 0.0
    %3605 = vmatpush1.msra.mxu0 0.0
    %3606 = vmatprep.subr.mxu0 0.0
    %3607 = vmatpush1.msra.mxu0 0.0
    %3608 = vmatprep.subr.mxu0 0.0
    %3609 = vmatpush1.msra.mxu0 0.0
    %3610 = vmatprep.subr.mxu0 0.0
    %3611 = vmatpush1.msra.mxu0 0.0
    %3612 = vmatprep.subr.mxu0 0.0
    %3613 = vmatpush1.msra.mxu0 0.0
    %3614 = vmatprep.subr.mxu0 0.0
    %3615 = vmatpush1.msra.mxu0 0.0
    %3616 = vmatprep.subr.mxu0 0.0
    %3617 = vmatpush1.msra.mxu0 0.0
    %3618 = vmatprep.subr.mxu0 0.0
    %3619 = vmatpush1.msra.mxu0 0.0
    %3620 = vmatprep.subr.mxu0 0.0
    %3621 = vmatpush1.msra.mxu0 0.0
    %3622 = vmatprep.subr.mxu0 0.0
    %3623 = vmatpush1.msra.mxu0 0.0
    %3624 = vmatprep.subr.mxu0 0.0
    %3625 = vmatpush1.msra.mxu0 0.0
    %3626 = vmatprep.subr.mxu0 0.0
    %3627 = vmatpush1.msra.mxu0 0.0
    %3628 = vmatprep.subr.mxu0 0.0
    %3629 = vmatpush1.msra.mxu0 0.0
    %3630 = vmatprep.subr.mxu0 0.0
    %3631 = vmatpush1.msra.mxu0 0.0
    %3632 = vmatprep.mubr.f32.mxu0 0.0
    %3633 = vmatmul.mubr.f32.gmra.mrb[0].mxu0 %v3018
    %v3634 = vpop.f32.mrb[0].mxu0
    %v3635 = vadd.f32 0.0, %v3634
    %v3636 = vpop.f32.mrb[0].mxu0
    %3637 = vmatprep.mubr.f32.mxu0 0.0
    %3638 = vmatmul.mubr.f32.gmra.mrb[0].mxu0 %v3021
    %v3639 = vpop.f32.mrb[0].mxu0
    %v3640 = vadd.f32 0.0, %v3639
    %v3641 = vpop.f32.mrb[0].mxu0
    %3642 = vdwg.mxu0
    %v3644 = vsel %vm727, %v3467, 0
    %v3647 = vsel %vm727, %v3472, 0
    %v3650 = vsel %vm727, %v3551, 0
    %v3653 = vsel %vm727, %v3556, 0
    %3655 = vmatprep.subr.mxu0 0.0
    %3656 = vmatpush1.xpose.msra.mxu0 %v3650
    %3657 = vmatprep.subr.mxu0 0.0
    %3658 = vmatpush1.xpose.msra.mxu0 %v3653
    %3659 = vmatprep.subr.mxu0 0.0
    %3660 = vmatpush1.xpose.msra.mxu0 0.0
    %3661 = vmatprep.subr.mxu0 0.0
    %3662 = vmatpush1.xpose.msra.mxu0 0.0
    %3663 = vmatprep.subr.mxu0 0.0
    %3664 = vmatpush1.xpose.msra.mxu0 0.0
    %3665 = vmatprep.subr.mxu0 0.0
    %3666 = vmatpush1.xpose.msra.mxu0 0.0
    %3667 = vmatprep.subr.mxu0 0.0
    %3668 = vmatpush1.xpose.msra.mxu0 0.0
    %3669 = vmatprep.subr.mxu0 0.0
    %3670 = vmatpush1.xpose.msra.mxu0 0.0
    %3671 = vmatprep.subr.mxu0 0.0
    %3672 = vmatpush1.xpose.msra.mxu0 0.0
    %3673 = vmatprep.subr.mxu0 0.0
    %3674 = vmatpush1.xpose.msra.mxu0 0.0
    %3675 = vmatprep.subr.mxu0 0.0
    %3676 = vmatpush1.xpose.msra.mxu0 0.0
    %3677 = vmatprep.subr.mxu0 0.0
    %3678 = vmatpush1.xpose.msra.mxu0 0.0
    %3679 = vmatprep.subr.mxu0 0.0
    %3680 = vmatpush1.xpose.msra.mxu0 0.0
    %3681 = vmatprep.subr.mxu0 0.0
    %3682 = vmatpush1.xpose.msra.mxu0 0.0
    %3683 = vmatprep.subr.mxu0 0.0
    %3684 = vmatpush1.xpose.msra.mxu0 0.0
    %3685 = vmatprep.subr.mxu0 0.0
    %3686 = vmatpush1.xpose.msra.mxu0 0.0
    %3687 = vmatprep.subr.mxu0 0.0
    %3688 = vmatpush1.xpose.msra.mxu0 0.0
    %3689 = vmatprep.subr.mxu0 0.0
    %3690 = vmatpush1.xpose.msra.mxu0 0.0
    %3691 = vmatprep.subr.mxu0 0.0
    %3692 = vmatpush1.xpose.msra.mxu0 0.0
    %3693 = vmatprep.subr.mxu0 0.0
    %3694 = vmatpush1.xpose.msra.mxu0 0.0
    %3695 = vmatprep.subr.mxu0 0.0
    %3696 = vmatpush1.xpose.msra.mxu0 0.0
    %3697 = vmatprep.subr.mxu0 0.0
    %3698 = vmatpush1.xpose.msra.mxu0 0.0
    %3699 = vmatprep.subr.mxu0 0.0
    %3700 = vmatpush1.xpose.msra.mxu0 0.0
    %3701 = vmatprep.subr.mxu0 0.0
    %3702 = vmatpush1.xpose.msra.mxu0 0.0
    %3703 = vmatprep.subr.mxu0 0.0
    %3704 = vmatpush1.xpose.msra.mxu0 0.0
    %3705 = vmatprep.subr.mxu0 0.0
    %3706 = vmatpush1.xpose.msra.mxu0 0.0
    %3707 = vmatprep.subr.mxu0 0.0
    %3708 = vmatpush1.xpose.msra.mxu0 0.0
    %3709 = vmatprep.subr.mxu0 0.0
    %3710 = vmatpush1.xpose.msra.mxu0 0.0
    %3711 = vmatprep.subr.mxu0 0.0
    %3712 = vmatpush1.xpose.msra.mxu0 0.0
    %3713 = vmatprep.subr.mxu0 0.0
    %3714 = vmatpush1.xpose.msra.mxu0 0.0
    %3715 = vmatprep.subr.mxu0 0.0
    %3716 = vmatpush1.xpose.msra.mxu0 0.0
    %3717 = vmatprep.subr.mxu0 0.0
    %3718 = vmatpush1.xpose.msra.mxu0 0.0
    %3719 = vmatprep.mubr.f32.mxu0 0.0
    %3720 = vmatmul.mubr.f32.gmra.mrb[0].mxu0 %v3644
    %v3721 = vpop.f32.mrb[0].mxu0
    %v3722 = vadd.f32 0.0, %v3721
    %v3723 = vpop.f32.mrb[0].mxu0
    %3724 = vmatprep.mubr.f32.mxu0 0.0
    %3725 = vmatmul.mubr.f32.gmra.mrb[0].mxu0 %v3647
    %v3726 = vpop.f32.mrb[0].mxu0
    %v3727 = vadd.f32 0.0, %v3726
    %v3728 = vpop.f32.mrb[0].mxu0
    %3729 = vdwg.mxu0
    %v3730 = vmul.f32 %v3722, 0.088388346
    %v3731 = vmul.f32 %v3727, 0.088388346
    %v3732 = vmul.f32 %v3730, %v186
    %v3733 = vmul.f32 %v3731, %v187
    %v3734 = vadd.f32 %v3732, %v188
    %v3735 = vadd.f32 %v3733, %v189
    %v3736 = vsel %vm821, %v3734, -inf
    %3737 = vmax.xlane.f32.xlu0 %v3736
    %v3738 = vpop.xlane.xlu0 %3737
    %v3739 = vsel %vm821, %v3735, -inf
    %3740 = vmax.xlane.f32.xlu0 %v3739
    %v3741 = vpop.xlane.xlu0 %3740
    %v3742 = vsub.f32 %v3734, %v3738
    %v3743 = vsub.f32 %v3735, %v3741
    %v3744 = vmul.f32 %v3742, 1.442695
    %v3745 = vpow.pop %v3744
    %v3746 = vmul.f32 %v3743, 1.442695
    %v3747 = vpow.pop %v3746
    %v3748 = vsel %vm821, %v3745, 0.0
    %3749 = vadd.xlane.f32.xlu0 %v3748
    %v3750 = vpop.xlane.xlu0 %3749
    %v3751 = vsel %vm821, %v3747, 0.0
    %3752 = vadd.xlane.f32.xlu0 %v3751
    %v3753 = vpop.xlane.xlu0 %3752
    %v3754 = vrcp.pop %v3750
    %v3755 = vmul.f32 %v3745, %v3754
    %v3756 = vrcp.pop %v3753
    %v3757 = vmul.f32 %v3747, %v3756
    %v3759 = vsel %vm821, %v3755, 0
    %v3762 = vsel %vm821, %v3757, 0
    %3764 = vmatprep.subr.mxu0 0.0
    %3765 = vmatpush1.msra.mxu0 %v3635
    %3766 = vmatprep.subr.mxu0 0.0
    %3767 = vmatpush1.msra.mxu0 %v3640
    %3768 = vmatprep.subr.mxu0 0.0
    %3769 = vmatpush1.msra.mxu0 0.0
    %3770 = vmatprep.subr.mxu0 0.0
    %3771 = vmatpush1.msra.mxu0 0.0
    %3772 = vmatprep.subr.mxu0 0.0
    %3773 = vmatpush1.msra.mxu0 0.0
    %3774 = vmatprep.subr.mxu0 0.0
    %3775 = vmatpush1.msra.mxu0 0.0
    %3776 = vmatprep.subr.mxu0 0.0
    %3777 = vmatpush1.msra.mxu0 0.0
    %3778 = vmatprep.subr.mxu0 0.0
    %3779 = vmatpush1.msra.mxu0 0.0
    %3780 = vmatprep.subr.mxu0 0.0
    %3781 = vmatpush1.msra.mxu0 0.0
    %3782 = vmatprep.subr.mxu0 0.0
    %3783 = vmatpush1.msra.mxu0 0.0
    %3784 = vmatprep.subr.mxu0 0.0
    %3785 = vmatpush1.msra.mxu0 0.0
    %3786 = vmatprep.subr.mxu0 0.0
    %3787 = vmatpush1.msra.mxu0 0.0
    %3788 = vmatprep.subr.mxu0 0.0
    %3789 = vmatpush1.msra.mxu0 0.0
    %3790 = vmatprep.subr.mxu0 0.0
    %3791 = vmatpush1.msra.mxu0 0.0
    %3792 = vmatprep.subr.mxu0 0.0
    %3793 = vmatpush1.msra.mxu0 0.0
    %3794 = vmatprep.subr.mxu0 0.0
    %3795 = vmatpush1.msra.mxu0 0.0
    %3796 = vmatprep.subr.mxu0 0.0
    %3797 = vmatpush1.msra.mxu0 0.0
    %3798 = vmatprep.subr.mxu0 0.0
    %3799 = vmatpush1.msra.mxu0 0.0
    %3800 = vmatprep.subr.mxu0 0.0
    %3801 = vmatpush1.msra.mxu0 0.0
    %3802 = vmatprep.subr.mxu0 0.0
    %3803 = vmatpush1.msra.mxu0 0.0
    %3804 = vmatprep.subr.mxu0 0.0
    %3805 = vmatpush1.msra.mxu0 0.0
    %3806 = vmatprep.subr.mxu0 0.0
    %3807 = vmatpush1.msra.mxu0 0.0
    %3808 = vmatprep.subr.mxu0 0.0
    %3809 = vmatpush1.msra.mxu0 0.0
    %3810 = vmatprep.subr.mxu0 0.0
    %3811 = vmatpush1.msra.mxu0 0.0
    %3812 = vmatprep.subr.mxu0 0.0
    %3813 = vmatpush1.msra.mxu0 0.0
    %3814 = vmatprep.subr.mxu0 0.0
    %3815 = vmatpush1.msra.mxu0 0.0
    %3816 = vmatprep.subr.mxu0 0.0
    %3817 = vmatpush1.msra.mxu0 0.0
    %3818 = vmatprep.subr.mxu0 0.0
    %3819 = vmatpush1.msra.mxu0 0.0
    %3820 = vmatprep.subr.mxu0 0.0
    %3821 = vmatpush1.msra.mxu0 0.0
    %3822 = vmatprep.subr.mxu0 0.0
    %3823 = vmatpush1.msra.mxu0 0.0
    %3824 = vmatprep.subr.mxu0 0.0
    %3825 = vmatpush1.msra.mxu0 0.0
    %3826 = vmatprep.subr.mxu0 0.0
    %3827 = vmatpush1.msra.mxu0 0.0
    %3828 = vmatprep.mubr.f32.mxu0 0.0
    %3829 = vmatmul.mubr.f32.gmra.mrb[0].mxu0 %v3759
    %v3830 = vpop.f32.mrb[0].mxu0
    %v3831 = vadd.f32 0.0, %v3830
    %v3832 = vpop.f32.mrb[0].mxu0
    %3833 = vmatprep.mubr.f32.mxu0 0.0
    %3834 = vmatmul.mubr.f32.gmra.mrb[0].mxu0 %v3762
    %v3835 = vpop.f32.mrb[0].mxu0
    %v3836 = vadd.f32 0.0, %v3835
    %v3837 = vpop.f32.mrb[0].mxu0
    %3838 = vdwg.mxu0
    %s3839 = scalar_lea.vmem %s10, 160
    %v3840 = vld [vmem:[%s3839] sm:$0xff]
    %v3841 = vld [vmem:[%s3839 + $0x8] sm:$0xff]
    %v3842 = vld [vmem:[%s3839 + $0x10] sm:$0xff]
    %v3843 = vld [vmem:[%s3839 + $0x18] sm:$0xff]
    %v3845 = vsel %vm727, %v3831, 0
    %v3848 = vsel %vm727, %v3836, 0
    %3850 = vmatprep.subr.mxu0 0.0
    %3851 = vmatpush1.msra.mxu0 %v3840
    %3852 = vmatprep.subr.mxu0 0.0
    %3853 = vmatpush1.msra.mxu0 %v3841
    %3854 = vmatprep.subr.mxu0 0.0
    %3855 = vmatpush1.msra.mxu0 %v3842
    %3856 = vmatprep.subr.mxu0 0.0
    %3857 = vmatpush1.msra.mxu0 %v3843
    %3858 = vmatprep.subr.mxu0 0.0
    %3859 = vmatpush1.msra.mxu0 0.0
    %3860 = vmatprep.subr.mxu0 0.0
    %3861 = vmatpush1.msra.mxu0 0.0
    %3862 = vmatprep.subr.mxu0 0.0
    %3863 = vmatpush1.msra.mxu0 0.0
    %3864 = vmatprep.subr.mxu0 0.0
    %3865 = vmatpush1.msra.mxu0 0.0
    %3866 = vmatprep.subr.mxu0 0.0
    %3867 = vmatpush1.msra.mxu0 0.0
    %3868 = vmatprep.subr.mxu0 0.0
    %3869 = vmatpush1.msra.mxu0 0.0
    %3870 = vmatprep.subr.mxu0 0.0
    %3871 = vmatpush1.msra.mxu0 0.0
    %3872 = vmatprep.subr.mxu0 0.0
    %3873 = vmatpush1.msra.mxu0 0.0
    %3874 = vmatprep.subr.mxu0 0.0
    %3875 = vmatpush1.msra.mxu0 0.0
    %3876 = vmatprep.subr.mxu0 0.0
    %3877 = vmatpush1.msra.mxu0 0.0
    %3878 = vmatprep.subr.mxu0 0.0
    %3879 = vmatpush1.msra.mxu0 0.0
    %3880 = vmatprep.subr.mxu0 0.0
    %3881 = vmatpush1.msra.mxu0 0.0
    %3882 = vmatprep.subr.mxu0 0.0
    %3883 = vmatpush1.msra.mxu0 0.0
    %3884 = vmatprep.subr.mxu0 0.0
    %3885 = vmatpush1.msra.mxu0 0.0
    %3886 = vmatprep.subr.mxu0 0.0
    %3887 = vmatpush1.msra.mxu0 0.0
    %3888 = vmatprep.subr.mxu0 0.0
    %3889 = vmatpush1.msra.mxu0 0.0
    %3890 = vmatprep.subr.mxu0 0.0
    %3891 = vmatpush1.msra.mxu0 0.0
    %3892 = vmatprep.subr.mxu0 0.0
    %3893 = vmatpush1.msra.mxu0 0.0
    %3894 = vmatprep.subr.mxu0 0.0
    %3895 = vmatpush1.msra.mxu0 0.0
    %3896 = vmatprep.subr.mxu0 0.0
    %3897 = vmatpush1.msra.mxu0 0.0
    %3898 = vmatprep.subr.mxu0 0.0
    %3899 = vmatpush1.msra.mxu0 0.0
    %3900 = vmatprep.subr.mxu0 0.0
    %3901 = vmatpush1.msra.mxu0 0.0
    %3902 = vmatprep.subr.mxu0 0.0
    %3903 = vmatpush1.msra.mxu0 0.0
    %3904 = vmatprep.subr.mxu0 0.0
    %3905 = vmatpush1.msra.mxu0 0.0
    %3906 = vmatprep.subr.mxu0 0.0
    %3907 = vmatpush1.msra.mxu0 0.0
    %3908 = vmatprep.subr.mxu0 0.0
    %3909 = vmatpush1.msra.mxu0 0.0
    %3910 = vmatprep.subr.mxu0 0.0
    %3911 = vmatpush1.msra.mxu0 0.0
    %3912 = vmatprep.subr.mxu0 0.0
    %3913 = vmatpush1.msra.mxu0 0.0
    %3914 = vmatprep.mubr.f32.mxu0 0.0
    %3915 = vmatmul.mubr.f32.gmra.mrb[0].mxu0 %v3845
    %v3916 = vpop.f32.mrb[0].mxu0
    %v3917 = vadd.f32 0.0, %v3916
    %v3918 = vpop.f32.mrb[0].mxu0
    %3919 = vmatprep.mubr.f32.mxu0 0.0
    %3920 = vmatmul.mubr.f32.gmra.mrb[0].mxu0 %v3848
    %v3921 = vpop.f32.mrb[0].mxu0
    %v3922 = vadd.f32 0.0, %v3921
    %v3923 = vpop.f32.mrb[0].mxu0
    %3924 = vdwg.mxu0
    %v3926 = vsel %vm727, %v3370, 0
    %v3929 = vsel %vm727, %v3375, 0
    %3931 = vmatprep.subr.mxu0 0.0
    %3932 = vmatpush1.msra.mxu0 %v3379
    %3933 = vmatprep.subr.mxu0 0.0
    %3934 = vmatpush1.msra.mxu0 %v3380
    %3935 = vmatprep.subr.mxu0 0.0
    %3936 = vmatpush1.msra.mxu0 %v3381
    %3937 = vmatprep.subr.mxu0 0.0
    %3938 = vmatpush1.msra.mxu0 %v3382
    %3939 = vmatprep.subr.mxu0 0.0
    %3940 = vmatpush1.msra.mxu0 0.0
    %3941 = vmatprep.subr.mxu0 0.0
    %3942 = vmatpush1.msra.mxu0 0.0
    %3943 = vmatprep.subr.mxu0 0.0
    %3944 = vmatpush1.msra.mxu0 0.0
    %3945 = vmatprep.subr.mxu0 0.0
    %3946 = vmatpush1.msra.mxu0 0.0
    %3947 = vmatprep.subr.mxu0 0.0
    %3948 = vmatpush1.msra.mxu0 0.0
    %3949 = vmatprep.subr.mxu0 0.0
    %3950 = vmatpush1.msra.mxu0 0.0
    %3951 = vmatprep.subr.mxu0 0.0
    %3952 = vmatpush1.msra.mxu0 0.0
    %3953 = vmatprep.subr.mxu0 0.0
    %3954 = vmatpush1.msra.mxu0 0.0
    %3955 = vmatprep.subr.mxu0 0.0
    %3956 = vmatpush1.msra.mxu0 0.0
    %3957 = vmatprep.subr.mxu0 0.0
    %3958 = vmatpush1.msra.mxu0 0.0
    %3959 = vmatprep.subr.mxu0 0.0
    %3960 = vmatpush1.msra.mxu0 0.0
    %3961 = vmatprep.subr.mxu0 0.0
    %3962 = vmatpush1.msra.mxu0 0.0
    %3963 = vmatprep.subr.mxu0 0.0
    %3964 = vmatpush1.msra.mxu0 0.0
    %3965 = vmatprep.subr.mxu0 0.0
    %3966 = vmatpush1.msra.mxu0 0.0
    %3967 = vmatprep.subr.mxu0 0.0
    %3968 = vmatpush1.msra.mxu0 0.0
    %3969 = vmatprep.subr.mxu0 0.0
    %3970 = vmatpush1.msra.mxu0 0.0
    %3971 = vmatprep.subr.mxu0 0.0
    %3972 = vmatpush1.msra.mxu0 0.0
    %3973 = vmatprep.subr.mxu0 0.0
    %3974 = vmatpush1.msra.mxu0 0.0
    %3975 = vmatprep.subr.mxu0 0.0
    %3976 = vmatpush1.msra.mxu0 0.0
    %3977 = vmatprep.subr.mxu0 0.0
    %3978 = vmatpush1.msra.mxu0 0.0
    %3979 = vmatprep.subr.mxu0 0.0
    %3980 = vmatpush1.msra.mxu0 0.0
    %3981 = vmatprep.subr.mxu0 0.0
    %3982 = vmatpush1.msra.mxu0 0.0
    %3983 = vmatprep.subr.mxu0 0.0
    %3984 = vmatpush1.msra.mxu0 0.0
    %3985 = vmatprep.subr.mxu0 0.0
    %3986 = vmatpush1.msra.mxu0 0.0
    %3987 = vmatprep.subr.mxu0 0.0
    %3988 = vmatpush1.msra.mxu0 0.0
    %3989 = vmatprep.subr.mxu0 0.0
    %3990 = vmatpush1.msra.mxu0 0.0
    %3991 = vmatprep.subr.mxu0 0.0
    %3992 = vmatpush1.msra.mxu0 0.0
    %3993 = vmatprep.subr.mxu0 0.0
    %3994 = vmatpush1.msra.mxu0 0.0
    %3995 = vmatprep.mubr.f32.mxu0 0.0
    %3996 = vmatmul.mubr.f32.gmra.mrb[0].mxu0 %v3926
    %v3997 = vpop.f32.mrb[0].mxu0
    %v3998 = vadd.f32 %v3917, %v3997
    %v3999 = vpop.f32.mrb[0].mxu0
    %4000 = vmatprep.mubr.f32.mxu0 0.0
    %4001 = vmatmul.mubr.f32.gmra.mrb[0].mxu0 %v3929
    %v4002 = vpop.f32.mrb[0].mxu0
    %v4003 = vadd.f32 %v3922, %v4002
    %v4004 = vpop.f32.mrb[0].mxu0
    %4005 = vdwg.mxu0
    %s4006 = scalar_lea.vmem %s7, 768
    %v4007 = vld [vmem:[%s4006] sm:$0xff]
    %v4008 = vld [vmem:[%s4006 + $0x8] sm:$0xff]
    %v4009 = vld [vmem:[%s4006 + $0x10] sm:$0xff]
    %v4010 = vld [vmem:[%s4006 + $0x18] sm:$0xff]
    %v4011 = vld [vmem:[%s4006 + $0x20] sm:$0xff]
    %v4012 = vld [vmem:[%s4006 + $0x28] sm:$0xff]
    %v4013 = vld [vmem:[%s4006 + $0x30] sm:$0xff]
    %v4014 = vld [vmem:[%s4006 + $0x38] sm:$0xff]
    %v4015 = vld [vmem:[%s4006 + $0x40] sm:$0xff]
    %v4016 = vld [vmem:[%s4006 + $0x48] sm:$0xff]
    %v4017 = vld [vmem:[%s4006 + $0x50] sm:$0xff]
    %v4018 = vld [vmem:[%s4006 + $0x58] sm:$0xff]
    %v4019 = vld [vmem:[%s4006 + $0x60] sm:$0xff]
    %v4020 = vld [vmem:[%s4006 + $0x68] sm:$0xff]
    %v4021 = vld [vmem:[%s4006 + $0x70] sm:$0xff]
    %v4022 = vld [vmem:[%s4006 + $0x78] sm:$0xff]
    %4023 = vmatprep.subr.mxu0 0.0
    %4024 = vmatpush1.msra.mxu0 %v4007
    %4025 = vmatprep.subr.mxu0 0.0
    %4026 = vmatpush1.msra.mxu0 %v4008
    %4027 = vmatprep.subr.mxu0 0.0
    %4028 = vmatpush1.msra.mxu0 %v4009
    %4029 = vmatprep.subr.mxu0 0.0
    %4030 = vmatpush1.msra.mxu0 %v4010
    %4031 = vmatprep.subr.mxu0 0.0
    %4032 = vmatpush1.msra.mxu0 %v4011
    %4033 = vmatprep.subr.mxu0 0.0
    %4034 = vmatpush1.msra.mxu0 %v4012
    %4035 = vmatprep.subr.mxu0 0.0
    %4036 = vmatpush1.msra.mxu0 %v4013
    %4037 = vmatprep.subr.mxu0 0.0
    %4038 = vmatpush1.msra.mxu0 %v4014
    %4039 = vmatprep.subr.mxu0 0.0
    %4040 = vmatpush1.msra.mxu0 %v4015
    %4041 = vmatprep.subr.mxu0 0.0
    %4042 = vmatpush1.msra.mxu0 %v4016
    %4043 = vmatprep.subr.mxu0 0.0
    %4044 = vmatpush1.msra.mxu0 %v4017
    %4045 = vmatprep.subr.mxu0 0.0
    %4046 = vmatpush1.msra.mxu0 %v4018
    %4047 = vmatprep.subr.mxu0 0.0
    %4048 = vmatpush1.msra.mxu0 %v4019
    %4049 = vmatprep.subr.mxu0 0.0
    %4050 = vmatpush1.msra.mxu0 %v4020
    %4051 = vmatprep.subr.mxu0 0.0
    %4052 = vmatpush1.msra.mxu0 %v4021
    %4053 = vmatprep.subr.mxu0 0.0
    %4054 = vmatpush1.msra.mxu0 %v4022
    %4055 = vmatprep.subr.mxu0 0.0
    %4056 = vmatpush1.msra.mxu0 0.0
    %4057 = vmatprep.subr.mxu0 0.0
    %4058 = vmatpush1.msra.mxu0 0.0
    %4059 = vmatprep.subr.mxu0 0.0
    %4060 = vmatpush1.msra.mxu0 0.0
    %4061 = vmatprep.subr.mxu0 0.0
    %4062 = vmatpush1.msra.mxu0 0.0
    %4063 = vmatprep.subr.mxu0 0.0
    %4064 = vmatpush1.msra.mxu0 0.0
    %4065 = vmatprep.subr.mxu0 0.0
    %4066 = vmatpush1.msra.mxu0 0.0
    %4067 = vmatprep.subr.mxu0 0.0
    %4068 = vmatpush1.msra.mxu0 0.0
    %4069 = vmatprep.subr.mxu0 0.0
    %4070 = vmatpush1.msra.mxu0 0.0
    %4071 = vmatprep.subr.mxu0 0.0
    %4072 = vmatpush1.msra.mxu0 0.0
    %4073 = vmatprep.subr.mxu0 0.0
    %4074 = vmatpush1.msra.mxu0 0.0
    %4075 = vmatprep.subr.mxu0 0.0
    %4076 = vmatpush1.msra.mxu0 0.0
    %4077 = vmatprep.subr.mxu0 0.0
    %4078 = vmatpush1.msra.mxu0 0.0
    %4079 = vmatprep.subr.mxu0 0.0
    %4080 = vmatpush1.msra.mxu0 0.0
    %4081 = vmatprep.subr.mxu0 0.0
    %4082 = vmatpush1.msra.mxu0 0.0
    %4083 = vmatprep.subr.mxu0 0.0
    %4084 = vmatpush1.msra.mxu0 0.0
    %4085 = vmatprep.subr.mxu0 0.0
    %4086 = vmatpush1.msra.mxu0 0.0
    %4087 = vmatprep.mubr.f32.mxu0 0.0
    %4088 = vmatmul.mubr.f32.gmra.mrb[0].mxu0 %v2638
    %v4089 = vpop.f32.mrb[0].mxu0
    %v4090 = vadd.f32 0.0, %v4089
    %v4091 = vpop.f32.mrb[0].mxu0
    %4092 = vmatprep.mubr.f32.mxu0 0.0
    %4093 = vmatmul.mubr.f32.gmra.mrb[0].mxu0 %v2639
    %v4094 = vpop.f32.mrb[0].mxu0
    %v4095 = vadd.f32 0.0, %v4094
    %v4096 = vpop.f32.mrb[0].mxu0
    %4097 = vdwg.mxu0
    %s4098 = scalar_lea.vmem %s8, 384
    %v4099 = vld [vmem:[%s4098] sm:$0xff]
    %v4100 = vld [vmem:[%s4098 + $0x8] sm:$0xff]
    %v4101 = vld [vmem:[%s4098 + $0x10] sm:$0xff]
    %v4102 = vld [vmem:[%s4098 + $0x18] sm:$0xff]
    %v4103 = vld [vmem:[%s4098 + $0x20] sm:$0xff]
    %v4104 = vld [vmem:[%s4098 + $0x28] sm:$0xff]
    %v4105 = vld [vmem:[%s4098 + $0x30] sm:$0xff]
    %v4106 = vld [vmem:[%s4098 + $0x38] sm:$0xff]
    %4107 = vmatprep.subr.mxu0 0.0
    %4108 = vmatpush1.msra.mxu0 %v4099
    %4109 = vmatprep.subr.mxu0 0.0
    %4110 = vmatpush1.msra.mxu0 %v4100
    %4111 = vmatprep.subr.mxu0 0.0
    %4112 = vmatpush1.msra.mxu0 %v4101
    %4113 = vmatprep.subr.mxu0 0.0
    %4114 = vmatpush1.msra.mxu0 %v4102
    %4115 = vmatprep.subr.mxu0 0.0
    %4116 = vmatpush1.msra.mxu0 %v4103
    %4117 = vmatprep.subr.mxu0 0.0
    %4118 = vmatpush1.msra.mxu0 %v4104
    %4119 = vmatprep.subr.mxu0 0.0
    %4120 = vmatpush1.msra.mxu0 %v4105
    %4121 = vmatprep.subr.mxu0 0.0
    %4122 = vmatpush1.msra.mxu0 %v4106
    %4123 = vmatprep.subr.mxu0 0.0
    %4124 = vmatpush1.msra.mxu0 0.0
    %4125 = vmatprep.subr.mxu0 0.0
    %4126 = vmatpush1.msra.mxu0 0.0
    %4127 = vmatprep.subr.mxu0 0.0
    %4128 = vmatpush1.msra.mxu0 0.0
    %4129 = vmatprep.subr.mxu0 0.0
    %4130 = vmatpush1.msra.mxu0 0.0
    %4131 = vmatprep.subr.mxu0 0.0
    %4132 = vmatpush1.msra.mxu0 0.0
    %4133 = vmatprep.subr.mxu0 0.0
    %4134 = vmatpush1.msra.mxu0 0.0
    %4135 = vmatprep.subr.mxu0 0.0
    %4136 = vmatpush1.msra.mxu0 0.0
    %4137 = vmatprep.subr.mxu0 0.0
    %4138 = vmatpush1.msra.mxu0 0.0
    %4139 = vmatprep.subr.mxu0 0.0
    %4140 = vmatpush1.msra.mxu0 0.0
    %4141 = vmatprep.subr.mxu0 0.0
    %4142 = vmatpush1.msra.mxu0 0.0
    %4143 = vmatprep.subr.mxu0 0.0
    %4144 = vmatpush1.msra.mxu0 0.0
    %4145 = vmatprep.subr.mxu0 0.0
    %4146 = vmatpush1.msra.mxu0 0.0
    %4147 = vmatprep.subr.mxu0 0.0
    %4148 = vmatpush1.msra.mxu0 0.0
    %4149 = vmatprep.subr.mxu0 0.0
    %4150 = vmatpush1.msra.mxu0 0.0
    %4151 = vmatprep.subr.mxu0 0.0
    %4152 = vmatpush1.msra.mxu0 0.0
    %4153 = vmatprep.subr.mxu0 0.0
    %4154 = vmatpush1.msra.mxu0 0.0
    %4155 = vmatprep.subr.mxu0 0.0
    %4156 = vmatpush1.msra.mxu0 0.0
    %4157 = vmatprep.subr.mxu0 0.0
    %4158 = vmatpush1.msra.mxu0 0.0
    %4159 = vmatprep.subr.mxu0 0.0
    %4160 = vmatpush1.msra.mxu0 0.0
    %4161 = vmatprep.subr.mxu0 0.0
    %4162 = vmatpush1.msra.mxu0 0.0
    %4163 = vmatprep.subr.mxu0 0.0
    %4164 = vmatpush1.msra.mxu0 0.0
    %4165 = vmatprep.subr.mxu0 0.0
    %4166 = vmatpush1.msra.mxu0 0.0
    %4167 = vmatprep.subr.mxu0 0.0
    %4168 = vmatpush1.msra.mxu0 0.0
    %4169 = vmatprep.subr.mxu0 0.0
    %4170 = vmatpush1.msra.mxu0 0.0
    %4171 = vmatprep.mubr.f32.mxu0 0.0
    %4172 = vmatmul.mubr.f32.gmra.mrb[0].mxu0 %v3018
    %v4173 = vpop.f32.mrb[0].mxu0
    %v4174 = vadd.f32 0.0, %v4173
    %v4175 = vpop.f32.mrb[0].mxu0
    %4176 = vmatprep.mubr.f32.mxu0 0.0
    %4177 = vmatmul.mubr.f32.gmra.mrb[0].mxu0 %v3021
    %v4178 = vpop.f32.mrb[0].mxu0
    %v4179 = vadd.f32 0.0, %v4178
    %v4180 = vpop.f32.mrb[0].mxu0
    %4181 = vdwg.mxu0
    %s4182 = scalar_lea.vmem %s9, 384
    %v4183 = vld [vmem:[%s4182] sm:$0xff]
    %v4184 = vld [vmem:[%s4182 + $0x8] sm:$0xff]
    %v4185 = vld [vmem:[%s4182 + $0x10] sm:$0xff]
    %v4186 = vld [vmem:[%s4182 + $0x18] sm:$0xff]
    %v4187 = vld [vmem:[%s4182 + $0x20] sm:$0xff]
    %v4188 = vld [vmem:[%s4182 + $0x28] sm:$0xff]
    %v4189 = vld [vmem:[%s4182 + $0x30] sm:$0xff]
    %v4190 = vld [vmem:[%s4182 + $0x38] sm:$0xff]
    %4191 = vmatprep.subr.mxu0 0.0
    %4192 = vmatpush1.msra.mxu0 %v4183
    %4193 = vmatprep.subr.mxu0 0.0
    %4194 = vmatpush1.msra.mxu0 %v4184
    %4195 = vmatprep.subr.mxu0 0.0
    %4196 = vmatpush1.msra.mxu0 %v4185
    %4197 = vmatprep.subr.mxu0 0.0
    %4198 = vmatpush1.msra.mxu0 %v4186
    %4199 = vmatprep.subr.mxu0 0.0
    %4200 = vmatpush1.msra.mxu0 %v4187
    %4201 = vmatprep.subr.mxu0 0.0
    %4202 = vmatpush1.msra.mxu0 %v4188
    %4203 = vmatprep.subr.mxu0 0.0
    %4204 = vmatpush1.msra.mxu0 %v4189
    %4205 = vmatprep.subr.mxu0 0.0
    %4206 = vmatpush1.msra.mxu0 %v4190
    %4207 = vmatprep.subr.mxu0 0.0
    %4208 = vmatpush1.msra.mxu0 0.0
    %4209 = vmatprep.subr.mxu0 0.0
    %4210 = vmatpush1.msra.mxu0 0.0
    %4211 = vmatprep.subr.mxu0 0.0
    %4212 = vmatpush1.msra.mxu0 0.0
    %4213 = vmatprep.subr.mxu0 0.0
    %4214 = vmatpush1.msra.mxu0 0.0
    %4215 = vmatprep.subr.mxu0 0.0
    %4216 = vmatpush1.msra.mxu0 0.0
    %4217 = vmatprep.subr.mxu0 0.0
    %4218 = vmatpush1.msra.mxu0 0.0
    %4219 = vmatprep.subr.mxu0 0.0
    %4220 = vmatpush1.msra.mxu0 0.0
    %4221 = vmatprep.subr.mxu0 0.0
    %4222 = vmatpush1.msra.mxu0 0.0
    %4223 = vmatprep.subr.mxu0 0.0
    %4224 = vmatpush1.msra.mxu0 0.0
    %4225 = vmatprep.subr.mxu0 0.0
    %4226 = vmatpush1.msra.mxu0 0.0
    %4227 = vmatprep.subr.mxu0 0.0
    %4228 = vmatpush1.msra.mxu0 0.0
    %4229 = vmatprep.subr.mxu0 0.0
    %4230 = vmatpush1.msra.mxu0 0.0
    %4231 = vmatprep.subr.mxu0 0.0
    %4232 = vmatpush1.msra.mxu0 0.0
    %4233 = vmatprep.subr.mxu0 0.0
    %4234 = vmatpush1.msra.mxu0 0.0
    %4235 = vmatprep.subr.mxu0 0.0
    %4236 = vmatpush1.msra.mxu0 0.0
    %4237 = vmatprep.subr.mxu0 0.0
    %4238 = vmatpush1.msra.mxu0 0.0
    %4239 = vmatprep.subr.mxu0 0.0
    %4240 = vmatpush1.msra.mxu0 0.0
    %4241 = vmatprep.subr.mxu0 0.0
    %4242 = vmatpush1.msra.mxu0 0.0
    %4243 = vmatprep.subr.mxu0 0.0
    %4244 = vmatpush1.msra.mxu0 0.0
    %4245 = vmatprep.subr.mxu0 0.0
    %4246 = vmatpush1.msra.mxu0 0.0
    %4247 = vmatprep.subr.mxu0 0.0
    %4248 = vmatpush1.msra.mxu0 0.0
    %4249 = vmatprep.subr.mxu0 0.0
    %4250 = vmatpush1.msra.mxu0 0.0
    %4251 = vmatprep.subr.mxu0 0.0
    %4252 = vmatpush1.msra.mxu0 0.0
    %4253 = vmatprep.subr.mxu0 0.0
    %4254 = vmatpush1.msra.mxu0 0.0
    %4255 = vmatprep.mubr.f32.mxu0 0.0
    %4256 = vmatmul.mubr.f32.gmra.mrb[0].mxu0 %v3018
    %v4257 = vpop.f32.mrb[0].mxu0
    %v4258 = vadd.f32 0.0, %v4257
    %v4259 = vpop.f32.mrb[0].mxu0
    %4260 = vmatprep.mubr.f32.mxu0 0.0
    %4261 = vmatmul.mubr.f32.gmra.mrb[0].mxu0 %v3021
    %v4262 = vpop.f32.mrb[0].mxu0
    %v4263 = vadd.f32 0.0, %v4262
    %v4264 = vpop.f32.mrb[0].mxu0
    %4265 = vdwg.mxu0
    %v4267 = vsel %vm727, %v4090, 0
    %v4270 = vsel %vm727, %v4095, 0
    %v4273 = vsel %vm727, %v4174, 0
    %v4276 = vsel %vm727, %v4179, 0
    %4278 = vmatprep.subr.mxu0 0.0
    %4279 = vmatpush1.xpose.msra.mxu0 %v4273
    %4280 = vmatprep.subr.mxu0 0.0
    %4281 = vmatpush1.xpose.msra.mxu0 %v4276
    %4282 = vmatprep.subr.mxu0 0.0
    %4283 = vmatpush1.xpose.msra.mxu0 0.0
    %4284 = vmatprep.subr.mxu0 0.0
    %4285 = vmatpush1.xpose.msra.mxu0 0.0
    %4286 = vmatprep.subr.mxu0 0.0
    %4287 = vmatpush1.xpose.msra.mxu0 0.0
    %4288 = vmatprep.subr.mxu0 0.0
    %4289 = vmatpush1.xpose.msra.mxu0 0.0
    %4290 = vmatprep.subr.mxu0 0.0
    %4291 = vmatpush1.xpose.msra.mxu0 0.0
    %4292 = vmatprep.subr.mxu0 0.0
    %4293 = vmatpush1.xpose.msra.mxu0 0.0
    %4294 = vmatprep.subr.mxu0 0.0
    %4295 = vmatpush1.xpose.msra.mxu0 0.0
    %4296 = vmatprep.subr.mxu0 0.0
    %4297 = vmatpush1.xpose.msra.mxu0 0.0
    %4298 = vmatprep.subr.mxu0 0.0
    %4299 = vmatpush1.xpose.msra.mxu0 0.0
    %4300 = vmatprep.subr.mxu0 0.0
    %4301 = vmatpush1.xpose.msra.mxu0 0.0
    %4302 = vmatprep.subr.mxu0 0.0
    %4303 = vmatpush1.xpose.msra.mxu0 0.0
    %4304 = vmatprep.subr.mxu0 0.0
    %4305 = vmatpush1.xpose.msra.mxu0 0.0
    %4306 = vmatprep.subr.mxu0 0.0
    %4307 = vmatpush1.xpose.msra.mxu0 0.0
    %4308 = vmatprep.subr.mxu0 0.0
    %4309 = vmatpush1.xpose.msra.mxu0 0.0
    %4310 = vmatprep.subr.mxu0 0.0
    %4311 = vmatpush1.xpose.msra.mxu0 0.0
    %4312 = vmatprep.subr.mxu0 0.0
    %4313 = vmatpush1.xpose.msra.mxu0 0.0
    %4314 = vmatprep.subr.mxu0 0.0
    %4315 = vmatpush1.xpose.msra.mxu0 0.0
    %4316 = vmatprep.subr.mxu0 0.0
    %4317 = vmatpush1.xpose.msra.mxu0 0.0
    %4318 = vmatprep.subr.mxu0 0.0
    %4319 = vmatpush1.xpose.msra.mxu0 0.0
    %4320 = vmatprep.subr.mxu0 0.0
    %4321 = vmatpush1.xpose.msra.mxu0 0.0
    %4322 = vmatprep.subr.mxu0 0.0
    %4323 = vmatpush1.xpose.msra.mxu0 0.0
    %4324 = vmatprep.subr.mxu0 0.0
    %4325 = vmatpush1.xpose.msra.mxu0 0.0
    %4326 = vmatprep.subr.mxu0 0.0
    %4327 = vmatpush1.xpose.msra.mxu0 0.0
    %4328 = vmatprep.subr.mxu0 0.0
    %4329 = vmatpush1.xpose.msra.mxu0 0.0
    %4330 = vmatprep.subr.mxu0 0.0
    %4331 = vmatpush1.xpose.msra.mxu0 0.0
    %4332 = vmatprep.subr.mxu0 0.0
    %4333 = vmatpush1.xpose.msra.mxu0 0.0
    %4334 = vmatprep.subr.mxu0 0.0
    %4335 = vmatpush1.xpose.msra.mxu0 0.0
    %4336 = vmatprep.subr.mxu0 0.0
    %4337 = vmatpush1.xpose.msra.mxu0 0.0
    %4338 = vmatprep.subr.mxu0 0.0
    %4339 = vmatpush1.xpose.msra.mxu0 0.0
    %4340 = vmatprep.subr.mxu0 0.0
    %4341 = vmatpush1.xpose.msra.mxu0 0.0
    %4342 = vmatprep.mubr.f32.mxu0 0.0
    %4343 = vmatmul.mubr.f32.gmra.mrb[0].mxu0 %v4267
    %v4344 = vpop.f32.mrb[0].mxu0
    %v4345 = vadd.f32 0.0, %v4344
    %v4346 = vpop.f32.mrb[0].mxu0
    %4347 = vmatprep.mubr.f32.mxu0 0.0
    %4348 = vmatmul.mubr.f32.gmra.mrb[0].mxu0 %v4270
    %v4349 = vpop.f32.mrb[0].mxu0
    %v4350 = vadd.f32 0.0, %v4349
    %v4351 = vpop.f32.mrb[0].mxu0
    %4352 = vdwg.mxu0
    %v4353 = vmul.f32 %v4345, 0.088388346
    %v4354 = vmul.f32 %v4350, 0.088388346
    %v4355 = vmul.f32 %v4353, %v186
    %v4356 = vmul.f32 %v4354, %v187
    %v4357 = vadd.f32 %v4355, %v188
    %v4358 = vadd.f32 %v4356, %v189
    %v4359 = vsel %vm821, %v4357, -inf
    %4360 = vmax.xlane.f32.xlu0 %v4359
    %v4361 = vpop.xlane.xlu0 %4360
    %v4362 = vsel %vm821, %v4358, -inf
    %4363 = vmax.xlane.f32.xlu0 %v4362
    %v4364 = vpop.xlane.xlu0 %4363
    %v4365 = vsub.f32 %v4357, %v4361
    %v4366 = vsub.f32 %v4358, %v4364
    %v4367 = vmul.f32 %v4365, 1.442695
    %v4368 = vpow.pop %v4367
    %v4369 = vmul.f32 %v4366, 1.442695
    %v4370 = vpow.pop %v4369
    %v4371 = vsel %vm821, %v4368, 0.0
    %4372 = vadd.xlane.f32.xlu0 %v4371
    %v4373 = vpop.xlane.xlu0 %4372
    %v4374 = vsel %vm821, %v4370, 0.0
    %4375 = vadd.xlane.f32.xlu0 %v4374
    %v4376 = vpop.xlane.xlu0 %4375
    %v4377 = vrcp.pop %v4373
    %v4378 = vmul.f32 %v4368, %v4377
    %v4379 = vrcp.pop %v4376
    %v4380 = vmul.f32 %v4370, %v4379
    %v4382 = vsel %vm821, %v4378, 0
    %v4385 = vsel %vm821, %v4380, 0
    %4387 = vmatprep.subr.mxu0 0.0
    %4388 = vmatpush1.msra.mxu0 %v4258
    %4389 = vmatprep.subr.mxu0 0.0
    %4390 = vmatpush1.msra.mxu0 %v4263
    %4391 = vmatprep.subr.mxu0 0.0
    %4392 = vmatpush1.msra.mxu0 0.0
    %4393 = vmatprep.subr.mxu0 0.0
    %4394 = vmatpush1.msra.mxu0 0.0
    %4395 = vmatprep.subr.mxu0 0.0
    %4396 = vmatpush1.msra.mxu0 0.0
    %4397 = vmatprep.subr.mxu0 0.0
    %4398 = vmatpush1.msra.mxu0 0.0
    %4399 = vmatprep.subr.mxu0 0.0
    %4400 = vmatpush1.msra.mxu0 0.0
    %4401 = vmatprep.subr.mxu0 0.0
    %4402 = vmatpush1.msra.mxu0 0.0
    %4403 = vmatprep.subr.mxu0 0.0
    %4404 = vmatpush1.msra.mxu0 0.0
    %4405 = vmatprep.subr.mxu0 0.0
    %4406 = vmatpush1.msra.mxu0 0.0
    %4407 = vmatprep.subr.mxu0 0.0
    %4408 = vmatpush1.msra.mxu0 0.0
    %4409 = vmatprep.subr.mxu0 0.0
    %4410 = vmatpush1.msra.mxu0 0.0
    %4411 = vmatprep.subr.mxu0 0.0
    %4412 = vmatpush1.msra.mxu0 0.0
    %4413 = vmatprep.subr.mxu0 0.0
    %4414 = vmatpush1.msra.mxu0 0.0
    %4415 = vmatprep.subr.mxu0 0.0
    %4416 = vmatpush1.msra.mxu0 0.0
    %4417 = vmatprep.subr.mxu0 0.0
    %4418 = vmatpush1.msra.mxu0 0.0
    %4419 = vmatprep.subr.mxu0 0.0
    %4420 = vmatpush1.msra.mxu0 0.0
    %4421 = vmatprep.subr.mxu0 0.0
    %4422 = vmatpush1.msra.mxu0 0.0
    %4423 = vmatprep.subr.mxu0 0.0
    %4424 = vmatpush1.msra.mxu0 0.0
    %4425 = vmatprep.subr.mxu0 0.0
    %4426 = vmatpush1.msra.mxu0 0.0
    %4427 = vmatprep.subr.mxu0 0.0
    %4428 = vmatpush1.msra.mxu0 0.0
    %4429 = vmatprep.subr.mxu0 0.0
    %4430 = vmatpush1.msra.mxu0 0.0
    %4431 = vmatprep.subr.mxu0 0.0
    %4432 = vmatpush1.msra.mxu0 0.0
    %4433 = vmatprep.subr.mxu0 0.0
    %4434 = vmatpush1.msra.mxu0 0.0
    %4435 = vmatprep.subr.mxu0 0.0
    %4436 = vmatpush1.msra.mxu0 0.0
    %4437 = vmatprep.subr.mxu0 0.0
    %4438 = vmatpush1.msra.mxu0 0.0
    %4439 = vmatprep.subr.mxu0 0.0
    %4440 = vmatpush1.msra.mxu0 0.0
    %4441 = vmatprep.subr.mxu0 0.0
    %4442 = vmatpush1.msra.mxu0 0.0
    %4443 = vmatprep.subr.mxu0 0.0
    %4444 = vmatpush1.msra.mxu0 0.0
    %4445 = vmatprep.subr.mxu0 0.0
    %4446 = vmatpush1.msra.mxu0 0.0
    %4447 = vmatprep.subr.mxu0 0.0
    %4448 = vmatpush1.msra.mxu0 0.0
    %4449 = vmatprep.subr.mxu0 0.0
    %4450 = vmatpush1.msra.mxu0 0.0
    %4451 = vmatprep.mubr.f32.mxu0 0.0
    %4452 = vmatmul.mubr.f32.gmra.mrb[0].mxu0 %v4382
    %v4453 = vpop.f32.mrb[0].mxu0
    %v4454 = vadd.f32 0.0, %v4453
    %v4455 = vpop.f32.mrb[0].mxu0
    %4456 = vmatprep.mubr.f32.mxu0 0.0
    %4457 = vmatmul.mubr.f32.gmra.mrb[0].mxu0 %v4385
    %v4458 = vpop.f32.mrb[0].mxu0
    %v4459 = vadd.f32 0.0, %v4458
    %v4460 = vpop.f32.mrb[0].mxu0
    %4461 = vdwg.mxu0
    %s4462 = scalar_lea.vmem %s10, 192
    %v4463 = vld [vmem:[%s4462] sm:$0xff]
    %v4464 = vld [vmem:[%s4462 + $0x8] sm:$0xff]
    %v4465 = vld [vmem:[%s4462 + $0x10] sm:$0xff]
    %v4466 = vld [vmem:[%s4462 + $0x18] sm:$0xff]
    %v4468 = vsel %vm727, %v4454, 0
    %v4471 = vsel %vm727, %v4459, 0
    %4473 = vmatprep.subr.mxu0 0.0
    %4474 = vmatpush1.msra.mxu0 %v4463
    %4475 = vmatprep.subr.mxu0 0.0
    %4476 = vmatpush1.msra.mxu0 %v4464
    %4477 = vmatprep.subr.mxu0 0.0
    %4478 = vmatpush1.msra.mxu0 %v4465
    %4479 = vmatprep.subr.mxu0 0.0
    %4480 = vmatpush1.msra.mxu0 %v4466
    %4481 = vmatprep.subr.mxu0 0.0
    %4482 = vmatpush1.msra.mxu0 0.0
    %4483 = vmatprep.subr.mxu0 0.0
    %4484 = vmatpush1.msra.mxu0 0.0
    %4485 = vmatprep.subr.mxu0 0.0
    %4486 = vmatpush1.msra.mxu0 0.0
    %4487 = vmatprep.subr.mxu0 0.0
    %4488 = vmatpush1.msra.mxu0 0.0
    %4489 = vmatprep.subr.mxu0 0.0
    %4490 = vmatpush1.msra.mxu0 0.0
    %4491 = vmatprep.subr.mxu0 0.0
    %4492 = vmatpush1.msra.mxu0 0.0
    %4493 = vmatprep.subr.mxu0 0.0
    %4494 = vmatpush1.msra.mxu0 0.0
    %4495 = vmatprep.subr.mxu0 0.0
    %4496 = vmatpush1.msra.mxu0 0.0
    %4497 = vmatprep.subr.mxu0 0.0
    %4498 = vmatpush1.msra.mxu0 0.0
    %4499 = vmatprep.subr.mxu0 0.0
    %4500 = vmatpush1.msra.mxu0 0.0
    %4501 = vmatprep.subr.mxu0 0.0
    %4502 = vmatpush1.msra.mxu0 0.0
    %4503 = vmatprep.subr.mxu0 0.0
    %4504 = vmatpush1.msra.mxu0 0.0
    %4505 = vmatprep.subr.mxu0 0.0
    %4506 = vmatpush1.msra.mxu0 0.0
    %4507 = vmatprep.subr.mxu0 0.0
    %4508 = vmatpush1.msra.mxu0 0.0
    %4509 = vmatprep.subr.mxu0 0.0
    %4510 = vmatpush1.msra.mxu0 0.0
    %4511 = vmatprep.subr.mxu0 0.0
    %4512 = vmatpush1.msra.mxu0 0.0
    %4513 = vmatprep.subr.mxu0 0.0
    %4514 = vmatpush1.msra.mxu0 0.0
    %4515 = vmatprep.subr.mxu0 0.0
    %4516 = vmatpush1.msra.mxu0 0.0
    %4517 = vmatprep.subr.mxu0 0.0
    %4518 = vmatpush1.msra.mxu0 0.0
    %4519 = vmatprep.subr.mxu0 0.0
    %4520 = vmatpush1.msra.mxu0 0.0
    %4521 = vmatprep.subr.mxu0 0.0
    %4522 = vmatpush1.msra.mxu0 0.0
    %4523 = vmatprep.subr.mxu0 0.0
    %4524 = vmatpush1.msra.mxu0 0.0
    %4525 = vmatprep.subr.mxu0 0.0
    %4526 = vmatpush1.msra.mxu0 0.0
    %4527 = vmatprep.subr.mxu0 0.0
    %4528 = vmatpush1.msra.mxu0 0.0
    %4529 = vmatprep.subr.mxu0 0.0
    %4530 = vmatpush1.msra.mxu0 0.0
    %4531 = vmatprep.subr.mxu0 0.0
    %4532 = vmatpush1.msra.mxu0 0.0
    %4533 = vmatprep.subr.mxu0 0.0
    %4534 = vmatpush1.msra.mxu0 0.0
    %4535 = vmatprep.subr.mxu0 0.0
    %4536 = vmatpush1.msra.mxu0 0.0
    %4537 = vmatprep.mubr.f32.mxu0 0.0
    %4538 = vmatmul.mubr.f32.gmra.mrb[0].mxu0 %v4468
    %v4539 = vpop.f32.mrb[0].mxu0
    %v4540 = vadd.f32 0.0, %v4539
    %v4541 = vpop.f32.mrb[0].mxu0
    %4542 = vmatprep.mubr.f32.mxu0 0.0
    %4543 = vmatmul.mubr.f32.gmra.mrb[0].mxu0 %v4471
    %v4544 = vpop.f32.mrb[0].mxu0
    %v4545 = vadd.f32 0.0, %v4544
    %v4546 = vpop.f32.mrb[0].mxu0
    %4547 = vdwg.mxu0
    %v4548 = vadd.f32 %v3998, %v4540
    %v4549 = vadd.f32 %v4003, %v4545
    %s4550 = scalar_lea.vmem %s7, 896
    %v4551 = vld [vmem:[%s4550] sm:$0xff]
    %v4552 = vld [vmem:[%s4550 + $0x8] sm:$0xff]
    %v4553 = vld [vmem:[%s4550 + $0x10] sm:$0xff]
    %v4554 = vld [vmem:[%s4550 + $0x18] sm:$0xff]
    %v4555 = vld [vmem:[%s4550 + $0x20] sm:$0xff]
    %v4556 = vld [vmem:[%s4550 + $0x28] sm:$0xff]
    %v4557 = vld [vmem:[%s4550 + $0x30] sm:$0xff]
    %v4558 = vld [vmem:[%s4550 + $0x38] sm:$0xff]
    %v4559 = vld [vmem:[%s4550 + $0x40] sm:$0xff]
    %v4560 = vld [vmem:[%s4550 + $0x48] sm:$0xff]
    %v4561 = vld [vmem:[%s4550 + $0x50] sm:$0xff]
    %v4562 = vld [vmem:[%s4550 + $0x58] sm:$0xff]
    %v4563 = vld [vmem:[%s4550 + $0x60] sm:$0xff]
    %v4564 = vld [vmem:[%s4550 + $0x68] sm:$0xff]
    %v4565 = vld [vmem:[%s4550 + $0x70] sm:$0xff]
    %v4566 = vld [vmem:[%s4550 + $0x78] sm:$0xff]
    %4567 = vmatprep.subr.mxu0 0.0
    %4568 = vmatpush1.msra.mxu0 %v4551
    %4569 = vmatprep.subr.mxu0 0.0
    %4570 = vmatpush1.msra.mxu0 %v4552
    %4571 = vmatprep.subr.mxu0 0.0
    %4572 = vmatpush1.msra.mxu0 %v4553
    %4573 = vmatprep.subr.mxu0 0.0
    %4574 = vmatpush1.msra.mxu0 %v4554
    %4575 = vmatprep.subr.mxu0 0.0
    %4576 = vmatpush1.msra.mxu0 %v4555
    %4577 = vmatprep.subr.mxu0 0.0
    %4578 = vmatpush1.msra.mxu0 %v4556
    %4579 = vmatprep.subr.mxu0 0.0
    %4580 = vmatpush1.msra.mxu0 %v4557
    %4581 = vmatprep.subr.mxu0 0.0
    %4582 = vmatpush1.msra.mxu0 %v4558
    %4583 = vmatprep.subr.mxu0 0.0
    %4584 = vmatpush1.msra.mxu0 %v4559
    %4585 = vmatprep.subr.mxu0 0.0
    %4586 = vmatpush1.msra.mxu0 %v4560
    %4587 = vmatprep.subr.mxu0 0.0
    %4588 = vmatpush1.msra.mxu0 %v4561
    %4589 = vmatprep.subr.mxu0 0.0
    %4590 = vmatpush1.msra.mxu0 %v4562
    %4591 = vmatprep.subr.mxu0 0.0
    %4592 = vmatpush1.msra.mxu0 %v4563
    %4593 = vmatprep.subr.mxu0 0.0
    %4594 = vmatpush1.msra.mxu0 %v4564
    %4595 = vmatprep.subr.mxu0 0.0
    %4596 = vmatpush1.msra.mxu0 %v4565
    %4597 = vmatprep.subr.mxu0 0.0
    %4598 = vmatpush1.msra.mxu0 %v4566
    %4599 = vmatprep.subr.mxu0 0.0
    %4600 = vmatpush1.msra.mxu0 0.0
    %4601 = vmatprep.subr.mxu0 0.0
    %4602 = vmatpush1.msra.mxu0 0.0
    %4603 = vmatprep.subr.mxu0 0.0
    %4604 = vmatpush1.msra.mxu0 0.0
    %4605 = vmatprep.subr.mxu0 0.0
    %4606 = vmatpush1.msra.mxu0 0.0
    %4607 = vmatprep.subr.mxu0 0.0
    %4608 = vmatpush1.msra.mxu0 0.0
    %4609 = vmatprep.subr.mxu0 0.0
    %4610 = vmatpush1.msra.mxu0 0.0
    %4611 = vmatprep.subr.mxu0 0.0
    %4612 = vmatpush1.msra.mxu0 0.0
    %4613 = vmatprep.subr.mxu0 0.0
    %4614 = vmatpush1.msra.mxu0 0.0
    %4615 = vmatprep.subr.mxu0 0.0
    %4616 = vmatpush1.msra.mxu0 0.0
    %4617 = vmatprep.subr.mxu0 0.0
    %4618 = vmatpush1.msra.mxu0 0.0
    %4619 = vmatprep.subr.mxu0 0.0
    %4620 = vmatpush1.msra.mxu0 0.0
    %4621 = vmatprep.subr.mxu0 0.0
    %4622 = vmatpush1.msra.mxu0 0.0
    %4623 = vmatprep.subr.mxu0 0.0
    %4624 = vmatpush1.msra.mxu0 0.0
    %4625 = vmatprep.subr.mxu0 0.0
    %4626 = vmatpush1.msra.mxu0 0.0
    %4627 = vmatprep.subr.mxu0 0.0
    %4628 = vmatpush1.msra.mxu0 0.0
    %4629 = vmatprep.subr.mxu0 0.0
    %4630 = vmatpush1.msra.mxu0 0.0
    %4631 = vmatprep.mubr.f32.mxu0 0.0
    %4632 = vmatmul.mubr.f32.gmra.mrb[0].mxu0 %v2638
    %v4633 = vpop.f32.mrb[0].mxu0
    %v4634 = vadd.f32 0.0, %v4633
    %v4635 = vpop.f32.mrb[0].mxu0
    %4636 = vmatprep.mubr.f32.mxu0 0.0
    %4637 = vmatmul.mubr.f32.gmra.mrb[0].mxu0 %v2639
    %v4638 = vpop.f32.mrb[0].mxu0
    %v4639 = vadd.f32 0.0, %v4638
    %v4640 = vpop.f32.mrb[0].mxu0
    %4641 = vdwg.mxu0
    %s4642 = scalar_lea.vmem %s8, 448
    %v4643 = vld [vmem:[%s4642] sm:$0xff]
    %v4644 = vld [vmem:[%s4642 + $0x8] sm:$0xff]
    %v4645 = vld [vmem:[%s4642 + $0x10] sm:$0xff]
    %v4646 = vld [vmem:[%s4642 + $0x18] sm:$0xff]
    %v4647 = vld [vmem:[%s4642 + $0x20] sm:$0xff]
    %v4648 = vld [vmem:[%s4642 + $0x28] sm:$0xff]
    %v4649 = vld [vmem:[%s4642 + $0x30] sm:$0xff]
    %v4650 = vld [vmem:[%s4642 + $0x38] sm:$0xff]
    %4651 = vmatprep.subr.mxu0 0.0
    %4652 = vmatpush1.msra.mxu0 %v4643
    %4653 = vmatprep.subr.mxu0 0.0
    %4654 = vmatpush1.msra.mxu0 %v4644
    %4655 = vmatprep.subr.mxu0 0.0
    %4656 = vmatpush1.msra.mxu0 %v4645
    %4657 = vmatprep.subr.mxu0 0.0
    %4658 = vmatpush1.msra.mxu0 %v4646
    %4659 = vmatprep.subr.mxu0 0.0
    %4660 = vmatpush1.msra.mxu0 %v4647
    %4661 = vmatprep.subr.mxu0 0.0
    %4662 = vmatpush1.msra.mxu0 %v4648
    %4663 = vmatprep.subr.mxu0 0.0
    %4664 = vmatpush1.msra.mxu0 %v4649
    %4665 = vmatprep.subr.mxu0 0.0
    %4666 = vmatpush1.msra.mxu0 %v4650
    %4667 = vmatprep.subr.mxu0 0.0
    %4668 = vmatpush1.msra.mxu0 0.0
    %4669 = vmatprep.subr.mxu0 0.0
    %4670 = vmatpush1.msra.mxu0 0.0
    %4671 = vmatprep.subr.mxu0 0.0
    %4672 = vmatpush1.msra.mxu0 0.0
    %4673 = vmatprep.subr.mxu0 0.0
    %4674 = vmatpush1.msra.mxu0 0.0
    %4675 = vmatprep.subr.mxu0 0.0
    %4676 = vmatpush1.msra.mxu0 0.0
    %4677 = vmatprep.subr.mxu0 0.0
    %4678 = vmatpush1.msra.mxu0 0.0
    %4679 = vmatprep.subr.mxu0 0.0
    %4680 = vmatpush1.msra.mxu0 0.0
    %4681 = vmatprep.subr.mxu0 0.0
    %4682 = vmatpush1.msra.mxu0 0.0
    %4683 = vmatprep.subr.mxu0 0.0
    %4684 = vmatpush1.msra.mxu0 0.0
    %4685 = vmatprep.subr.mxu0 0.0
    %4686 = vmatpush1.msra.mxu0 0.0
    %4687 = vmatprep.subr.mxu0 0.0
    %4688 = vmatpush1.msra.mxu0 0.0
    %4689 = vmatprep.subr.mxu0 0.0
    %4690 = vmatpush1.msra.mxu0 0.0
    %4691 = vmatprep.subr.mxu0 0.0
    %4692 = vmatpush1.msra.mxu0 0.0
    %4693 = vmatprep.subr.mxu0 0.0
    %4694 = vmatpush1.msra.mxu0 0.0
    %4695 = vmatprep.subr.mxu0 0.0
    %4696 = vmatpush1.msra.mxu0 0.0
    %4697 = vmatprep.subr.mxu0 0.0
    %4698 = vmatpush1.msra.mxu0 0.0
    %4699 = vmatprep.subr.mxu0 0.0
    %4700 = vmatpush1.msra.mxu0 0.0
    %4701 = vmatprep.subr.mxu0 0.0
    %4702 = vmatpush1.msra.mxu0 0.0
    %4703 = vmatprep.subr.mxu0 0.0
    %4704 = vmatpush1.msra.mxu0 0.0
    %4705 = vmatprep.subr.mxu0 0.0
    %4706 = vmatpush1.msra.mxu0 0.0
    %4707 = vmatprep.subr.mxu0 0.0
    %4708 = vmatpush1.msra.mxu0 0.0
    %4709 = vmatprep.subr.mxu0 0.0
    %4710 = vmatpush1.msra.mxu0 0.0
    %4711 = vmatprep.subr.mxu0 0.0
    %4712 = vmatpush1.msra.mxu0 0.0
    %4713 = vmatprep.subr.mxu0 0.0
    %4714 = vmatpush1.msra.mxu0 0.0
    %4715 = vmatprep.mubr.f32.mxu0 0.0
    %4716 = vmatmul.mubr.f32.gmra.mrb[0].mxu0 %v3018
    %v4717 = vpop.f32.mrb[0].mxu0
    %v4718 = vadd.f32 0.0, %v4717
    %v4719 = vpop.f32.mrb[0].mxu0
    %4720 = vmatprep.mubr.f32.mxu0 0.0
    %4721 = vmatmul.mubr.f32.gmra.mrb[0].mxu0 %v3021
    %v4722 = vpop.f32.mrb[0].mxu0
    %v4723 = vadd.f32 0.0, %v4722
    %v4724 = vpop.f32.mrb[0].mxu0
    %4725 = vdwg.mxu0
    %s4726 = scalar_lea.vmem %s9, 448
    %v4727 = vld [vmem:[%s4726] sm:$0xff]
    %v4728 = vld [vmem:[%s4726 + $0x8] sm:$0xff]
    %v4729 = vld [vmem:[%s4726 + $0x10] sm:$0xff]
    %v4730 = vld [vmem:[%s4726 + $0x18] sm:$0xff]
    %v4731 = vld [vmem:[%s4726 + $0x20] sm:$0xff]
    %v4732 = vld [vmem:[%s4726 + $0x28] sm:$0xff]
    %v4733 = vld [vmem:[%s4726 + $0x30] sm:$0xff]
    %v4734 = vld [vmem:[%s4726 + $0x38] sm:$0xff]
    %4735 = vmatprep.subr.mxu0 0.0
    %4736 = vmatpush1.msra.mxu0 %v4727
    %4737 = vmatprep.subr.mxu0 0.0
    %4738 = vmatpush1.msra.mxu0 %v4728
    %4739 = vmatprep.subr.mxu0 0.0
    %4740 = vmatpush1.msra.mxu0 %v4729
    %4741 = vmatprep.subr.mxu0 0.0
    %4742 = vmatpush1.msra.mxu0 %v4730
    %4743 = vmatprep.subr.mxu0 0.0
    %4744 = vmatpush1.msra.mxu0 %v4731
    %4745 = vmatprep.subr.mxu0 0.0
    %4746 = vmatpush1.msra.mxu0 %v4732
    %4747 = vmatprep.subr.mxu0 0.0
    %4748 = vmatpush1.msra.mxu0 %v4733
    %4749 = vmatprep.subr.mxu0 0.0
    %4750 = vmatpush1.msra.mxu0 %v4734
    %4751 = vmatprep.subr.mxu0 0.0
    %4752 = vmatpush1.msra.mxu0 0.0
    %4753 = vmatprep.subr.mxu0 0.0
    %4754 = vmatpush1.msra.mxu0 0.0
    %4755 = vmatprep.subr.mxu0 0.0
    %4756 = vmatpush1.msra.mxu0 0.0
    %4757 = vmatprep.subr.mxu0 0.0
    %4758 = vmatpush1.msra.mxu0 0.0
    %4759 = vmatprep.subr.mxu0 0.0
    %4760 = vmatpush1.msra.mxu0 0.0
    %4761 = vmatprep.subr.mxu0 0.0
    %4762 = vmatpush1.msra.mxu0 0.0
    %4763 = vmatprep.subr.mxu0 0.0
    %4764 = vmatpush1.msra.mxu0 0.0
    %4765 = vmatprep.subr.mxu0 0.0
    %4766 = vmatpush1.msra.mxu0 0.0
    %4767 = vmatprep.subr.mxu0 0.0
    %4768 = vmatpush1.msra.mxu0 0.0
    %4769 = vmatprep.subr.mxu0 0.0
    %4770 = vmatpush1.msra.mxu0 0.0
    %4771 = vmatprep.subr.mxu0 0.0
    %4772 = vmatpush1.msra.mxu0 0.0
    %4773 = vmatprep.subr.mxu0 0.0
    %4774 = vmatpush1.msra.mxu0 0.0
    %4775 = vmatprep.subr.mxu0 0.0
    %4776 = vmatpush1.msra.mxu0 0.0
    %4777 = vmatprep.subr.mxu0 0.0
    %4778 = vmatpush1.msra.mxu0 0.0
    %4779 = vmatprep.subr.mxu0 0.0
    %4780 = vmatpush1.msra.mxu0 0.0
    %4781 = vmatprep.subr.mxu0 0.0
    %4782 = vmatpush1.msra.mxu0 0.0
    %4783 = vmatprep.subr.mxu0 0.0
    %4784 = vmatpush1.msra.mxu0 0.0
    %4785 = vmatprep.subr.mxu0 0.0
    %4786 = vmatpush1.msra.mxu0 0.0
    %4787 = vmatprep.subr.mxu0 0.0
    %4788 = vmatpush1.msra.mxu0 0.0
    %4789 = vmatprep.subr.mxu0 0.0
    %4790 = vmatpush1.msra.mxu0 0.0
    %4791 = vmatprep.subr.mxu0 0.0
    %4792 = vmatpush1.msra.mxu0 0.0
    %4793 = vmatprep.subr.mxu0 0.0
    %4794 = vmatpush1.msra.mxu0 0.0
    %4795 = vmatprep.subr.mxu0 0.0
    %4796 = vmatpush1.msra.mxu0 0.0
    %4797 = vmatprep.subr.mxu0 0.0
    %4798 = vmatpush1.msra.mxu0 0.0
    %4799 = vmatprep.mubr.f32.mxu0 0.0
    %4800 = vmatmul.mubr.f32.gmra.mrb[0].mxu0 %v3018
    %v4801 = vpop.f32.mrb[0].mxu0
    %v4802 = vadd.f32 0.0, %v4801
    %v4803 = vpop.f32.mrb[0].mxu0
    %4804 = vmatprep.mubr.f32.mxu0 0.0
    %4805 = vmatmul.mubr.f32.gmra.mrb[0].mxu0 %v3021
    %v4806 = vpop.f32.mrb[0].mxu0
    %v4807 = vadd.f32 0.0, %v4806
    %v4808 = vpop.f32.mrb[0].mxu0
    %4809 = vdwg.mxu0
    %v4811 = vsel %vm727, %v4634, 0
    %v4814 = vsel %vm727, %v4639, 0
    %v4817 = vsel %vm727, %v4718, 0
    %v4820 = vsel %vm727, %v4723, 0
    %4822 = vmatprep.subr.mxu0 0.0
    %4823 = vmatpush1.xpose.msra.mxu0 %v4817
    %4824 = vmatprep.subr.mxu0 0.0
    %4825 = vmatpush1.xpose.msra.mxu0 %v4820
    %4826 = vmatprep.subr.mxu0 0.0
    %4827 = vmatpush1.xpose.msra.mxu0 0.0
    %4828 = vmatprep.subr.mxu0 0.0
    %4829 = vmatpush1.xpose.msra.mxu0 0.0
    %4830 = vmatprep.subr.mxu0 0.0
    %4831 = vmatpush1.xpose.msra.mxu0 0.0
    %4832 = vmatprep.subr.mxu0 0.0
    %4833 = vmatpush1.xpose.msra.mxu0 0.0
    %4834 = vmatprep.subr.mxu0 0.0
    %4835 = vmatpush1.xpose.msra.mxu0 0.0
    %4836 = vmatprep.subr.mxu0 0.0
    %4837 = vmatpush1.xpose.msra.mxu0 0.0
    %4838 = vmatprep.subr.mxu0 0.0
    %4839 = vmatpush1.xpose.msra.mxu0 0.0
    %4840 = vmatprep.subr.mxu0 0.0
    %4841 = vmatpush1.xpose.msra.mxu0 0.0
    %4842 = vmatprep.subr.mxu0 0.0
    %4843 = vmatpush1.xpose.msra.mxu0 0.0
    %4844 = vmatprep.subr.mxu0 0.0
    %4845 = vmatpush1.xpose.msra.mxu0 0.0
    %4846 = vmatprep.subr.mxu0 0.0
    %4847 = vmatpush1.xpose.msra.mxu0 0.0
    %4848 = vmatprep.subr.mxu0 0.0
    %4849 = vmatpush1.xpose.msra.mxu0 0.0
    %4850 = vmatprep.subr.mxu0 0.0
    %4851 = vmatpush1.xpose.msra.mxu0 0.0
    %4852 = vmatprep.subr.mxu0 0.0
    %4853 = vmatpush1.xpose.msra.mxu0 0.0
    %4854 = vmatprep.subr.mxu0 0.0
    %4855 = vmatpush1.xpose.msra.mxu0 0.0
    %4856 = vmatprep.subr.mxu0 0.0
    %4857 = vmatpush1.xpose.msra.mxu0 0.0
    %4858 = vmatprep.subr.mxu0 0.0
    %4859 = vmatpush1.xpose.msra.mxu0 0.0
    %4860 = vmatprep.subr.mxu0 0.0
    %4861 = vmatpush1.xpose.msra.mxu0 0.0
    %4862 = vmatprep.subr.mxu0 0.0
    %4863 = vmatpush1.xpose.msra.mxu0 0.0
    %4864 = vmatprep.subr.mxu0 0.0
    %4865 = vmatpush1.xpose.msra.mxu0 0.0
    %4866 = vmatprep.subr.mxu0 0.0
    %4867 = vmatpush1.xpose.msra.mxu0 0.0
    %4868 = vmatprep.subr.mxu0 0.0
    %4869 = vmatpush1.xpose.msra.mxu0 0.0
    %4870 = vmatprep.subr.mxu0 0.0
    %4871 = vmatpush1.xpose.msra.mxu0 0.0
    %4872 = vmatprep.subr.mxu0 0.0
    %4873 = vmatpush1.xpose.msra.mxu0 0.0
    %4874 = vmatprep.subr.mxu0 0.0
    %4875 = vmatpush1.xpose.msra.mxu0 0.0
    %4876 = vmatprep.subr.mxu0 0.0
    %4877 = vmatpush1.xpose.msra.mxu0 0.0
    %4878 = vmatprep.subr.mxu0 0.0
    %4879 = vmatpush1.xpose.msra.mxu0 0.0
    %4880 = vmatprep.subr.mxu0 0.0
    %4881 = vmatpush1.xpose.msra.mxu0 0.0
    %4882 = vmatprep.subr.mxu0 0.0
    %4883 = vmatpush1.xpose.msra.mxu0 0.0
    %4884 = vmatprep.subr.mxu0 0.0
    %4885 = vmatpush1.xpose.msra.mxu0 0.0
    %4886 = vmatprep.mubr.f32.mxu0 0.0
    %4887 = vmatmul.mubr.f32.gmra.mrb[0].mxu0 %v4811
    %v4888 = vpop.f32.mrb[0].mxu0
    %v4889 = vadd.f32 0.0, %v4888
    %v4890 = vpop.f32.mrb[0].mxu0
    %4891 = vmatprep.mubr.f32.mxu0 0.0
    %4892 = vmatmul.mubr.f32.gmra.mrb[0].mxu0 %v4814
    %v4893 = vpop.f32.mrb[0].mxu0
    %v4894 = vadd.f32 0.0, %v4893
    %v4895 = vpop.f32.mrb[0].mxu0
    %4896 = vdwg.mxu0
    %v4897 = vmul.f32 %v4889, 0.088388346
    %v4898 = vmul.f32 %v4894, 0.088388346
    %v4899 = vmul.f32 %v4897, %v186
    %v4900 = vmul.f32 %v4898, %v187
    %v4901 = vadd.f32 %v4899, %v188
    %v4902 = vadd.f32 %v4900, %v189
    %v4903 = vsel %vm821, %v4901, -inf
    %4904 = vmax.xlane.f32.xlu0 %v4903
    %v4905 = vpop.xlane.xlu0 %4904
    %v4906 = vsel %vm821, %v4902, -inf
    %4907 = vmax.xlane.f32.xlu0 %v4906
    %v4908 = vpop.xlane.xlu0 %4907
    %v4909 = vsub.f32 %v4901, %v4905
    %v4910 = vsub.f32 %v4902, %v4908
    %v4911 = vmul.f32 %v4909, 1.442695
    %v4912 = vpow.pop %v4911
    %v4913 = vmul.f32 %v4910, 1.442695
    %v4914 = vpow.pop %v4913
    %v4915 = vsel %vm821, %v4912, 0.0
    %4916 = vadd.xlane.f32.xlu0 %v4915
    %v4917 = vpop.xlane.xlu0 %4916
    %v4918 = vsel %vm821, %v4914, 0.0
    %4919 = vadd.xlane.f32.xlu0 %v4918
    %v4920 = vpop.xlane.xlu0 %4919
    %v4921 = vrcp.pop %v4917
    %v4922 = vmul.f32 %v4912, %v4921
    %v4923 = vrcp.pop %v4920
    %v4924 = vmul.f32 %v4914, %v4923
    %v4926 = vsel %vm821, %v4922, 0
    %v4929 = vsel %vm821, %v4924, 0
    %4931 = vmatprep.subr.mxu0 0.0
    %4932 = vmatpush1.msra.mxu0 %v4802
    %4933 = vmatprep.subr.mxu0 0.0
    %4934 = vmatpush1.msra.mxu0 %v4807
    %4935 = vmatprep.subr.mxu0 0.0
    %4936 = vmatpush1.msra.mxu0 0.0
    %4937 = vmatprep.subr.mxu0 0.0
    %4938 = vmatpush1.msra.mxu0 0.0
    %4939 = vmatprep.subr.mxu0 0.0
    %4940 = vmatpush1.msra.mxu0 0.0
    %4941 = vmatprep.subr.mxu0 0.0
    %4942 = vmatpush1.msra.mxu0 0.0
    %4943 = vmatprep.subr.mxu0 0.0
    %4944 = vmatpush1.msra.mxu0 0.0
    %4945 = vmatprep.subr.mxu0 0.0
    %4946 = vmatpush1.msra.mxu0 0.0
    %4947 = vmatprep.subr.mxu0 0.0
    %4948 = vmatpush1.msra.mxu0 0.0
    %4949 = vmatprep.subr.mxu0 0.0
    %4950 = vmatpush1.msra.mxu0 0.0
    %4951 = vmatprep.subr.mxu0 0.0
    %4952 = vmatpush1.msra.mxu0 0.0
    %4953 = vmatprep.subr.mxu0 0.0
    %4954 = vmatpush1.msra.mxu0 0.0
    %4955 = vmatprep.subr.mxu0 0.0
    %4956 = vmatpush1.msra.mxu0 0.0
    %4957 = vmatprep.subr.mxu0 0.0
    %4958 = vmatpush1.msra.mxu0 0.0
    %4959 = vmatprep.subr.mxu0 0.0
    %4960 = vmatpush1.msra.mxu0 0.0
    %4961 = vmatprep.subr.mxu0 0.0
    %4962 = vmatpush1.msra.mxu0 0.0
    %4963 = vmatprep.subr.mxu0 0.0
    %4964 = vmatpush1.msra.mxu0 0.0
    %4965 = vmatprep.subr.mxu0 0.0
    %4966 = vmatpush1.msra.mxu0 0.0
    %4967 = vmatprep.subr.mxu0 0.0
    %4968 = vmatpush1.msra.mxu0 0.0
    %4969 = vmatprep.subr.mxu0 0.0
    %4970 = vmatpush1.msra.mxu0 0.0
    %4971 = vmatprep.subr.mxu0 0.0
    %4972 = vmatpush1.msra.mxu0 0.0
    %4973 = vmatprep.subr.mxu0 0.0
    %4974 = vmatpush1.msra.mxu0 0.0
    %4975 = vmatprep.subr.mxu0 0.0
    %4976 = vmatpush1.msra.mxu0 0.0
    %4977 = vmatprep.subr.mxu0 0.0
    %4978 = vmatpush1.msra.mxu0 0.0
    %4979 = vmatprep.subr.mxu0 0.0
    %4980 = vmatpush1.msra.mxu0 0.0
    %4981 = vmatprep.subr.mxu0 0.0
    %4982 = vmatpush1.msra.mxu0 0.0
    %4983 = vmatprep.subr.mxu0 0.0
    %4984 = vmatpush1.msra.mxu0 0.0
    %4985 = vmatprep.subr.mxu0 0.0
    %4986 = vmatpush1.msra.mxu0 0.0
    %4987 = vmatprep.subr.mxu0 0.0
    %4988 = vmatpush1.msra.mxu0 0.0
    %4989 = vmatprep.subr.mxu0 0.0
    %4990 = vmatpush1.msra.mxu0 0.0
    %4991 = vmatprep.subr.mxu0 0.0
    %4992 = vmatpush1.msra.mxu0 0.0
    %4993 = vmatprep.subr.mxu0 0.0
    %4994 = vmatpush1.msra.mxu0 0.0
    %4995 = vmatprep.mubr.f32.mxu0 0.0
    %4996 = vmatmul.mubr.f32.gmra.mrb[0].mxu0 %v4926
    %v4997 = vpop.f32.mrb[0].mxu0
    %v4998 = vadd.f32 0.0, %v4997
    %v4999 = vpop.f32.mrb[0].mxu0
    %5000 = vmatprep.mubr.f32.mxu0 0.0
    %5001 = vmatmul.mubr.f32.gmra.mrb[0].mxu0 %v4929
    %v5002 = vpop.f32.mrb[0].mxu0
    %v5003 = vadd.f32 0.0, %v5002
    %v5004 = vpop.f32.mrb[0].mxu0
    %5005 = vdwg.mxu0
    %s5006 = scalar_lea.vmem %s10, 224
    %v5007 = vld [vmem:[%s5006] sm:$0xff]
    %v5008 = vld [vmem:[%s5006 + $0x8] sm:$0xff]
    %v5009 = vld [vmem:[%s5006 + $0x10] sm:$0xff]
    %v5010 = vld [vmem:[%s5006 + $0x18] sm:$0xff]
    %v5012 = vsel %vm727, %v4998, 0
    %v5015 = vsel %vm727, %v5003, 0
    %5017 = vmatprep.subr.mxu0 0.0
    %5018 = vmatpush1.msra.mxu0 %v5007
    %5019 = vmatprep.subr.mxu0 0.0
    %5020 = vmatpush1.msra.mxu0 %v5008
    %5021 = vmatprep.subr.mxu0 0.0
    %5022 = vmatpush1.msra.mxu0 %v5009
    %5023 = vmatprep.subr.mxu0 0.0
    %5024 = vmatpush1.msra.mxu0 %v5010
    %5025 = vmatprep.subr.mxu0 0.0
    %5026 = vmatpush1.msra.mxu0 0.0
    %5027 = vmatprep.subr.mxu0 0.0
    %5028 = vmatpush1.msra.mxu0 0.0
    %5029 = vmatprep.subr.mxu0 0.0
    %5030 = vmatpush1.msra.mxu0 0.0
    %5031 = vmatprep.subr.mxu0 0.0
    %5032 = vmatpush1.msra.mxu0 0.0
    %5033 = vmatprep.subr.mxu0 0.0
    %5034 = vmatpush1.msra.mxu0 0.0
    %5035 = vmatprep.subr.mxu0 0.0
    %5036 = vmatpush1.msra.mxu0 0.0
    %5037 = vmatprep.subr.mxu0 0.0
    %5038 = vmatpush1.msra.mxu0 0.0
    %5039 = vmatprep.subr.mxu0 0.0
    %5040 = vmatpush1.msra.mxu0 0.0
    %5041 = vmatprep.subr.mxu0 0.0
    %5042 = vmatpush1.msra.mxu0 0.0
    %5043 = vmatprep.subr.mxu0 0.0
    %5044 = vmatpush1.msra.mxu0 0.0
    %5045 = vmatprep.subr.mxu0 0.0
    %5046 = vmatpush1.msra.mxu0 0.0
    %5047 = vmatprep.subr.mxu0 0.0
    %5048 = vmatpush1.msra.mxu0 0.0
    %5049 = vmatprep.subr.mxu0 0.0
    %5050 = vmatpush1.msra.mxu0 0.0
    %5051 = vmatprep.subr.mxu0 0.0
    %5052 = vmatpush1.msra.mxu0 0.0
    %5053 = vmatprep.subr.mxu0 0.0
    %5054 = vmatpush1.msra.mxu0 0.0
    %5055 = vmatprep.subr.mxu0 0.0
    %5056 = vmatpush1.msra.mxu0 0.0
    %5057 = vmatprep.subr.mxu0 0.0
    %5058 = vmatpush1.msra.mxu0 0.0
    %5059 = vmatprep.subr.mxu0 0.0
    %5060 = vmatpush1.msra.mxu0 0.0
    %5061 = vmatprep.subr.mxu0 0.0
    %5062 = vmatpush1.msra.mxu0 0.0
    %5063 = vmatprep.subr.mxu0 0.0
    %5064 = vmatpush1.msra.mxu0 0.0
    %5065 = vmatprep.subr.mxu0 0.0
    %5066 = vmatpush1.msra.mxu0 0.0
    %5067 = vmatprep.subr.mxu0 0.0
    %5068 = vmatpush1.msra.mxu0 0.0
    %5069 = vmatprep.subr.mxu0 0.0
    %5070 = vmatpush1.msra.mxu0 0.0
    %5071 = vmatprep.subr.mxu0 0.0
    %5072 = vmatpush1.msra.mxu0 0.0
    %5073 = vmatprep.subr.mxu0 0.0
    %5074 = vmatpush1.msra.mxu0 0.0
    %5075 = vmatprep.subr.mxu0 0.0
    %5076 = vmatpush1.msra.mxu0 0.0
    %5077 = vmatprep.subr.mxu0 0.0
    %5078 = vmatpush1.msra.mxu0 0.0
    %5079 = vmatprep.subr.mxu0 0.0
    %5080 = vmatpush1.msra.mxu0 0.0
    %5081 = vmatprep.mubr.f32.mxu0 0.0
    %5082 = vmatmul.mubr.f32.gmra.mrb[0].mxu0 %v5012
    %v5083 = vpop.f32.mrb[0].mxu0
    %v5084 = vadd.f32 0.0, %v5083
    %v5085 = vpop.f32.mrb[0].mxu0
    %5086 = vmatprep.mubr.f32.mxu0 0.0
    %5087 = vmatmul.mubr.f32.gmra.mrb[0].mxu0 %v5015
    %v5088 = vpop.f32.mrb[0].mxu0
    %v5089 = vadd.f32 0.0, %v5088
    %v5090 = vpop.f32.mrb[0].mxu0
    %5091 = vdwg.mxu0
    %v5092 = vadd.f32 %v4548, %v5084
    %v5093 = vadd.f32 %v4549, %v5089
    %v5094 = vld [vmem:[%s13] sm:$0xff]
    %v5095 = vld [vmem:[%s13 + $0x8] sm:$0xff]
    %v5096 = vld [vmem:[%s13 + $0x10] sm:$0xff]
    %v5097 = vld [vmem:[%s13 + $0x18] sm:$0xff]
    %v5098 = vld [vmem:[%s13 + $0x20] sm:$0xff]
    %v5099 = vld [vmem:[%s13 + $0x28] sm:$0xff]
    %v5100 = vld [vmem:[%s13 + $0x30] sm:$0xff]
    %v5101 = vld [vmem:[%s13 + $0x38] sm:$0xff]
    %v5102 = vld [vmem:[%s13 + $0x40] sm:$0xff]
    %v5103 = vld [vmem:[%s13 + $0x48] sm:$0xff]
    %v5104 = vld [vmem:[%s13 + $0x50] sm:$0xff]
    %v5105 = vld [vmem:[%s13 + $0x58] sm:$0xff]
    %v5106 = vld [vmem:[%s13 + $0x60] sm:$0xff]
    %v5107 = vld [vmem:[%s13 + $0x68] sm:$0xff]
    %v5108 = vld [vmem:[%s13 + $0x70] sm:$0xff]
    %v5109 = vld [vmem:[%s13 + $0x78] sm:$0xff]
    %v5110 = vld [vmem:[%s14] sm:$0x1]
    %v5112 = vlaneseq
    %v5113 = vshrl.u32 %v5112, 7
    %v5114 = vsub.s32 0, %v5113
    %v5115 = vrot.slane %v5110, %v5114
    %5117 = vmatprep.subr.mxu0 0.0
    %5118 = vmatpush1.msra.mxu0 %v5094
    %5119 = vmatprep.subr.mxu0 0.0
    %5120 = vmatpush1.msra.mxu0 %v5095
    %5121 = vmatprep.subr.mxu0 0.0
    %5122 = vmatpush1.msra.mxu0 %v5096
    %5123 = vmatprep.subr.mxu0 0.0
    %5124 = vmatpush1.msra.mxu0 %v5097
    %5125 = vmatprep.subr.mxu0 0.0
    %5126 = vmatpush1.msra.mxu0 %v5098
    %5127 = vmatprep.subr.mxu0 0.0
    %5128 = vmatpush1.msra.mxu0 %v5099
    %5129 = vmatprep.subr.mxu0 0.0
    %5130 = vmatpush1.msra.mxu0 %v5100
    %5131 = vmatprep.subr.mxu0 0.0
    %5132 = vmatpush1.msra.mxu0 %v5101
    %5133 = vmatprep.subr.mxu0 0.0
    %5134 = vmatpush1.msra.mxu0 %v5102
    %5135 = vmatprep.subr.mxu0 0.0
    %5136 = vmatpush1.msra.mxu0 %v5103
    %5137 = vmatprep.subr.mxu0 0.0
    %5138 = vmatpush1.msra.mxu0 %v5104
    %5139 = vmatprep.subr.mxu0 0.0
    %5140 = vmatpush1.msra.mxu0 %v5105
    %5141 = vmatprep.subr.mxu0 0.0
    %5142 = vmatpush1.msra.mxu0 %v5106
    %5143 = vmatprep.subr.mxu0 0.0
    %5144 = vmatpush1.msra.mxu0 %v5107
    %5145 = vmatprep.subr.mxu0 0.0
    %5146 = vmatpush1.msra.mxu0 %v5108
    %5147 = vmatprep.subr.mxu0 0.0
    %5148 = vmatpush1.msra.mxu0 %v5109
    %5149 = vmatprep.subr.mxu0 0.0
    %5150 = vmatpush1.msra.mxu0 0.0
    %5151 = vmatprep.subr.mxu0 0.0
    %5152 = vmatpush1.msra.mxu0 0.0
    %5153 = vmatprep.subr.mxu0 0.0
    %5154 = vmatpush1.msra.mxu0 0.0
    %5155 = vmatprep.subr.mxu0 0.0
    %5156 = vmatpush1.msra.mxu0 0.0
    %5157 = vmatprep.subr.mxu0 0.0
    %5158 = vmatpush1.msra.mxu0 0.0
    %5159 = vmatprep.subr.mxu0 0.0
    %5160 = vmatpush1.msra.mxu0 0.0
    %5161 = vmatprep.subr.mxu0 0.0
    %5162 = vmatpush1.msra.mxu0 0.0
    %5163 = vmatprep.subr.mxu0 0.0
    %5164 = vmatpush1.msra.mxu0 0.0
    %5165 = vmatprep.subr.mxu0 0.0
    %5166 = vmatpush1.msra.mxu0 0.0
    %5167 = vmatprep.subr.mxu0 0.0
    %5168 = vmatpush1.msra.mxu0 0.0
    %5169 = vmatprep.subr.mxu0 0.0
    %5170 = vmatpush1.msra.mxu0 0.0
    %5171 = vmatprep.subr.mxu0 0.0
    %5172 = vmatpush1.msra.mxu0 0.0
    %5173 = vmatprep.subr.mxu0 0.0
    %5174 = vmatpush1.msra.mxu0 0.0
    %5175 = vmatprep.subr.mxu0 0.0
    %5176 = vmatpush1.msra.mxu0 0.0
    %5177 = vmatprep.subr.mxu0 0.0
    %5178 = vmatpush1.msra.mxu0 0.0
    %5179 = vmatprep.subr.mxu0 0.0
    %5180 = vmatpush1.msra.mxu0 0.0
    %5181 = vmatprep.mubr.f32.mxu0 0.0
    %5182 = vmatmul.mubr.f32.gmra.mrb[0].mxu0 %v5092
    %v5183 = vpop.f32.mrb[0].mxu0
    %v5184 = vadd.f32 %v5115, %v5183
    %v5185 = vpop.f32.mrb[0].mxu0
    %5186 = vmatprep.mubr.f32.mxu0 0.0
    %5187 = vmatmul.mubr.f32.gmra.mrb[0].mxu0 %v5093
    %v5188 = vpop.f32.mrb[0].mxu0
    %v5189 = vadd.f32 %v5115, %v5188
    %v5190 = vpop.f32.mrb[0].mxu0
    %5191 = vdwg.mxu0
    %5192 = vst [vmem:[#allocation4] sm:$0xff] %v5184
    %5193 = vst [vmem:[#allocation4 + $0x8] sm:$0xff] %v5189
    // Predicated region
    $region58: #{transformer_model2_forward.1} parent=1 // pred_check
      _
    $region59: #{transformer_model2_forward.1} parent=1 // pred_check_branch
      %5195 = sbr.rel (0) target = $region61
    $region60: #{transformer_model2_forward.1} parent=1 // pred_region
      %s5197 = ssub.s32 256, 256
      %5198 = vsyncadd [#allocation5], %s5197
      %s5199 = sshll.u32 [#allocation4], 4
      %s5200 = int_to_ptr.vmem [resolvable:$true] %s5199
      %5205 = dma.vmem_to_hbm [thread:$0]  %s5200, 256, %s15, [#allocation5], 128, 128, 8
    $region61: #{transformer_model2_forward.1} parent=1 // pred_fallthru
      _
    // Predicated region
    $region62: #{transformer_model2_forward.1} parent=1 // pred_check
      _
    $region63: #{transformer_model2_forward.1} parent=1 // pred_check_branch
      %5207 = sbr.rel (0) target = $region65
    $region64: #{transformer_model2_forward.1} parent=1 // pred_region
      %5208 = dma.done [#allocation5], 256
    $region65: #{transformer_model2_forward.1} parent=1 // pred_fallthru
      _
    %5209 = vsyncpa [#allocation5], 1

</llo_original>
